<compile_context>
chip_gen: v7x
topology: tpu7x:2x2x1
jax: 0.10.0
libtpu: 0.0.40
codegen_flags: <defaults>
</compile_context>

<pallas_src>
import functools
import math

import jax
import jax.numpy as jnp
import numpy as np
from jax import lax
from jax.experimental import pallas as pl
from jax.experimental.pallas import tpu as pltpu


# ---------------------------------------------------------------------------
# Pallas kernel
# ---------------------------------------------------------------------------
def _dw3x3_kernel(x_ref, top_ref, bot_ref, w_ref, o_ref, *, TH, W, m, nH):
    """One (batch, channel-tile, row-tile) step of the depthwise 3x3 conv.

    x_ref  : (1, TH, W+2, Ct)  row tile, columns zero-padded by 1 on each side
    top_ref: (1, 1,  W+2, Ct)  input row just above the tile (clamped at border)
    bot_ref: (1, 1,  W+2, Ct)  input row just below the tile (clamped at border)
    w_ref  : (m, 9,  Ct)       taps; tap t = 3*dy + dx for multiplier group j
    o_ref  : (m, TH, W, Ct)    output rows for all m channel-multiplier groups
    """
    h = pl.program_id(2)
    f32 = jnp.float32

    # Hoist the weight load; pre-split into (1, Ct) per-tap row vectors.
    wv = w_ref[...].astype(f32)                                   # (m, 9, Ct)
    taps = [[wv[j, t][None, :] for t in range(9)] for j in range(m)]

    # Halo rows, zeroed at the top/bottom image border (scalar 0/1 multiply).
    not_top = (h > 0).astype(f32)
    not_bot = (h < nH - 1).astype(f32)
    top = top_ref[0, 0].astype(f32) * not_top                     # (W+2, Ct)
    bot = bot_ref[0, 0].astype(f32) * not_bot                     # (W+2, Ct)

    body = x_ref[0].astype(f32)                                   # (TH, W+2, Ct)
    xpad = jnp.concatenate([top[None], body, bot[None]], axis=0)  # (TH+2, W+2, Ct)

    # Three column-shifted views, hoisted once per (small) tile; reused by all
    # output rows and all m multiplier groups.
    cols = [xpad[:, dx:dx + W, :] for dx in range(3)]             # each (TH+2, W, Ct)

    # Per-row accumulation: every output row is computed fully in registers /
    # short-lived values and stored exactly once (no plane-sized acc RMW).
    for y in range(TH):                                           # TH kept small (static)
        rows = [[cols[dx][y + dy] for dx in range(3)] for dy in range(3)]
        for j in range(m):                                        # m is small (static)
            acc = rows[0][0] * taps[j][0]
            for t in range(1, 9):
                dy, dx = divmod(t, 3)
                acc = acc + rows[dy][dx] * taps[j][t]
            o_ref[j, y] = acc.astype(o_ref.dtype)


# ---------------------------------------------------------------------------
# Pallas-backed depthwise conv
# ---------------------------------------------------------------------------
def _pick_row_tile(H):
    """Modest row-tile so blocks + temporaries stay well under v7x's VMEM."""
    for th in (16, 8):
        if H % th == 0 and H > th:
            return th
    return H


def depthwise_conv3x3(x, w, *, stride=1):
    """x: (B, Cin, H, W) NCHW; w: (Cout, 3, 3) with Cout = m*Cin.

    PyTorch grouped-conv semantics (groups=Cin): output channel o = ci*m + j
    reads input channel ci = o // m and uses tap plane w[o].
    """
    B, Cin, H, W = x.shape
    Cout = w.shape[0]
    assert Cout % Cin == 0, "out_ch must be a multiple of in_ch for groups=in_ch"
    m = Cout // Cin

    # Channel tiling: lane-dense 128-channel tiles when possible, else full C.
    # TODO(synk): pack m (and/or a factor of W) into the lane axis when Cin < 128.
    Ct = 128 if Cin % 128 == 0 else Cin
    nC = Cin // Ct

    TH = _pick_row_tile(H)
    nH = H // TH
    Wp = W + 2

    # Single boundary pass: NCHW -> NHWC with the 1-column zero halo fused in.
    x_nhwc = jnp.pad(x, ((0, 0), (0, 0), (0, 0), (1, 1))).transpose(0, 2, 3, 1)

    # Weight: (Cout,3,3) -> (m, 9, Cin) with [j, t, ci] = w[ci*m + j, dy, dx].
    w_k = w.reshape(Cin, m, 3, 3).transpose(1, 2, 3, 0).reshape(m, 9, Cin)

    # Explicit VMEM budget (double-buffered blocks + f32 in-kernel temporaries).
    itemsize = jnp.dtype(x.dtype).itemsize
    blk_bytes = ((TH + 4) * Wp * Ct + m * 9 * Ct + m * TH * W * Ct) * itemsize
    tmp_bytes = (TH + 2) * (Wp + 3 * W) * Ct * 4
    vmem_limit = int(min(64 * 2 ** 20, max(4 * blk_bytes + 2 * tmp_bytes, 16 * 2 ** 20)))

    cost = pl.CostEstimate(
        flops=2 * 9 * B * Cout * H * W,
        transcendentals=0,
        bytes_accessed=int(x.size * itemsize + w_k.size * itemsize
                           + B * Cout * H * W * itemsize),
    )

    out4 = pl.pallas_call(
        functools.partial(_dw3x3_kernel, TH=TH, W=W, m=m, nH=nH),
        out_shape=jax.ShapeDtypeStruct((B * m, H, W, Cin), x.dtype),
        grid=(B, nC, nH),
        in_specs=[
            # main row tile (blocked along H)
            pl.BlockSpec((1, TH, Wp, Ct), lambda b, c, h: (b, h, 0, c)),
            # 1-row halos: block size 1 along H => index_map returns a row index
            # (clamped at the image border; the kernel zero-masks that case).
            pl.BlockSpec((1, 1, Wp, Ct),
                         lambda b, c, h: (b, jnp.maximum(h * TH - 1, 0), 0, c)),
            pl.BlockSpec((1, 1, Wp, Ct),
                         lambda b, c, h: (b, jnp.minimum((h + 1) * TH, H - 1), 0, c)),
            # taps (re-used across b and h; only re-fetched when c changes)
            pl.BlockSpec((m, 9, Ct), lambda b, c, h: (0, 0, c)),
        ],
        out_specs=pl.BlockSpec((m, TH, W, Ct), lambda b, c, h: (b, h, 0, c)),
        compiler_params=pltpu.CompilerParams(
            dimension_semantics=("parallel", "parallel", "parallel"),
            vmem_limit_bytes=vmem_limit),
        cost_estimate=cost,
    )(x_nhwc, x_nhwc, x_nhwc, w_k)

    # (B*m, H, W, Cin) -> (B, Cout, H, W) with output channel index ci*m + j
    # (single full-output transpose; unavoidable for the NCHW API).
    out = (out4.reshape(B, m, H, W, Cin)
               .transpose(0, 4, 1, 2, 3)
               .reshape(B, Cout, H, W))
    if stride != 1:
        # k=3 / pad=1: the stride-s output is an exact subsample of stride-1.
        # TODO(synk): compute the strided output inside the kernel to avoid the
        # extra compute / output-HBM writes for downsampling layers.
        out = out[:, :, ::stride, ::stride]
    return out


def depthwise_separable_conv_forward(x, weight, *, stride=1, kernel_size=3, padding=1):
    """weight: (out_ch, 1, 3, 3) as produced by nn.Conv2d(..., groups=in_ch)."""
    # TODO(synk): only kernel_size=3 / padding=1 are implemented (module defaults).
    assert kernel_size == 3 and padding == 1
    return depthwise_conv3x3(x, weight[:, 0], stride=stride)


# ---------------------------------------------------------------------------
# Pure-JAX reference (correctness check)
# ---------------------------------------------------------------------------
def ref_forward(x, weight, *, stride=1):
    cin = x.shape[1]
    return lax.conv_general_dilated(
        x, weight, window_strides=(stride, stride), padding=((1, 1), (1, 1)),
        feature_group_count=cin, dimension_numbers=("NCHW", "OIHW", "NCHW"))


# ---------------------------------------------------------------------------
if __name__ == "__main__":
    # Config 1: channel multiplier m = 2, two row tiles (nH = 2).
    B, Cin, Cout, H, W = 2, 32, 64, 16, 16
    key = jax.random.PRNGKey(0)
    kx, kw, kx2, kw2 = jax.random.split(key, 4)
    x = jax.random.normal(kx, (B, Cin, H, W), jnp.float32)
    weight = jax.random.normal(kw, (Cout, 1, 3, 3), jnp.float32) * math.sqrt(2.0 / (9 * Cout))

    out = jax.jit(depthwise_separable_conv_forward)(x, weight)
    jax.block_until_ready(out)
    ref = ref_forward(x, weight)
    assert out.shape == (B, Cout, H, W)
    np.testing.assert_allclose(np.asarray(out), np.asarray(ref), rtol=1e-4, atol=1e-4)

    # Stride-2 path (same kernel; strided output is a subsample for k=3, pad=1).
    out_s2 = jax.jit(lambda a, b: depthwise_separable_conv_forward(a, b, stride=2))(x, weight)
    jax.block_until_ready(out_s2)
    ref_s2 = ref_forward(x, weight, stride=2)
    np.testing.assert_allclose(np.asarray(out_s2), np.asarray(ref_s2), rtol=1e-4, atol=1e-4)

    # Config 2: m = 1, single row tile (nH = 1), lane-dense 128-channel tile.
    B2, C2, H2, W2 = 1, 128, 8, 8
    x2 = jax.random.normal(kx2, (B2, C2, H2, W2), jnp.float32)
    w2 = jax.random.normal(kw2, (C2, 1, 3, 3), jnp.float32) * math.sqrt(2.0 / (9 * C2))
    out2 = jax.jit(depthwise_separable_conv_forward)(x2, w2)
    jax.block_until_ready(out2)
    np.testing.assert_allclose(np.asarray(out2), np.asarray(ref_forward(x2, w2)),
                               rtol=1e-4, atol=1e-4)

    print("KERNEL_OK")
</pallas_src>

<mosaic_0001>
module attributes {stable_mosaic.version = 11 : i64} {
  func.func @_dw3x3_kernel(%arg0: i32, %arg1: i32, %arg2: i32, %arg3: memref<1x8x18x32xf32, #tpu.memory_space<vmem>>, %arg4: memref<1x1x18x32xf32, #tpu.memory_space<vmem>>, %arg5: memref<1x1x18x32xf32, #tpu.memory_space<vmem>>, %arg6: memref<2x9x32xf32, #tpu.memory_space<vmem>>, %arg7: memref<2x8x16x32xf32, #tpu.memory_space<vmem>>) attributes {dimension_semantics = [#tpu.dimension_semantics<parallel>, #tpu.dimension_semantics<parallel>, #tpu.dimension_semantics<parallel>], iteration_bounds = array<i64: 2, 1, 2>, scalar_prefetch = 0 : i64, scratch_operands = 0 : i64, tpu.core_type = #tpu.core_type<tc>, window_params = [{transform_indices = @transform_0, window_bounds = array<i64: 1, 8, 18, 32>}, {transform_indices = @transform_1, window_bounds = array<i64: 1, 1, 18, 32>}, {transform_indices = @transform_2, window_bounds = array<i64: 1, 1, 18, 32>}, {transform_indices = @transform_3, window_bounds = array<i64: 2, 9, 32>}, {transform_indices = @transform_4, window_bounds = array<i64: 2, 8, 16, 32>}]} {
    %c0 = arith.constant 0 : index
    %c0_0 = arith.constant 0 : index
    %c0_1 = arith.constant 0 : index
    %0 = vector.load %arg6[%c0, %c0_0, %c0_1] : memref<2x9x32xf32, #tpu.memory_space<vmem>>, vector<2x9x32xf32>
    %1 = vector.extract_strided_slice %0 {offsets = [0, 0, 0], sizes = [1, 1, 32], strides = [1, 1, 1]} : vector<2x9x32xf32> to vector<1x1x32xf32>
    %2 = vector.shape_cast %1 : vector<1x1x32xf32> to vector<32xf32>
    %3 = vector.shape_cast %2 : vector<32xf32> to vector<1x32xf32>
    %4 = vector.extract_strided_slice %0 {offsets = [0, 1, 0], sizes = [1, 1, 32], strides = [1, 1, 1]} : vector<2x9x32xf32> to vector<1x1x32xf32>
    %5 = vector.shape_cast %4 : vector<1x1x32xf32> to vector<32xf32>
    %6 = vector.shape_cast %5 : vector<32xf32> to vector<1x32xf32>
    %7 = vector.extract_strided_slice %0 {offsets = [0, 2, 0], sizes = [1, 1, 32], strides = [1, 1, 1]} : vector<2x9x32xf32> to vector<1x1x32xf32>
    %8 = vector.shape_cast %7 : vector<1x1x32xf32> to vector<32xf32>
    %9 = vector.shape_cast %8 : vector<32xf32> to vector<1x32xf32>
    %10 = vector.extract_strided_slice %0 {offsets = [0, 3, 0], sizes = [1, 1, 32], strides = [1, 1, 1]} : vector<2x9x32xf32> to vector<1x1x32xf32>
    %11 = vector.shape_cast %10 : vector<1x1x32xf32> to vector<32xf32>
    %12 = vector.shape_cast %11 : vector<32xf32> to vector<1x32xf32>
    %13 = vector.extract_strided_slice %0 {offsets = [0, 4, 0], sizes = [1, 1, 32], strides = [1, 1, 1]} : vector<2x9x32xf32> to vector<1x1x32xf32>
    %14 = vector.shape_cast %13 : vector<1x1x32xf32> to vector<32xf32>
    %15 = vector.shape_cast %14 : vector<32xf32> to vector<1x32xf32>
    %16 = vector.extract_strided_slice %0 {offsets = [0, 5, 0], sizes = [1, 1, 32], strides = [1, 1, 1]} : vector<2x9x32xf32> to vector<1x1x32xf32>
    %17 = vector.shape_cast %16 : vector<1x1x32xf32> to vector<32xf32>
    %18 = vector.shape_cast %17 : vector<32xf32> to vector<1x32xf32>
    %19 = vector.extract_strided_slice %0 {offsets = [0, 6, 0], sizes = [1, 1, 32], strides = [1, 1, 1]} : vector<2x9x32xf32> to vector<1x1x32xf32>
    %20 = vector.shape_cast %19 : vector<1x1x32xf32> to vector<32xf32>
    %21 = vector.shape_cast %20 : vector<32xf32> to vector<1x32xf32>
    %22 = vector.extract_strided_slice %0 {offsets = [0, 7, 0], sizes = [1, 1, 32], strides = [1, 1, 1]} : vector<2x9x32xf32> to vector<1x1x32xf32>
    %23 = vector.shape_cast %22 : vector<1x1x32xf32> to vector<32xf32>
    %24 = vector.shape_cast %23 : vector<32xf32> to vector<1x32xf32>
    %25 = vector.extract_strided_slice %0 {offsets = [0, 8, 0], sizes = [1, 1, 32], strides = [1, 1, 1]} : vector<2x9x32xf32> to vector<1x1x32xf32>
    %26 = vector.shape_cast %25 : vector<1x1x32xf32> to vector<32xf32>
    %27 = vector.shape_cast %26 : vector<32xf32> to vector<1x32xf32>
    %28 = vector.extract_strided_slice %0 {offsets = [1, 0, 0], sizes = [1, 1, 32], strides = [1, 1, 1]} : vector<2x9x32xf32> to vector<1x1x32xf32>
    %29 = vector.shape_cast %28 : vector<1x1x32xf32> to vector<32xf32>
    %30 = vector.shape_cast %29 : vector<32xf32> to vector<1x32xf32>
    %31 = vector.extract_strided_slice %0 {offsets = [1, 1, 0], sizes = [1, 1, 32], strides = [1, 1, 1]} : vector<2x9x32xf32> to vector<1x1x32xf32>
    %32 = vector.shape_cast %31 : vector<1x1x32xf32> to vector<32xf32>
    %33 = vector.shape_cast %32 : vector<32xf32> to vector<1x32xf32>
    %34 = vector.extract_strided_slice %0 {offsets = [1, 2, 0], sizes = [1, 1, 32], strides = [1, 1, 1]} : vector<2x9x32xf32> to vector<1x1x32xf32>
    %35 = vector.shape_cast %34 : vector<1x1x32xf32> to vector<32xf32>
    %36 = vector.shape_cast %35 : vector<32xf32> to vector<1x32xf32>
    %37 = vector.extract_strided_slice %0 {offsets = [1, 3, 0], sizes = [1, 1, 32], strides = [1, 1, 1]} : vector<2x9x32xf32> to vector<1x1x32xf32>
    %38 = vector.shape_cast %37 : vector<1x1x32xf32> to vector<32xf32>
    %39 = vector.shape_cast %38 : vector<32xf32> to vector<1x32xf32>
    %40 = vector.extract_strided_slice %0 {offsets = [1, 4, 0], sizes = [1, 1, 32], strides = [1, 1, 1]} : vector<2x9x32xf32> to vector<1x1x32xf32>
    %41 = vector.shape_cast %40 : vector<1x1x32xf32> to vector<32xf32>
    %42 = vector.shape_cast %41 : vector<32xf32> to vector<1x32xf32>
    %43 = vector.extract_strided_slice %0 {offsets = [1, 5, 0], sizes = [1, 1, 32], strides = [1, 1, 1]} : vector<2x9x32xf32> to vector<1x1x32xf32>
    %44 = vector.shape_cast %43 : vector<1x1x32xf32> to vector<32xf32>
    %45 = vector.shape_cast %44 : vector<32xf32> to vector<1x32xf32>
    %46 = vector.extract_strided_slice %0 {offsets = [1, 6, 0], sizes = [1, 1, 32], strides = [1, 1, 1]} : vector<2x9x32xf32> to vector<1x1x32xf32>
    %47 = vector.shape_cast %46 : vector<1x1x32xf32> to vector<32xf32>
    %48 = vector.shape_cast %47 : vector<32xf32> to vector<1x32xf32>
    %49 = vector.extract_strided_slice %0 {offsets = [1, 7, 0], sizes = [1, 1, 32], strides = [1, 1, 1]} : vector<2x9x32xf32> to vector<1x1x32xf32>
    %50 = vector.shape_cast %49 : vector<1x1x32xf32> to vector<32xf32>
    %51 = vector.shape_cast %50 : vector<32xf32> to vector<1x32xf32>
    %52 = vector.extract_strided_slice %0 {offsets = [1, 8, 0], sizes = [1, 1, 32], strides = [1, 1, 1]} : vector<2x9x32xf32> to vector<1x1x32xf32>
    %53 = vector.shape_cast %52 : vector<1x1x32xf32> to vector<32xf32>
    %54 = vector.shape_cast %53 : vector<32xf32> to vector<1x32xf32>
    %c0_i32 = arith.constant 0 : i32
    %55 = arith.cmpi sgt, %arg2, %c0_i32 : i32
    %56 = arith.extui %55 : i1 to i32
    %57 = arith.sitofp %56 : i32 to f32
    %c1_i32 = arith.constant 1 : i32
    %58 = arith.cmpi slt, %arg2, %c1_i32 : i32
    %59 = arith.extui %58 : i1 to i32
    %60 = arith.sitofp %59 : i32 to f32
    %c0_2 = arith.constant 0 : index
    %c0_3 = arith.constant 0 : index
    %c0_4 = arith.constant 0 : index
    %c0_5 = arith.constant 0 : index
    %61 = vector.load %arg4[%c0_2, %c0_3, %c0_4, %c0_5] : memref<1x1x18x32xf32, #tpu.memory_space<vmem>>, vector<1x1x18x32xf32>
    %62 = vector.shape_cast %61 : vector<1x1x18x32xf32> to vector<18x32xf32>
    %63 = vector.broadcast %57 : f32 to vector<18x32xf32>
    %64 = arith.mulf %62, %63 : vector<18x32xf32>
    %c0_6 = arith.constant 0 : index
    %c0_7 = arith.constant 0 : index
    %c0_8 = arith.constant 0 : index
    %c0_9 = arith.constant 0 : index
    %65 = vector.load %arg5[%c0_6, %c0_7, %c0_8, %c0_9] : memref<1x1x18x32xf32, #tpu.memory_space<vmem>>, vector<1x1x18x32xf32>
    %66 = vector.shape_cast %65 : vector<1x1x18x32xf32> to vector<18x32xf32>
    %67 = vector.broadcast %60 : f32 to vector<18x32xf32>
    %68 = arith.mulf %66, %67 : vector<18x32xf32>
    %c0_10 = arith.constant 0 : index
    %c0_11 = arith.constant 0 : index
    %c0_12 = arith.constant 0 : index
    %c0_13 = arith.constant 0 : index
    %69 = vector.load %arg3[%c0_10, %c0_11, %c0_12, %c0_13] : memref<1x8x18x32xf32, #tpu.memory_space<vmem>>, vector<1x8x18x32xf32>
    %70 = vector.shape_cast %69 : vector<1x8x18x32xf32> to vector<8x18x32xf32>
    %71 = vector.shape_cast %64 : vector<18x32xf32> to vector<1x18x32xf32>
    %72 = vector.shape_cast %68 : vector<18x32xf32> to vector<1x18x32xf32>
    %73 = tpu.concatenate %71, %70, %72 in 0 : vector<1x18x32xf32>, vector<8x18x32xf32>, vector<1x18x32xf32> -> vector<10x18x32xf32>
    %74 = vector.extract_strided_slice %73 {offsets = [0, 0, 0], sizes = [10, 16, 32], strides = [1, 1, 1]} : vector<10x18x32xf32> to vector<10x16x32xf32>
    %75 = vector.extract_strided_slice %73 {offsets = [0, 1, 0], sizes = [10, 16, 32], strides = [1, 1, 1]} : vector<10x18x32xf32> to vector<10x16x32xf32>
    %76 = vector.extract_strided_slice %73 {offsets = [0, 2, 0], sizes = [10, 16, 32], strides = [1, 1, 1]} : vector<10x18x32xf32> to vector<10x16x32xf32>
    %77 = vector.extract_strided_slice %74 {offsets = [0, 0, 0], sizes = [1, 16, 32], strides = [1, 1, 1]} : vector<10x16x32xf32> to vector<1x16x32xf32>
    %78 = vector.shape_cast %77 : vector<1x16x32xf32> to vector<16x32xf32>
    %79 = vector.extract_strided_slice %75 {offsets = [0, 0, 0], sizes = [1, 16, 32], strides = [1, 1, 1]} : vector<10x16x32xf32> to vector<1x16x32xf32>
    %80 = vector.shape_cast %79 : vector<1x16x32xf32> to vector<16x32xf32>
    %81 = vector.extract_strided_slice %76 {offsets = [0, 0, 0], sizes = [1, 16, 32], strides = [1, 1, 1]} : vector<10x16x32xf32> to vector<1x16x32xf32>
    %82 = vector.shape_cast %81 : vector<1x16x32xf32> to vector<16x32xf32>
    %83 = vector.extract_strided_slice %74 {offsets = [1, 0, 0], sizes = [1, 16, 32], strides = [1, 1, 1]} : vector<10x16x32xf32> to vector<1x16x32xf32>
    %84 = vector.shape_cast %83 : vector<1x16x32xf32> to vector<16x32xf32>
    %85 = vector.extract_strided_slice %75 {offsets = [1, 0, 0], sizes = [1, 16, 32], strides = [1, 1, 1]} : vector<10x16x32xf32> to vector<1x16x32xf32>
    %86 = vector.shape_cast %85 : vector<1x16x32xf32> to vector<16x32xf32>
    %87 = vector.extract_strided_slice %76 {offsets = [1, 0, 0], sizes = [1, 16, 32], strides = [1, 1, 1]} : vector<10x16x32xf32> to vector<1x16x32xf32>
    %88 = vector.shape_cast %87 : vector<1x16x32xf32> to vector<16x32xf32>
    %89 = vector.extract_strided_slice %74 {offsets = [2, 0, 0], sizes = [1, 16, 32], strides = [1, 1, 1]} : vector<10x16x32xf32> to vector<1x16x32xf32>
    %90 = vector.shape_cast %89 : vector<1x16x32xf32> to vector<16x32xf32>
    %91 = vector.extract_strided_slice %75 {offsets = [2, 0, 0], sizes = [1, 16, 32], strides = [1, 1, 1]} : vector<10x16x32xf32> to vector<1x16x32xf32>
    %92 = vector.shape_cast %91 : vector<1x16x32xf32> to vector<16x32xf32>
    %93 = vector.extract_strided_slice %76 {offsets = [2, 0, 0], sizes = [1, 16, 32], strides = [1, 1, 1]} : vector<10x16x32xf32> to vector<1x16x32xf32>
    %94 = vector.shape_cast %93 : vector<1x16x32xf32> to vector<16x32xf32>
    %95 = vector.broadcast %3 : vector<1x32xf32> to vector<16x32xf32>
    %96 = arith.mulf %78, %95 : vector<16x32xf32>
    %97 = vector.broadcast %6 : vector<1x32xf32> to vector<16x32xf32>
    %98 = arith.mulf %80, %97 : vector<16x32xf32>
    %99 = arith.addf %96, %98 : vector<16x32xf32>
    %100 = vector.broadcast %9 : vector<1x32xf32> to vector<16x32xf32>
    %101 = arith.mulf %82, %100 : vector<16x32xf32>
    %102 = arith.addf %99, %101 : vector<16x32xf32>
    %103 = vector.broadcast %12 : vector<1x32xf32> to vector<16x32xf32>
    %104 = arith.mulf %84, %103 : vector<16x32xf32>
    %105 = arith.addf %102, %104 : vector<16x32xf32>
    %106 = vector.broadcast %15 : vector<1x32xf32> to vector<16x32xf32>
    %107 = arith.mulf %86, %106 : vector<16x32xf32>
    %108 = arith.addf %105, %107 : vector<16x32xf32>
    %109 = vector.broadcast %18 : vector<1x32xf32> to vector<16x32xf32>
    %110 = arith.mulf %88, %109 : vector<16x32xf32>
    %111 = arith.addf %108, %110 : vector<16x32xf32>
    %112 = vector.broadcast %21 : vector<1x32xf32> to vector<16x32xf32>
    %113 = arith.mulf %90, %112 : vector<16x32xf32>
    %114 = arith.addf %111, %113 : vector<16x32xf32>
    %115 = vector.broadcast %24 : vector<1x32xf32> to vector<16x32xf32>
    %116 = arith.mulf %92, %115 : vector<16x32xf32>
    %117 = arith.addf %114, %116 : vector<16x32xf32>
    %118 = vector.broadcast %27 : vector<1x32xf32> to vector<16x32xf32>
    %119 = arith.mulf %94, %118 : vector<16x32xf32>
    %120 = arith.addf %117, %119 : vector<16x32xf32>
    %c0_14 = arith.constant 0 : index
    %c0_15 = arith.constant 0 : index
    %c0_16 = arith.constant 0 : index
    %c0_17 = arith.constant 0 : index
    %121 = vector.load %arg7[%c0_14, %c0_15, %c0_16, %c0_17] : memref<2x8x16x32xf32, #tpu.memory_space<vmem>>, vector<1x1x16x32xf32>
    %122 = vector.shape_cast %121 : vector<1x1x16x32xf32> to vector<16x32xf32>
    %123 = vector.shape_cast %120 : vector<16x32xf32> to vector<1x1x16x32xf32>
    tpu.vector_store %arg7[%c0_14, %c0_15, %c0_16, %c0_17], %123 {strides = array<i32>} : memref<2x8x16x32xf32, #tpu.memory_space<vmem>>, vector<1x1x16x32xf32>,
    %124 = vector.broadcast %30 : vector<1x32xf32> to vector<16x32xf32>
    %125 = arith.mulf %78, %124 : vector<16x32xf32>
    %126 = vector.broadcast %33 : vector<1x32xf32> to vector<16x32xf32>
    %127 = arith.mulf %80, %126 : vector<16x32xf32>
    %128 = arith.addf %125, %127 : vector<16x32xf32>
    %129 = vector.broadcast %36 : vector<1x32xf32> to vector<16x32xf32>
    %130 = arith.mulf %82, %129 : vector<16x32xf32>
    %131 = arith.addf %128, %130 : vector<16x32xf32>
    %132 = vector.broadcast %39 : vector<1x32xf32> to vector<16x32xf32>
    %133 = arith.mulf %84, %132 : vector<16x32xf32>
    %134 = arith.addf %131, %133 : vector<16x32xf32>
    %135 = vector.broadcast %42 : vector<1x32xf32> to vector<16x32xf32>
    %136 = arith.mulf %86, %135 : vector<16x32xf32>
    %137 = arith.addf %134, %136 : vector<16x32xf32>
    %138 = vector.broadcast %45 : vector<1x32xf32> to vector<16x32xf32>
    %139 = arith.mulf %88, %138 : vector<16x32xf32>
    %140 = arith.addf %137, %139 : vector<16x32xf32>
    %141 = vector.broadcast %48 : vector<1x32xf32> to vector<16x32xf32>
    %142 = arith.mulf %90, %141 : vector<16x32xf32>
    %143 = arith.addf %140, %142 : vector<16x32xf32>
    %144 = vector.broadcast %51 : vector<1x32xf32> to vector<16x32xf32>
    %145 = arith.mulf %92, %144 : vector<16x32xf32>
    %146 = arith.addf %143, %145 : vector<16x32xf32>
    %147 = vector.broadcast %54 : vector<1x32xf32> to vector<16x32xf32>
    %148 = arith.mulf %94, %147 : vector<16x32xf32>
    %149 = arith.addf %146, %148 : vector<16x32xf32>
    %c1 = arith.constant 1 : index
    %c0_18 = arith.constant 0 : index
    %c0_19 = arith.constant 0 : index
    %c0_20 = arith.constant 0 : index
    %150 = vector.load %arg7[%c1, %c0_18, %c0_19, %c0_20] : memref<2x8x16x32xf32, #tpu.memory_space<vmem>>, vector<1x1x16x32xf32>
    %151 = vector.shape_cast %150 : vector<1x1x16x32xf32> to vector<16x32xf32>
    %152 = vector.shape_cast %149 : vector<16x32xf32> to vector<1x1x16x32xf32>
    tpu.vector_store %arg7[%c1, %c0_18, %c0_19, %c0_20], %152 {strides = array<i32>} : memref<2x8x16x32xf32, #tpu.memory_space<vmem>>, vector<1x1x16x32xf32>,
    %153 = vector.extract_strided_slice %74 {offsets = [1, 0, 0], sizes = [1, 16, 32], strides = [1, 1, 1]} : vector<10x16x32xf32> to vector<1x16x32xf32>
    %154 = vector.shape_cast %153 : vector<1x16x32xf32> to vector<16x32xf32>
    %155 = vector.extract_strided_slice %75 {offsets = [1, 0, 0], sizes = [1, 16, 32], strides = [1, 1, 1]} : vector<10x16x32xf32> to vector<1x16x32xf32>
    %156 = vector.shape_cast %155 : vector<1x16x32xf32> to vector<16x32xf32>
    %157 = vector.extract_strided_slice %76 {offsets = [1, 0, 0], sizes = [1, 16, 32], strides = [1, 1, 1]} : vector<10x16x32xf32> to vector<1x16x32xf32>
    %158 = vector.shape_cast %157 : vector<1x16x32xf32> to vector<16x32xf32>
    %159 = vector.extract_strided_slice %74 {offsets = [2, 0, 0], sizes = [1, 16, 32], strides = [1, 1, 1]} : vector<10x16x32xf32> to vector<1x16x32xf32>
    %160 = vector.shape_cast %159 : vector<1x16x32xf32> to vector<16x32xf32>
    %161 = vector.extract_strided_slice %75 {offsets = [2, 0, 0], sizes = [1, 16, 32], strides = [1, 1, 1]} : vector<10x16x32xf32> to vector<1x16x32xf32>
    %162 = vector.shape_cast %161 : vector<1x16x32xf32> to vector<16x32xf32>
    %163 = vector.extract_strided_slice %76 {offsets = [2, 0, 0], sizes = [1, 16, 32], strides = [1, 1, 1]} : vector<10x16x32xf32> to vector<1x16x32xf32>
    %164 = vector.shape_cast %163 : vector<1x16x32xf32> to vector<16x32xf32>
    %165 = vector.extract_strided_slice %74 {offsets = [3, 0, 0], sizes = [1, 16, 32], strides = [1, 1, 1]} : vector<10x16x32xf32> to vector<1x16x32xf32>
    %166 = vector.shape_cast %165 : vector<1x16x32xf32> to vector<16x32xf32>
    %167 = vector.extract_strided_slice %75 {offsets = [3, 0, 0], sizes = [1, 16, 32], strides = [1, 1, 1]} : vector<10x16x32xf32> to vector<1x16x32xf32>
    %168 = vector.shape_cast %167 : vector<1x16x32xf32> to vector<16x32xf32>
    %169 = vector.extract_strided_slice %76 {offsets = [3, 0, 0], sizes = [1, 16, 32], strides = [1, 1, 1]} : vector<10x16x32xf32> to vector<1x16x32xf32>
    %170 = vector.shape_cast %169 : vector<1x16x32xf32> to vector<16x32xf32>
    %171 = vector.broadcast %3 : vector<1x32xf32> to vector<16x32xf32>
    %172 = arith.mulf %154, %171 : vector<16x32xf32>
    %173 = vector.broadcast %6 : vector<1x32xf32> to vector<16x32xf32>
    %174 = arith.mulf %156, %173 : vector<16x32xf32>
    %175 = arith.addf %172, %174 : vector<16x32xf32>
    %176 = vector.broadcast %9 : vector<1x32xf32> to vector<16x32xf32>
    %177 = arith.mulf %158, %176 : vector<16x32xf32>
    %178 = arith.addf %175, %177 : vector<16x32xf32>
    %179 = vector.broadcast %12 : vector<1x32xf32> to vector<16x32xf32>
    %180 = arith.mulf %160, %179 : vector<16x32xf32>
    %181 = arith.addf %178, %180 : vector<16x32xf32>
    %182 = vector.broadcast %15 : vector<1x32xf32> to vector<16x32xf32>
    %183 = arith.mulf %162, %182 : vector<16x32xf32>
    %184 = arith.addf %181, %183 : vector<16x32xf32>
    %185 = vector.broadcast %18 : vector<1x32xf32> to vector<16x32xf32>
    %186 = arith.mulf %164, %185 : vector<16x32xf32>
    %187 = arith.addf %184, %186 : vector<16x32xf32>
    %188 = vector.broadcast %21 : vector<1x32xf32> to vector<16x32xf32>
    %189 = arith.mulf %166, %188 : vector<16x32xf32>
    %190 = arith.addf %187, %189 : vector<16x32xf32>
    %191 = vector.broadcast %24 : vector<1x32xf32> to vector<16x32xf32>
    %192 = arith.mulf %168, %191 : vector<16x32xf32>
    %193 = arith.addf %190, %192 : vector<16x32xf32>
    %194 = vector.broadcast %27 : vector<1x32xf32> to vector<16x32xf32>
    %195 = arith.mulf %170, %194 : vector<16x32xf32>
    %196 = arith.addf %193, %195 : vector<16x32xf32>
    %c0_21 = arith.constant 0 : index
    %c1_22 = arith.constant 1 : index
    %c0_23 = arith.constant 0 : index
    %c0_24 = arith.constant 0 : index
    %197 = vector.load %arg7[%c0_21, %c1_22, %c0_23, %c0_24] : memref<2x8x16x32xf32, #tpu.memory_space<vmem>>, vector<1x1x16x32xf32>
    %198 = vector.shape_cast %197 : vector<1x1x16x32xf32> to vector<16x32xf32>
    %199 = vector.shape_cast %196 : vector<16x32xf32> to vector<1x1x16x32xf32>
    tpu.vector_store %arg7[%c0_21, %c1_22, %c0_23, %c0_24], %199 {strides = array<i32>} : memref<2x8x16x32xf32, #tpu.memory_space<vmem>>, vector<1x1x16x32xf32>,
    %200 = vector.broadcast %30 : vector<1x32xf32> to vector<16x32xf32>
    %201 = arith.mulf %154, %200 : vector<16x32xf32>
    %202 = vector.broadcast %33 : vector<1x32xf32> to vector<16x32xf32>
    %203 = arith.mulf %156, %202 : vector<16x32xf32>
    %204 = arith.addf %201, %203 : vector<16x32xf32>
    %205 = vector.broadcast %36 : vector<1x32xf32> to vector<16x32xf32>
    %206 = arith.mulf %158, %205 : vector<16x32xf32>
    %207 = arith.addf %204, %206 : vector<16x32xf32>
    %208 = vector.broadcast %39 : vector<1x32xf32> to vector<16x32xf32>
    %209 = arith.mulf %160, %208 : vector<16x32xf32>
    %210 = arith.addf %207, %209 : vector<16x32xf32>
    %211 = vector.broadcast %42 : vector<1x32xf32> to vector<16x32xf32>
    %212 = arith.mulf %162, %211 : vector<16x32xf32>
    %213 = arith.addf %210, %212 : vector<16x32xf32>
    %214 = vector.broadcast %45 : vector<1x32xf32> to vector<16x32xf32>
    %215 = arith.mulf %164, %214 : vector<16x32xf32>
    %216 = arith.addf %213, %215 : vector<16x32xf32>
    %217 = vector.broadcast %48 : vector<1x32xf32> to vector<16x32xf32>
    %218 = arith.mulf %166, %217 : vector<16x32xf32>
    %219 = arith.addf %216, %218 : vector<16x32xf32>
    %220 = vector.broadcast %51 : vector<1x32xf32> to vector<16x32xf32>
    %221 = arith.mulf %168, %220 : vector<16x32xf32>
    %222 = arith.addf %219, %221 : vector<16x32xf32>
    %223 = vector.broadcast %54 : vector<1x32xf32> to vector<16x32xf32>
    %224 = arith.mulf %170, %223 : vector<16x32xf32>
    %225 = arith.addf %222, %224 : vector<16x32xf32>
    %c1_25 = arith.constant 1 : index
    %c1_26 = arith.constant 1 : index
    %c0_27 = arith.constant 0 : index
    %c0_28 = arith.constant 0 : index
    %226 = vector.load %arg7[%c1_25, %c1_26, %c0_27, %c0_28] : memref<2x8x16x32xf32, #tpu.memory_space<vmem>>, vector<1x1x16x32xf32>
    %227 = vector.shape_cast %226 : vector<1x1x16x32xf32> to vector<16x32xf32>
    %228 = vector.shape_cast %225 : vector<16x32xf32> to vector<1x1x16x32xf32>
    tpu.vector_store %arg7[%c1_25, %c1_26, %c0_27, %c0_28], %228 {strides = array<i32>} : memref<2x8x16x32xf32, #tpu.memory_space<vmem>>, vector<1x1x16x32xf32>,
    %229 = vector.extract_strided_slice %74 {offsets = [2, 0, 0], sizes = [1, 16, 32], strides = [1, 1, 1]} : vector<10x16x32xf32> to vector<1x16x32xf32>
    %230 = vector.shape_cast %229 : vector<1x16x32xf32> to vector<16x32xf32>
    %231 = vector.extract_strided_slice %75 {offsets = [2, 0, 0], sizes = [1, 16, 32], strides = [1, 1, 1]} : vector<10x16x32xf32> to vector<1x16x32xf32>
    %232 = vector.shape_cast %231 : vector<1x16x32xf32> to vector<16x32xf32>
    %233 = vector.extract_strided_slice %76 {offsets = [2, 0, 0], sizes = [1, 16, 32], strides = [1, 1, 1]} : vector<10x16x32xf32> to vector<1x16x32xf32>
    %234 = vector.shape_cast %233 : vector<1x16x32xf32> to vector<16x32xf32>
    %235 = vector.extract_strided_slice %74 {offsets = [3, 0, 0], sizes = [1, 16, 32], strides = [1, 1, 1]} : vector<10x16x32xf32> to vector<1x16x32xf32>
    %236 = vector.shape_cast %235 : vector<1x16x32xf32> to vector<16x32xf32>
    %237 = vector.extract_strided_slice %75 {offsets = [3, 0, 0], sizes = [1, 16, 32], strides = [1, 1, 1]} : vector<10x16x32xf32> to vector<1x16x32xf32>
    %238 = vector.shape_cast %237 : vector<1x16x32xf32> to vector<16x32xf32>
    %239 = vector.extract_strided_slice %76 {offsets = [3, 0, 0], sizes = [1, 16, 32], strides = [1, 1, 1]} : vector<10x16x32xf32> to vector<1x16x32xf32>
    %240 = vector.shape_cast %239 : vector<1x16x32xf32> to vector<16x32xf32>
    %241 = vector.extract_strided_slice %74 {offsets = [4, 0, 0], sizes = [1, 16, 32], strides = [1, 1, 1]} : vector<10x16x32xf32> to vector<1x16x32xf32>
    %242 = vector.shape_cast %241 : vector<1x16x32xf32> to vector<16x32xf32>
    %243 = vector.extract_strided_slice %75 {offsets = [4, 0, 0], sizes = [1, 16, 32], strides = [1, 1, 1]} : vector<10x16x32xf32> to vector<1x16x32xf32>
    %244 = vector.shape_cast %243 : vector<1x16x32xf32> to vector<16x32xf32>
    %245 = vector.extract_strided_slice %76 {offsets = [4, 0, 0], sizes = [1, 16, 32], strides = [1, 1, 1]} : vector<10x16x32xf32> to vector<1x16x32xf32>
    %246 = vector.shape_cast %245 : vector<1x16x32xf32> to vector<16x32xf32>
    %247 = vector.broadcast %3 : vector<1x32xf32> to vector<16x32xf32>
    %248 = arith.mulf %230, %247 : vector<16x32xf32>
    %249 = vector.broadcast %6 : vector<1x32xf32> to vector<16x32xf32>
    %250 = arith.mulf %232, %249 : vector<16x32xf32>
    %251 = arith.addf %248, %250 : vector<16x32xf32>
    %252 = vector.broadcast %9 : vector<1x32xf32> to vector<16x32xf32>
    %253 = arith.mulf %234, %252 : vector<16x32xf32>
    %254 = arith.addf %251, %253 : vector<16x32xf32>
    %255 = vector.broadcast %12 : vector<1x32xf32> to vector<16x32xf32>
    %256 = arith.mulf %236, %255 : vector<16x32xf32>
    %257 = arith.addf %254, %256 : vector<16x32xf32>
    %258 = vector.broadcast %15 : vector<1x32xf32> to vector<16x32xf32>
    %259 = arith.mulf %238, %258 : vector<16x32xf32>
    %260 = arith.addf %257, %259 : vector<16x32xf32>
    %261 = vector.broadcast %18 : vector<1x32xf32> to vector<16x32xf32>
    %262 = arith.mulf %240, %261 : vector<16x32xf32>
    %263 = arith.addf %260, %262 : vector<16x32xf32>
    %264 = vector.broadcast %21 : vector<1x32xf32> to vector<16x32xf32>
    %265 = arith.mulf %242, %264 : vector<16x32xf32>
    %266 = arith.addf %263, %265 : vector<16x32xf32>
    %267 = vector.broadcast %24 : vector<1x32xf32> to vector<16x32xf32>
    %268 = arith.mulf %244, %267 : vector<16x32xf32>
    %269 = arith.addf %266, %268 : vector<16x32xf32>
    %270 = vector.broadcast %27 : vector<1x32xf32> to vector<16x32xf32>
    %271 = arith.mulf %246, %270 : vector<16x32xf32>
    %272 = arith.addf %269, %271 : vector<16x32xf32>
    %c0_29 = arith.constant 0 : index
    %c2 = arith.constant 2 : index
    %c0_30 = arith.constant 0 : index
    %c0_31 = arith.constant 0 : index
    %273 = vector.load %arg7[%c0_29, %c2, %c0_30, %c0_31] : memref<2x8x16x32xf32, #tpu.memory_space<vmem>>, vector<1x1x16x32xf32>
    %274 = vector.shape_cast %273 : vector<1x1x16x32xf32> to vector<16x32xf32>
    %275 = vector.shape_cast %272 : vector<16x32xf32> to vector<1x1x16x32xf32>
    tpu.vector_store %arg7[%c0_29, %c2, %c0_30, %c0_31], %275 {strides = array<i32>} : memref<2x8x16x32xf32, #tpu.memory_space<vmem>>, vector<1x1x16x32xf32>,
    %276 = vector.broadcast %30 : vector<1x32xf32> to vector<16x32xf32>
    %277 = arith.mulf %230, %276 : vector<16x32xf32>
    %278 = vector.broadcast %33 : vector<1x32xf32> to vector<16x32xf32>
    %279 = arith.mulf %232, %278 : vector<16x32xf32>
    %280 = arith.addf %277, %279 : vector<16x32xf32>
    %281 = vector.broadcast %36 : vector<1x32xf32> to vector<16x32xf32>
    %282 = arith.mulf %234, %281 : vector<16x32xf32>
    %283 = arith.addf %280, %282 : vector<16x32xf32>
    %284 = vector.broadcast %39 : vector<1x32xf32> to vector<16x32xf32>
    %285 = arith.mulf %236, %284 : vector<16x32xf32>
    %286 = arith.addf %283, %285 : vector<16x32xf32>
    %287 = vector.broadcast %42 : vector<1x32xf32> to vector<16x32xf32>
    %288 = arith.mulf %238, %287 : vector<16x32xf32>
    %289 = arith.addf %286, %288 : vector<16x32xf32>
    %290 = vector.broadcast %45 : vector<1x32xf32> to vector<16x32xf32>
    %291 = arith.mulf %240, %290 : vector<16x32xf32>
    %292 = arith.addf %289, %291 : vector<16x32xf32>
    %293 = vector.broadcast %48 : vector<1x32xf32> to vector<16x32xf32>
    %294 = arith.mulf %242, %293 : vector<16x32xf32>
    %295 = arith.addf %292, %294 : vector<16x32xf32>
    %296 = vector.broadcast %51 : vector<1x32xf32> to vector<16x32xf32>
    %297 = arith.mulf %244, %296 : vector<16x32xf32>
    %298 = arith.addf %295, %297 : vector<16x32xf32>
    %299 = vector.broadcast %54 : vector<1x32xf32> to vector<16x32xf32>
    %300 = arith.mulf %246, %299 : vector<16x32xf32>
    %301 = arith.addf %298, %300 : vector<16x32xf32>
    %c1_32 = arith.constant 1 : index
    %c2_33 = arith.constant 2 : index
    %c0_34 = arith.constant 0 : index
    %c0_35 = arith.constant 0 : index
    %302 = vector.load %arg7[%c1_32, %c2_33, %c0_34, %c0_35] : memref<2x8x16x32xf32, #tpu.memory_space<vmem>>, vector<1x1x16x32xf32>
    %303 = vector.shape_cast %302 : vector<1x1x16x32xf32> to vector<16x32xf32>
    %304 = vector.shape_cast %301 : vector<16x32xf32> to vector<1x1x16x32xf32>
    tpu.vector_store %arg7[%c1_32, %c2_33, %c0_34, %c0_35], %304 {strides = array<i32>} : memref<2x8x16x32xf32, #tpu.memory_space<vmem>>, vector<1x1x16x32xf32>,
    %305 = vector.extract_strided_slice %74 {offsets = [3, 0, 0], sizes = [1, 16, 32], strides = [1, 1, 1]} : vector<10x16x32xf32> to vector<1x16x32xf32>
    %306 = vector.shape_cast %305 : vector<1x16x32xf32> to vector<16x32xf32>
    %307 = vector.extract_strided_slice %75 {offsets = [3, 0, 0], sizes = [1, 16, 32], strides = [1, 1, 1]} : vector<10x16x32xf32> to vector<1x16x32xf32>
    %308 = vector.shape_cast %307 : vector<1x16x32xf32> to vector<16x32xf32>
    %309 = vector.extract_strided_slice %76 {offsets = [3, 0, 0], sizes = [1, 16, 32], strides = [1, 1, 1]} : vector<10x16x32xf32> to vector<1x16x32xf32>
    %310 = vector.shape_cast %309 : vector<1x16x32xf32> to vector<16x32xf32>
    %311 = vector.extract_strided_slice %74 {offsets = [4, 0, 0], sizes = [1, 16, 32], strides = [1, 1, 1]} : vector<10x16x32xf32> to vector<1x16x32xf32>
    %312 = vector.shape_cast %311 : vector<1x16x32xf32> to vector<16x32xf32>
    %313 = vector.extract_strided_slice %75 {offsets = [4, 0, 0], sizes = [1, 16, 32], strides = [1, 1, 1]} : vector<10x16x32xf32> to vector<1x16x32xf32>
    %314 = vector.shape_cast %313 : vector<1x16x32xf32> to vector<16x32xf32>
    %315 = vector.extract_strided_slice %76 {offsets = [4, 0, 0], sizes = [1, 16, 32], strides = [1, 1, 1]} : vector<10x16x32xf32> to vector<1x16x32xf32>
    %316 = vector.shape_cast %315 : vector<1x16x32xf32> to vector<16x32xf32>
    %317 = vector.extract_strided_slice %74 {offsets = [5, 0, 0], sizes = [1, 16, 32], strides = [1, 1, 1]} : vector<10x16x32xf32> to vector<1x16x32xf32>
    %318 = vector.shape_cast %317 : vector<1x16x32xf32> to vector<16x32xf32>
    %319 = vector.extract_strided_slice %75 {offsets = [5, 0, 0], sizes = [1, 16, 32], strides = [1, 1, 1]} : vector<10x16x32xf32> to vector<1x16x32xf32>
    %320 = vector.shape_cast %319 : vector<1x16x32xf32> to vector<16x32xf32>
    %321 = vector.extract_strided_slice %76 {offsets = [5, 0, 0], sizes = [1, 16, 32], strides = [1, 1, 1]} : vector<10x16x32xf32> to vector<1x16x32xf32>
    %322 = vector.shape_cast %321 : vector<1x16x32xf32> to vector<16x32xf32>
    %323 = vector.broadcast %3 : vector<1x32xf32> to vector<16x32xf32>
    %324 = arith.mulf %306, %323 : vector<16x32xf32>
    %325 = vector.broadcast %6 : vector<1x32xf32> to vector<16x32xf32>
    %326 = arith.mulf %308, %325 : vector<16x32xf32>
    %327 = arith.addf %324, %326 : vector<16x32xf32>
    %328 = vector.broadcast %9 : vector<1x32xf32> to vector<16x32xf32>
    %329 = arith.mulf %310, %328 : vector<16x32xf32>
    %330 = arith.addf %327, %329 : vector<16x32xf32>
    %331 = vector.broadcast %12 : vector<1x32xf32> to vector<16x32xf32>
    %332 = arith.mulf %312, %331 : vector<16x32xf32>
    %333 = arith.addf %330, %332 : vector<16x32xf32>
    %334 = vector.broadcast %15 : vector<1x32xf32> to vector<16x32xf32>
    %335 = arith.mulf %314, %334 : vector<16x32xf32>
    %336 = arith.addf %333, %335 : vector<16x32xf32>
    %337 = vector.broadcast %18 : vector<1x32xf32> to vector<16x32xf32>
    %338 = arith.mulf %316, %337 : vector<16x32xf32>
    %339 = arith.addf %336, %338 : vector<16x32xf32>
    %340 = vector.broadcast %21 : vector<1x32xf32> to vector<16x32xf32>
    %341 = arith.mulf %318, %340 : vector<16x32xf32>
    %342 = arith.addf %339, %341 : vector<16x32xf32>
    %343 = vector.broadcast %24 : vector<1x32xf32> to vector<16x32xf32>
    %344 = arith.mulf %320, %343 : vector<16x32xf32>
    %345 = arith.addf %342, %344 : vector<16x32xf32>
    %346 = vector.broadcast %27 : vector<1x32xf32> to vector<16x32xf32>
    %347 = arith.mulf %322, %346 : vector<16x32xf32>
    %348 = arith.addf %345, %347 : vector<16x32xf32>
    %c0_36 = arith.constant 0 : index
    %c3 = arith.constant 3 : index
    %c0_37 = arith.constant 0 : index
    %c0_38 = arith.constant 0 : index
    %349 = vector.load %arg7[%c0_36, %c3, %c0_37, %c0_38] : memref<2x8x16x32xf32, #tpu.memory_space<vmem>>, vector<1x1x16x32xf32>
    %350 = vector.shape_cast %349 : vector<1x1x16x32xf32> to vector<16x32xf32>
    %351 = vector.shape_cast %348 : vector<16x32xf32> to vector<1x1x16x32xf32>
    tpu.vector_store %arg7[%c0_36, %c3, %c0_37, %c0_38], %351 {strides = array<i32>} : memref<2x8x16x32xf32, #tpu.memory_space<vmem>>, vector<1x1x16x32xf32>,
    %352 = vector.broadcast %30 : vector<1x32xf32> to vector<16x32xf32>
    %353 = arith.mulf %306, %352 : vector<16x32xf32>
    %354 = vector.broadcast %33 : vector<1x32xf32> to vector<16x32xf32>
    %355 = arith.mulf %308, %354 : vector<16x32xf32>
    %356 = arith.addf %353, %355 : vector<16x32xf32>
    %357 = vector.broadcast %36 : vector<1x32xf32> to vector<16x32xf32>
    %358 = arith.mulf %310, %357 : vector<16x32xf32>
    %359 = arith.addf %356, %358 : vector<16x32xf32>
    %360 = vector.broadcast %39 : vector<1x32xf32> to vector<16x32xf32>
    %361 = arith.mulf %312, %360 : vector<16x32xf32>
    %362 = arith.addf %359, %361 : vector<16x32xf32>
    %363 = vector.broadcast %42 : vector<1x32xf32> to vector<16x32xf32>
    %364 = arith.mulf %314, %363 : vector<16x32xf32>
    %365 = arith.addf %362, %364 : vector<16x32xf32>
    %366 = vector.broadcast %45 : vector<1x32xf32> to vector<16x32xf32>
    %367 = arith.mulf %316, %366 : vector<16x32xf32>
    %368 = arith.addf %365, %367 : vector<16x32xf32>
    %369 = vector.broadcast %48 : vector<1x32xf32> to vector<16x32xf32>
    %370 = arith.mulf %318, %369 : vector<16x32xf32>
    %371 = arith.addf %368, %370 : vector<16x32xf32>
    %372 = vector.broadcast %51 : vector<1x32xf32> to vector<16x32xf32>
    %373 = arith.mulf %320, %372 : vector<16x32xf32>
    %374 = arith.addf %371, %373 : vector<16x32xf32>
    %375 = vector.broadcast %54 : vector<1x32xf32> to vector<16x32xf32>
    %376 = arith.mulf %322, %375 : vector<16x32xf32>
    %377 = arith.addf %374, %376 : vector<16x32xf32>
    %c1_39 = arith.constant 1 : index
    %c3_40 = arith.constant 3 : index
    %c0_41 = arith.constant 0 : index
    %c0_42 = arith.constant 0 : index
    %378 = vector.load %arg7[%c1_39, %c3_40, %c0_41, %c0_42] : memref<2x8x16x32xf32, #tpu.memory_space<vmem>>, vector<1x1x16x32xf32>
    %379 = vector.shape_cast %378 : vector<1x1x16x32xf32> to vector<16x32xf32>
    %380 = vector.shape_cast %377 : vector<16x32xf32> to vector<1x1x16x32xf32>
    tpu.vector_store %arg7[%c1_39, %c3_40, %c0_41, %c0_42], %380 {strides = array<i32>} : memref<2x8x16x32xf32, #tpu.memory_space<vmem>>, vector<1x1x16x32xf32>,
    %381 = vector.extract_strided_slice %74 {offsets = [4, 0, 0], sizes = [1, 16, 32], strides = [1, 1, 1]} : vector<10x16x32xf32> to vector<1x16x32xf32>
    %382 = vector.shape_cast %381 : vector<1x16x32xf32> to vector<16x32xf32>
    %383 = vector.extract_strided_slice %75 {offsets = [4, 0, 0], sizes = [1, 16, 32], strides = [1, 1, 1]} : vector<10x16x32xf32> to vector<1x16x32xf32>
    %384 = vector.shape_cast %383 : vector<1x16x32xf32> to vector<16x32xf32>
    %385 = vector.extract_strided_slice %76 {offsets = [4, 0, 0], sizes = [1, 16, 32], strides = [1, 1, 1]} : vector<10x16x32xf32> to vector<1x16x32xf32>
    %386 = vector.shape_cast %385 : vector<1x16x32xf32> to vector<16x32xf32>
    %387 = vector.extract_strided_slice %74 {offsets = [5, 0, 0], sizes = [1, 16, 32], strides = [1, 1, 1]} : vector<10x16x32xf32> to vector<1x16x32xf32>
    %388 = vector.shape_cast %387 : vector<1x16x32xf32> to vector<16x32xf32>
    %389 = vector.extract_strided_slice %75 {offsets = [5, 0, 0], sizes = [1, 16, 32], strides = [1, 1, 1]} : vector<10x16x32xf32> to vector<1x16x32xf32>
    %390 = vector.shape_cast %389 : vector<1x16x32xf32> to vector<16x32xf32>
    %391 = vector.extract_strided_slice %76 {offsets = [5, 0, 0], sizes = [1, 16, 32], strides = [1, 1, 1]} : vector<10x16x32xf32> to vector<1x16x32xf32>
    %392 = vector.shape_cast %391 : vector<1x16x32xf32> to vector<16x32xf32>
    %393 = vector.extract_strided_slice %74 {offsets = [6, 0, 0], sizes = [1, 16, 32], strides = [1, 1, 1]} : vector<10x16x32xf32> to vector<1x16x32xf32>
    %394 = vector.shape_cast %393 : vector<1x16x32xf32> to vector<16x32xf32>
    %395 = vector.extract_strided_slice %75 {offsets = [6, 0, 0], sizes = [1, 16, 32], strides = [1, 1, 1]} : vector<10x16x32xf32> to vector<1x16x32xf32>
    %396 = vector.shape_cast %395 : vector<1x16x32xf32> to vector<16x32xf32>
    %397 = vector.extract_strided_slice %76 {offsets = [6, 0, 0], sizes = [1, 16, 32], strides = [1, 1, 1]} : vector<10x16x32xf32> to vector<1x16x32xf32>
    %398 = vector.shape_cast %397 : vector<1x16x32xf32> to vector<16x32xf32>
    %399 = vector.broadcast %3 : vector<1x32xf32> to vector<16x32xf32>
    %400 = arith.mulf %382, %399 : vector<16x32xf32>
    %401 = vector.broadcast %6 : vector<1x32xf32> to vector<16x32xf32>
    %402 = arith.mulf %384, %401 : vector<16x32xf32>
    %403 = arith.addf %400, %402 : vector<16x32xf32>
    %404 = vector.broadcast %9 : vector<1x32xf32> to vector<16x32xf32>
    %405 = arith.mulf %386, %404 : vector<16x32xf32>
    %406 = arith.addf %403, %405 : vector<16x32xf32>
    %407 = vector.broadcast %12 : vector<1x32xf32> to vector<16x32xf32>
    %408 = arith.mulf %388, %407 : vector<16x32xf32>
    %409 = arith.addf %406, %408 : vector<16x32xf32>
    %410 = vector.broadcast %15 : vector<1x32xf32> to vector<16x32xf32>
    %411 = arith.mulf %390, %410 : vector<16x32xf32>
    %412 = arith.addf %409, %411 : vector<16x32xf32>
    %413 = vector.broadcast %18 : vector<1x32xf32> to vector<16x32xf32>
    %414 = arith.mulf %392, %413 : vector<16x32xf32>
    %415 = arith.addf %412, %414 : vector<16x32xf32>
    %416 = vector.broadcast %21 : vector<1x32xf32> to vector<16x32xf32>
    %417 = arith.mulf %394, %416 : vector<16x32xf32>
    %418 = arith.addf %415, %417 : vector<16x32xf32>
    %419 = vector.broadcast %24 : vector<1x32xf32> to vector<16x32xf32>
    %420 = arith.mulf %396, %419 : vector<16x32xf32>
    %421 = arith.addf %418, %420 : vector<16x32xf32>
    %422 = vector.broadcast %27 : vector<1x32xf32> to vector<16x32xf32>
    %423 = arith.mulf %398, %422 : vector<16x32xf32>
    %424 = arith.addf %421, %423 : vector<16x32xf32>
    %c0_43 = arith.constant 0 : index
    %c4 = arith.constant 4 : index
    %c0_44 = arith.constant 0 : index
    %c0_45 = arith.constant 0 : index
    %425 = vector.load %arg7[%c0_43, %c4, %c0_44, %c0_45] : memref<2x8x16x32xf32, #tpu.memory_space<vmem>>, vector<1x1x16x32xf32>
    %426 = vector.shape_cast %425 : vector<1x1x16x32xf32> to vector<16x32xf32>
    %427 = vector.shape_cast %424 : vector<16x32xf32> to vector<1x1x16x32xf32>
    tpu.vector_store %arg7[%c0_43, %c4, %c0_44, %c0_45], %427 {strides = array<i32>} : memref<2x8x16x32xf32, #tpu.memory_space<vmem>>, vector<1x1x16x32xf32>,
    %428 = vector.broadcast %30 : vector<1x32xf32> to vector<16x32xf32>
    %429 = arith.mulf %382, %428 : vector<16x32xf32>
    %430 = vector.broadcast %33 : vector<1x32xf32> to vector<16x32xf32>
    %431 = arith.mulf %384, %430 : vector<16x32xf32>
    %432 = arith.addf %429, %431 : vector<16x32xf32>
    %433 = vector.broadcast %36 : vector<1x32xf32> to vector<16x32xf32>
    %434 = arith.mulf %386, %433 : vector<16x32xf32>
    %435 = arith.addf %432, %434 : vector<16x32xf32>
    %436 = vector.broadcast %39 : vector<1x32xf32> to vector<16x32xf32>
    %437 = arith.mulf %388, %436 : vector<16x32xf32>
    %438 = arith.addf %435, %437 : vector<16x32xf32>
    %439 = vector.broadcast %42 : vector<1x32xf32> to vector<16x32xf32>
    %440 = arith.mulf %390, %439 : vector<16x32xf32>
    %441 = arith.addf %438, %440 : vector<16x32xf32>
    %442 = vector.broadcast %45 : vector<1x32xf32> to vector<16x32xf32>
    %443 = arith.mulf %392, %442 : vector<16x32xf32>
    %444 = arith.addf %441, %443 : vector<16x32xf32>
    %445 = vector.broadcast %48 : vector<1x32xf32> to vector<16x32xf32>
    %446 = arith.mulf %394, %445 : vector<16x32xf32>
    %447 = arith.addf %444, %446 : vector<16x32xf32>
    %448 = vector.broadcast %51 : vector<1x32xf32> to vector<16x32xf32>
    %449 = arith.mulf %396, %448 : vector<16x32xf32>
    %450 = arith.addf %447, %449 : vector<16x32xf32>
    %451 = vector.broadcast %54 : vector<1x32xf32> to vector<16x32xf32>
    %452 = arith.mulf %398, %451 : vector<16x32xf32>
    %453 = arith.addf %450, %452 : vector<16x32xf32>
    %c1_46 = arith.constant 1 : index
    %c4_47 = arith.constant 4 : index
    %c0_48 = arith.constant 0 : index
    %c0_49 = arith.constant 0 : index
    %454 = vector.load %arg7[%c1_46, %c4_47, %c0_48, %c0_49] : memref<2x8x16x32xf32, #tpu.memory_space<vmem>>, vector<1x1x16x32xf32>
    %455 = vector.shape_cast %454 : vector<1x1x16x32xf32> to vector<16x32xf32>
    %456 = vector.shape_cast %453 : vector<16x32xf32> to vector<1x1x16x32xf32>
    tpu.vector_store %arg7[%c1_46, %c4_47, %c0_48, %c0_49], %456 {strides = array<i32>} : memref<2x8x16x32xf32, #tpu.memory_space<vmem>>, vector<1x1x16x32xf32>,
    %457 = vector.extract_strided_slice %74 {offsets = [5, 0, 0], sizes = [1, 16, 32], strides = [1, 1, 1]} : vector<10x16x32xf32> to vector<1x16x32xf32>
    %458 = vector.shape_cast %457 : vector<1x16x32xf32> to vector<16x32xf32>
    %459 = vector.extract_strided_slice %75 {offsets = [5, 0, 0], sizes = [1, 16, 32], strides = [1, 1, 1]} : vector<10x16x32xf32> to vector<1x16x32xf32>
    %460 = vector.shape_cast %459 : vector<1x16x32xf32> to vector<16x32xf32>
    %461 = vector.extract_strided_slice %76 {offsets = [5, 0, 0], sizes = [1, 16, 32], strides = [1, 1, 1]} : vector<10x16x32xf32> to vector<1x16x32xf32>
    %462 = vector.shape_cast %461 : vector<1x16x32xf32> to vector<16x32xf32>
    %463 = vector.extract_strided_slice %74 {offsets = [6, 0, 0], sizes = [1, 16, 32], strides = [1, 1, 1]} : vector<10x16x32xf32> to vector<1x16x32xf32>
    %464 = vector.shape_cast %463 : vector<1x16x32xf32> to vector<16x32xf32>
    %465 = vector.extract_strided_slice %75 {offsets = [6, 0, 0], sizes = [1, 16, 32], strides = [1, 1, 1]} : vector<10x16x32xf32> to vector<1x16x32xf32>
    %466 = vector.shape_cast %465 : vector<1x16x32xf32> to vector<16x32xf32>
    %467 = vector.extract_strided_slice %76 {offsets = [6, 0, 0], sizes = [1, 16, 32], strides = [1, 1, 1]} : vector<10x16x32xf32> to vector<1x16x32xf32>
    %468 = vector.shape_cast %467 : vector<1x16x32xf32> to vector<16x32xf32>
    %469 = vector.extract_strided_slice %74 {offsets = [7, 0, 0], sizes = [1, 16, 32], strides = [1, 1, 1]} : vector<10x16x32xf32> to vector<1x16x32xf32>
    %470 = vector.shape_cast %469 : vector<1x16x32xf32> to vector<16x32xf32>
    %471 = vector.extract_strided_slice %75 {offsets = [7, 0, 0], sizes = [1, 16, 32], strides = [1, 1, 1]} : vector<10x16x32xf32> to vector<1x16x32xf32>
    %472 = vector.shape_cast %471 : vector<1x16x32xf32> to vector<16x32xf32>
    %473 = vector.extract_strided_slice %76 {offsets = [7, 0, 0], sizes = [1, 16, 32], strides = [1, 1, 1]} : vector<10x16x32xf32> to vector<1x16x32xf32>
    %474 = vector.shape_cast %473 : vector<1x16x32xf32> to vector<16x32xf32>
    %475 = vector.broadcast %3 : vector<1x32xf32> to vector<16x32xf32>
    %476 = arith.mulf %458, %475 : vector<16x32xf32>
    %477 = vector.broadcast %6 : vector<1x32xf32> to vector<16x32xf32>
    %478 = arith.mulf %460, %477 : vector<16x32xf32>
    %479 = arith.addf %476, %478 : vector<16x32xf32>
    %480 = vector.broadcast %9 : vector<1x32xf32> to vector<16x32xf32>
    %481 = arith.mulf %462, %480 : vector<16x32xf32>
    %482 = arith.addf %479, %481 : vector<16x32xf32>
    %483 = vector.broadcast %12 : vector<1x32xf32> to vector<16x32xf32>
    %484 = arith.mulf %464, %483 : vector<16x32xf32>
    %485 = arith.addf %482, %484 : vector<16x32xf32>
    %486 = vector.broadcast %15 : vector<1x32xf32> to vector<16x32xf32>
    %487 = arith.mulf %466, %486 : vector<16x32xf32>
    %488 = arith.addf %485, %487 : vector<16x32xf32>
    %489 = vector.broadcast %18 : vector<1x32xf32> to vector<16x32xf32>
    %490 = arith.mulf %468, %489 : vector<16x32xf32>
    %491 = arith.addf %488, %490 : vector<16x32xf32>
    %492 = vector.broadcast %21 : vector<1x32xf32> to vector<16x32xf32>
    %493 = arith.mulf %470, %492 : vector<16x32xf32>
    %494 = arith.addf %491, %493 : vector<16x32xf32>
    %495 = vector.broadcast %24 : vector<1x32xf32> to vector<16x32xf32>
    %496 = arith.mulf %472, %495 : vector<16x32xf32>
    %497 = arith.addf %494, %496 : vector<16x32xf32>
    %498 = vector.broadcast %27 : vector<1x32xf32> to vector<16x32xf32>
    %499 = arith.mulf %474, %498 : vector<16x32xf32>
    %500 = arith.addf %497, %499 : vector<16x32xf32>
    %c0_50 = arith.constant 0 : index
    %c5 = arith.constant 5 : index
    %c0_51 = arith.constant 0 : index
    %c0_52 = arith.constant 0 : index
    %501 = vector.load %arg7[%c0_50, %c5, %c0_51, %c0_52] : memref<2x8x16x32xf32, #tpu.memory_space<vmem>>, vector<1x1x16x32xf32>
    %502 = vector.shape_cast %501 : vector<1x1x16x32xf32> to vector<16x32xf32>
    %503 = vector.shape_cast %500 : vector<16x32xf32> to vector<1x1x16x32xf32>
    tpu.vector_store %arg7[%c0_50, %c5, %c0_51, %c0_52], %503 {strides = array<i32>} : memref<2x8x16x32xf32, #tpu.memory_space<vmem>>, vector<1x1x16x32xf32>,
    %504 = vector.broadcast %30 : vector<1x32xf32> to vector<16x32xf32>
    %505 = arith.mulf %458, %504 : vector<16x32xf32>
    %506 = vector.broadcast %33 : vector<1x32xf32> to vector<16x32xf32>
    %507 = arith.mulf %460, %506 : vector<16x32xf32>
    %508 = arith.addf %505, %507 : vector<16x32xf32>
    %509 = vector.broadcast %36 : vector<1x32xf32> to vector<16x32xf32>
    %510 = arith.mulf %462, %509 : vector<16x32xf32>
    %511 = arith.addf %508, %510 : vector<16x32xf32>
    %512 = vector.broadcast %39 : vector<1x32xf32> to vector<16x32xf32>
    %513 = arith.mulf %464, %512 : vector<16x32xf32>
    %514 = arith.addf %511, %513 : vector<16x32xf32>
    %515 = vector.broadcast %42 : vector<1x32xf32> to vector<16x32xf32>
    %516 = arith.mulf %466, %515 : vector<16x32xf32>
    %517 = arith.addf %514, %516 : vector<16x32xf32>
    %518 = vector.broadcast %45 : vector<1x32xf32> to vector<16x32xf32>
    %519 = arith.mulf %468, %518 : vector<16x32xf32>
    %520 = arith.addf %517, %519 : vector<16x32xf32>
    %521 = vector.broadcast %48 : vector<1x32xf32> to vector<16x32xf32>
    %522 = arith.mulf %470, %521 : vector<16x32xf32>
    %523 = arith.addf %520, %522 : vector<16x32xf32>
    %524 = vector.broadcast %51 : vector<1x32xf32> to vector<16x32xf32>
    %525 = arith.mulf %472, %524 : vector<16x32xf32>
    %526 = arith.addf %523, %525 : vector<16x32xf32>
    %527 = vector.broadcast %54 : vector<1x32xf32> to vector<16x32xf32>
    %528 = arith.mulf %474, %527 : vector<16x32xf32>
    %529 = arith.addf %526, %528 : vector<16x32xf32>
    %c1_53 = arith.constant 1 : index
    %c5_54 = arith.constant 5 : index
    %c0_55 = arith.constant 0 : index
    %c0_56 = arith.constant 0 : index
    %530 = vector.load %arg7[%c1_53, %c5_54, %c0_55, %c0_56] : memref<2x8x16x32xf32, #tpu.memory_space<vmem>>, vector<1x1x16x32xf32>
    %531 = vector.shape_cast %530 : vector<1x1x16x32xf32> to vector<16x32xf32>
    %532 = vector.shape_cast %529 : vector<16x32xf32> to vector<1x1x16x32xf32>
    tpu.vector_store %arg7[%c1_53, %c5_54, %c0_55, %c0_56], %532 {strides = array<i32>} : memref<2x8x16x32xf32, #tpu.memory_space<vmem>>, vector<1x1x16x32xf32>,
    %533 = vector.extract_strided_slice %74 {offsets = [6, 0, 0], sizes = [1, 16, 32], strides = [1, 1, 1]} : vector<10x16x32xf32> to vector<1x16x32xf32>
    %534 = vector.shape_cast %533 : vector<1x16x32xf32> to vector<16x32xf32>
    %535 = vector.extract_strided_slice %75 {offsets = [6, 0, 0], sizes = [1, 16, 32], strides = [1, 1, 1]} : vector<10x16x32xf32> to vector<1x16x32xf32>
    %536 = vector.shape_cast %535 : vector<1x16x32xf32> to vector<16x32xf32>
    %537 = vector.extract_strided_slice %76 {offsets = [6, 0, 0], sizes = [1, 16, 32], strides = [1, 1, 1]} : vector<10x16x32xf32> to vector<1x16x32xf32>
    %538 = vector.shape_cast %537 : vector<1x16x32xf32> to vector<16x32xf32>
    %539 = vector.extract_strided_slice %74 {offsets = [7, 0, 0], sizes = [1, 16, 32], strides = [1, 1, 1]} : vector<10x16x32xf32> to vector<1x16x32xf32>
    %540 = vector.shape_cast %539 : vector<1x16x32xf32> to vector<16x32xf32>
    %541 = vector.extract_strided_slice %75 {offsets = [7, 0, 0], sizes = [1, 16, 32], strides = [1, 1, 1]} : vector<10x16x32xf32> to vector<1x16x32xf32>
    %542 = vector.shape_cast %541 : vector<1x16x32xf32> to vector<16x32xf32>
    %543 = vector.extract_strided_slice %76 {offsets = [7, 0, 0], sizes = [1, 16, 32], strides = [1, 1, 1]} : vector<10x16x32xf32> to vector<1x16x32xf32>
    %544 = vector.shape_cast %543 : vector<1x16x32xf32> to vector<16x32xf32>
    %545 = vector.extract_strided_slice %74 {offsets = [8, 0, 0], sizes = [1, 16, 32], strides = [1, 1, 1]} : vector<10x16x32xf32> to vector<1x16x32xf32>
    %546 = vector.shape_cast %545 : vector<1x16x32xf32> to vector<16x32xf32>
    %547 = vector.extract_strided_slice %75 {offsets = [8, 0, 0], sizes = [1, 16, 32], strides = [1, 1, 1]} : vector<10x16x32xf32> to vector<1x16x32xf32>
    %548 = vector.shape_cast %547 : vector<1x16x32xf32> to vector<16x32xf32>
    %549 = vector.extract_strided_slice %76 {offsets = [8, 0, 0], sizes = [1, 16, 32], strides = [1, 1, 1]} : vector<10x16x32xf32> to vector<1x16x32xf32>
    %550 = vector.shape_cast %549 : vector<1x16x32xf32> to vector<16x32xf32>
    %551 = vector.broadcast %3 : vector<1x32xf32> to vector<16x32xf32>
    %552 = arith.mulf %534, %551 : vector<16x32xf32>
    %553 = vector.broadcast %6 : vector<1x32xf32> to vector<16x32xf32>
    %554 = arith.mulf %536, %553 : vector<16x32xf32>
    %555 = arith.addf %552, %554 : vector<16x32xf32>
    %556 = vector.broadcast %9 : vector<1x32xf32> to vector<16x32xf32>
    %557 = arith.mulf %538, %556 : vector<16x32xf32>
    %558 = arith.addf %555, %557 : vector<16x32xf32>
    %559 = vector.broadcast %12 : vector<1x32xf32> to vector<16x32xf32>
    %560 = arith.mulf %540, %559 : vector<16x32xf32>
    %561 = arith.addf %558, %560 : vector<16x32xf32>
    %562 = vector.broadcast %15 : vector<1x32xf32> to vector<16x32xf32>
    %563 = arith.mulf %542, %562 : vector<16x32xf32>
    %564 = arith.addf %561, %563 : vector<16x32xf32>
    %565 = vector.broadcast %18 : vector<1x32xf32> to vector<16x32xf32>
    %566 = arith.mulf %544, %565 : vector<16x32xf32>
    %567 = arith.addf %564, %566 : vector<16x32xf32>
    %568 = vector.broadcast %21 : vector<1x32xf32> to vector<16x32xf32>
    %569 = arith.mulf %546, %568 : vector<16x32xf32>
    %570 = arith.addf %567, %569 : vector<16x32xf32>
    %571 = vector.broadcast %24 : vector<1x32xf32> to vector<16x32xf32>
    %572 = arith.mulf %548, %571 : vector<16x32xf32>
    %573 = arith.addf %570, %572 : vector<16x32xf32>
    %574 = vector.broadcast %27 : vector<1x32xf32> to vector<16x32xf32>
    %575 = arith.mulf %550, %574 : vector<16x32xf32>
    %576 = arith.addf %573, %575 : vector<16x32xf32>
    %c0_57 = arith.constant 0 : index
    %c6 = arith.constant 6 : index
    %c0_58 = arith.constant 0 : index
    %c0_59 = arith.constant 0 : index
    %577 = vector.load %arg7[%c0_57, %c6, %c0_58, %c0_59] : memref<2x8x16x32xf32, #tpu.memory_space<vmem>>, vector<1x1x16x32xf32>
    %578 = vector.shape_cast %577 : vector<1x1x16x32xf32> to vector<16x32xf32>
    %579 = vector.shape_cast %576 : vector<16x32xf32> to vector<1x1x16x32xf32>
    tpu.vector_store %arg7[%c0_57, %c6, %c0_58, %c0_59], %579 {strides = array<i32>} : memref<2x8x16x32xf32, #tpu.memory_space<vmem>>, vector<1x1x16x32xf32>,
    %580 = vector.broadcast %30 : vector<1x32xf32> to vector<16x32xf32>
    %581 = arith.mulf %534, %580 : vector<16x32xf32>
    %582 = vector.broadcast %33 : vector<1x32xf32> to vector<16x32xf32>
    %583 = arith.mulf %536, %582 : vector<16x32xf32>
    %584 = arith.addf %581, %583 : vector<16x32xf32>
    %585 = vector.broadcast %36 : vector<1x32xf32> to vector<16x32xf32>
    %586 = arith.mulf %538, %585 : vector<16x32xf32>
    %587 = arith.addf %584, %586 : vector<16x32xf32>
    %588 = vector.broadcast %39 : vector<1x32xf32> to vector<16x32xf32>
    %589 = arith.mulf %540, %588 : vector<16x32xf32>
    %590 = arith.addf %587, %589 : vector<16x32xf32>
    %591 = vector.broadcast %42 : vector<1x32xf32> to vector<16x32xf32>
    %592 = arith.mulf %542, %591 : vector<16x32xf32>
    %593 = arith.addf %590, %592 : vector<16x32xf32>
    %594 = vector.broadcast %45 : vector<1x32xf32> to vector<16x32xf32>
    %595 = arith.mulf %544, %594 : vector<16x32xf32>
    %596 = arith.addf %593, %595 : vector<16x32xf32>
    %597 = vector.broadcast %48 : vector<1x32xf32> to vector<16x32xf32>
    %598 = arith.mulf %546, %597 : vector<16x32xf32>
    %599 = arith.addf %596, %598 : vector<16x32xf32>
    %600 = vector.broadcast %51 : vector<1x32xf32> to vector<16x32xf32>
    %601 = arith.mulf %548, %600 : vector<16x32xf32>
    %602 = arith.addf %599, %601 : vector<16x32xf32>
    %603 = vector.broadcast %54 : vector<1x32xf32> to vector<16x32xf32>
    %604 = arith.mulf %550, %603 : vector<16x32xf32>
    %605 = arith.addf %602, %604 : vector<16x32xf32>
    %c1_60 = arith.constant 1 : index
    %c6_61 = arith.constant 6 : index
    %c0_62 = arith.constant 0 : index
    %c0_63 = arith.constant 0 : index
    %606 = vector.load %arg7[%c1_60, %c6_61, %c0_62, %c0_63] : memref<2x8x16x32xf32, #tpu.memory_space<vmem>>, vector<1x1x16x32xf32>
    %607 = vector.shape_cast %606 : vector<1x1x16x32xf32> to vector<16x32xf32>
    %608 = vector.shape_cast %605 : vector<16x32xf32> to vector<1x1x16x32xf32>
    tpu.vector_store %arg7[%c1_60, %c6_61, %c0_62, %c0_63], %608 {strides = array<i32>} : memref<2x8x16x32xf32, #tpu.memory_space<vmem>>, vector<1x1x16x32xf32>,
    %609 = vector.extract_strided_slice %74 {offsets = [7, 0, 0], sizes = [1, 16, 32], strides = [1, 1, 1]} : vector<10x16x32xf32> to vector<1x16x32xf32>
    %610 = vector.shape_cast %609 : vector<1x16x32xf32> to vector<16x32xf32>
    %611 = vector.extract_strided_slice %75 {offsets = [7, 0, 0], sizes = [1, 16, 32], strides = [1, 1, 1]} : vector<10x16x32xf32> to vector<1x16x32xf32>
    %612 = vector.shape_cast %611 : vector<1x16x32xf32> to vector<16x32xf32>
    %613 = vector.extract_strided_slice %76 {offsets = [7, 0, 0], sizes = [1, 16, 32], strides = [1, 1, 1]} : vector<10x16x32xf32> to vector<1x16x32xf32>
    %614 = vector.shape_cast %613 : vector<1x16x32xf32> to vector<16x32xf32>
    %615 = vector.extract_strided_slice %74 {offsets = [8, 0, 0], sizes = [1, 16, 32], strides = [1, 1, 1]} : vector<10x16x32xf32> to vector<1x16x32xf32>
    %616 = vector.shape_cast %615 : vector<1x16x32xf32> to vector<16x32xf32>
    %617 = vector.extract_strided_slice %75 {offsets = [8, 0, 0], sizes = [1, 16, 32], strides = [1, 1, 1]} : vector<10x16x32xf32> to vector<1x16x32xf32>
    %618 = vector.shape_cast %617 : vector<1x16x32xf32> to vector<16x32xf32>
    %619 = vector.extract_strided_slice %76 {offsets = [8, 0, 0], sizes = [1, 16, 32], strides = [1, 1, 1]} : vector<10x16x32xf32> to vector<1x16x32xf32>
    %620 = vector.shape_cast %619 : vector<1x16x32xf32> to vector<16x32xf32>
    %621 = vector.extract_strided_slice %74 {offsets = [9, 0, 0], sizes = [1, 16, 32], strides = [1, 1, 1]} : vector<10x16x32xf32> to vector<1x16x32xf32>
    %622 = vector.shape_cast %621 : vector<1x16x32xf32> to vector<16x32xf32>
    %623 = vector.extract_strided_slice %75 {offsets = [9, 0, 0], sizes = [1, 16, 32], strides = [1, 1, 1]} : vector<10x16x32xf32> to vector<1x16x32xf32>
    %624 = vector.shape_cast %623 : vector<1x16x32xf32> to vector<16x32xf32>
    %625 = vector.extract_strided_slice %76 {offsets = [9, 0, 0], sizes = [1, 16, 32], strides = [1, 1, 1]} : vector<10x16x32xf32> to vector<1x16x32xf32>
    %626 = vector.shape_cast %625 : vector<1x16x32xf32> to vector<16x32xf32>
    %627 = vector.broadcast %3 : vector<1x32xf32> to vector<16x32xf32>
    %628 = arith.mulf %610, %627 : vector<16x32xf32>
    %629 = vector.broadcast %6 : vector<1x32xf32> to vector<16x32xf32>
    %630 = arith.mulf %612, %629 : vector<16x32xf32>
    %631 = arith.addf %628, %630 : vector<16x32xf32>
    %632 = vector.broadcast %9 : vector<1x32xf32> to vector<16x32xf32>
    %633 = arith.mulf %614, %632 : vector<16x32xf32>
    %634 = arith.addf %631, %633 : vector<16x32xf32>
    %635 = vector.broadcast %12 : vector<1x32xf32> to vector<16x32xf32>
    %636 = arith.mulf %616, %635 : vector<16x32xf32>
    %637 = arith.addf %634, %636 : vector<16x32xf32>
    %638 = vector.broadcast %15 : vector<1x32xf32> to vector<16x32xf32>
    %639 = arith.mulf %618, %638 : vector<16x32xf32>
    %640 = arith.addf %637, %639 : vector<16x32xf32>
    %641 = vector.broadcast %18 : vector<1x32xf32> to vector<16x32xf32>
    %642 = arith.mulf %620, %641 : vector<16x32xf32>
    %643 = arith.addf %640, %642 : vector<16x32xf32>
    %644 = vector.broadcast %21 : vector<1x32xf32> to vector<16x32xf32>
    %645 = arith.mulf %622, %644 : vector<16x32xf32>
    %646 = arith.addf %643, %645 : vector<16x32xf32>
    %647 = vector.broadcast %24 : vector<1x32xf32> to vector<16x32xf32>
    %648 = arith.mulf %624, %647 : vector<16x32xf32>
    %649 = arith.addf %646, %648 : vector<16x32xf32>
    %650 = vector.broadcast %27 : vector<1x32xf32> to vector<16x32xf32>
    %651 = arith.mulf %626, %650 : vector<16x32xf32>
    %652 = arith.addf %649, %651 : vector<16x32xf32>
    %c0_64 = arith.constant 0 : index
    %c7 = arith.constant 7 : index
    %c0_65 = arith.constant 0 : index
    %c0_66 = arith.constant 0 : index
    %653 = vector.load %arg7[%c0_64, %c7, %c0_65, %c0_66] : memref<2x8x16x32xf32, #tpu.memory_space<vmem>>, vector<1x1x16x32xf32>
    %654 = vector.shape_cast %653 : vector<1x1x16x32xf32> to vector<16x32xf32>
    %655 = vector.shape_cast %652 : vector<16x32xf32> to vector<1x1x16x32xf32>
    tpu.vector_store %arg7[%c0_64, %c7, %c0_65, %c0_66], %655 {strides = array<i32>} : memref<2x8x16x32xf32, #tpu.memory_space<vmem>>, vector<1x1x16x32xf32>,
    %656 = vector.broadcast %30 : vector<1x32xf32> to vector<16x32xf32>
    %657 = arith.mulf %610, %656 : vector<16x32xf32>
    %658 = vector.broadcast %33 : vector<1x32xf32> to vector<16x32xf32>
    %659 = arith.mulf %612, %658 : vector<16x32xf32>
    %660 = arith.addf %657, %659 : vector<16x32xf32>
    %661 = vector.broadcast %36 : vector<1x32xf32> to vector<16x32xf32>
    %662 = arith.mulf %614, %661 : vector<16x32xf32>
    %663 = arith.addf %660, %662 : vector<16x32xf32>
    %664 = vector.broadcast %39 : vector<1x32xf32> to vector<16x32xf32>
    %665 = arith.mulf %616, %664 : vector<16x32xf32>
    %666 = arith.addf %663, %665 : vector<16x32xf32>
    %667 = vector.broadcast %42 : vector<1x32xf32> to vector<16x32xf32>
    %668 = arith.mulf %618, %667 : vector<16x32xf32>
    %669 = arith.addf %666, %668 : vector<16x32xf32>
    %670 = vector.broadcast %45 : vector<1x32xf32> to vector<16x32xf32>
    %671 = arith.mulf %620, %670 : vector<16x32xf32>
    %672 = arith.addf %669, %671 : vector<16x32xf32>
    %673 = vector.broadcast %48 : vector<1x32xf32> to vector<16x32xf32>
    %674 = arith.mulf %622, %673 : vector<16x32xf32>
    %675 = arith.addf %672, %674 : vector<16x32xf32>
    %676 = vector.broadcast %51 : vector<1x32xf32> to vector<16x32xf32>
    %677 = arith.mulf %624, %676 : vector<16x32xf32>
    %678 = arith.addf %675, %677 : vector<16x32xf32>
    %679 = vector.broadcast %54 : vector<1x32xf32> to vector<16x32xf32>
    %680 = arith.mulf %626, %679 : vector<16x32xf32>
    %681 = arith.addf %678, %680 : vector<16x32xf32>
    %c1_67 = arith.constant 1 : index
    %c7_68 = arith.constant 7 : index
    %c0_69 = arith.constant 0 : index
    %c0_70 = arith.constant 0 : index
    %682 = vector.load %arg7[%c1_67, %c7_68, %c0_69, %c0_70] : memref<2x8x16x32xf32, #tpu.memory_space<vmem>>, vector<1x1x16x32xf32>
    %683 = vector.shape_cast %682 : vector<1x1x16x32xf32> to vector<16x32xf32>
    %684 = vector.shape_cast %681 : vector<16x32xf32> to vector<1x1x16x32xf32>
    tpu.vector_store %arg7[%c1_67, %c7_68, %c0_69, %c0_70], %684 {strides = array<i32>} : memref<2x8x16x32xf32, #tpu.memory_space<vmem>>, vector<1x1x16x32xf32>,
    return
  }
  func.func @transform_0(%arg0: i32, %arg1: i32, %arg2: i32) -> (i32, i32, i32, i32) {
    %c0_i32 = arith.constant 0 : i32
    %c0_i32_0 = arith.constant 0 : i32
    return %arg0, %arg2, %c0_i32, %arg1 : i32, i32, i32, i32
  }
  func.func @transform_1(%arg0: i32, %arg1: i32, %arg2: i32) -> (i32, i32, i32, i32) {
    %c8_i32 = arith.constant 8 : i32
    %0 = arith.muli %arg2, %c8_i32 : i32
    %c1_i32 = arith.constant 1 : i32
    %1 = arith.subi %0, %c1_i32 : i32
    %c0_i32 = arith.constant 0 : i32
    %2 = arith.maxsi %1, %c0_i32 : i32
    %c0_i32_0 = arith.constant 0 : i32
    %c0_i32_1 = arith.constant 0 : i32
    return %arg0, %2, %c0_i32_0, %arg1 : i32, i32, i32, i32
  }
  func.func @transform_2(%arg0: i32, %arg1: i32, %arg2: i32) -> (i32, i32, i32, i32) {
    %c1_i32 = arith.constant 1 : i32
    %0 = arith.addi %arg2, %c1_i32 : i32
    %c8_i32 = arith.constant 8 : i32
    %1 = arith.muli %0, %c8_i32 : i32
    %c15_i32 = arith.constant 15 : i32
    %2 = arith.minsi %1, %c15_i32 : i32
    %c0_i32 = arith.constant 0 : i32
    %c0_i32_0 = arith.constant 0 : i32
    return %arg0, %2, %c0_i32, %arg1 : i32, i32, i32, i32
  }
  func.func @transform_3(%arg0: i32, %arg1: i32, %arg2: i32) -> (i32, i32, i32) {
    %c0_i32 = arith.constant 0 : i32
    %c0_i32_0 = arith.constant 0 : i32
    %c0_i32_1 = arith.constant 0 : i32
    return %c0_i32, %c0_i32_0, %arg1 : i32, i32, i32
  }
  func.func @transform_4(%arg0: i32, %arg1: i32, %arg2: i32) -> (i32, i32, i32, i32) {
    %c0_i32 = arith.constant 0 : i32
    %c0_i32_0 = arith.constant 0 : i32
    return %arg0, %arg2, %c0_i32, %arg1 : i32, i32, i32, i32
  }
}

</mosaic_0001>

<llo_original>
// kernel: squeeze.1
$region0: #{squeeze.1}
  %s0 = inlined_call_operand.vmem [shape: f32[64,3,3], index: 0, kind: input, shape index: {}]
  %s1 = inlined_call_operand.vmem [shape: f32[32,2,3,3], index: 1, kind: output, shape index: {}]
  $region1: #{squeeze.1} parent=0
    #allocation0 [shape = 'u8[12288]{0}', space=vmem, size = 0x3000, scoped, tag = 'scoped mem for input reshape']
    %s3 = sshllo.u32 0, 4
    %s4 = smul.addr 4, 2
    %s5 = scalar_lea.vmem %s0, %s4
    %v6 = vld [vmem:[%s5] sm:%s3]
    %s7 = scalar_lea.vmem [#allocation0], 16
    %8 = vst [vmem:[%s7] sm:%s3] %v6
    %s9 = scalar_lea.vmem %s0, 4
    %v10 = vld [vmem:[%s9] sm:%s3]
    %s11 = scalar_lea.vmem [#allocation0], 8
    %12 = vst [vmem:[%s11] sm:%s3] %v10
    %v13 = vld [vmem:[%s0] sm:%s3]
    %14 = vst [vmem:[#allocation0] sm:%s3] %v13
    %v15 = vld [vmem:[#allocation0] sm:$0x7]
    %vm16 = vcmask 15360
    %17 = vst.msk [vmem:[%s1] sm:$0x1] %vm16, %v15
    %s18 = scalar_lea.vmem %s1, 31
    %19 = vst.msk [vmem:[%s18] sm:$0x2] %vm16, %v15
    %s20 = scalar_lea.vmem %s1, 62
    %21 = vst.msk [vmem:[%s20] sm:$0x4] %vm16, %v15
    %s22 = scalar_lea.vmem [#allocation0], 8
    %v23 = vld [vmem:[%s22] sm:$0x7]
    %vm24 = vcmask 15360
    %s25 = scalar_lea.vmem %s1, 96
    %26 = vst.msk [vmem:[%s25] sm:$0x1] %vm24, %v23
    %s27 = scalar_lea.vmem %s1, 127
    %28 = vst.msk [vmem:[%s27] sm:$0x2] %vm24, %v23
    %s29 = scalar_lea.vmem %s1, 158
    %30 = vst.msk [vmem:[%s29] sm:$0x4] %vm24, %v23
    %s31 = scalar_lea.vmem [#allocation0], 16
    %v32 = vld [vmem:[%s31] sm:$0x7]
    %vm33 = vcmask 15360
    %s34 = scalar_lea.vmem %s1, 192
    %35 = vst.msk [vmem:[%s34] sm:$0x1] %vm33, %v32
    %s36 = scalar_lea.vmem %s1, 223
    %37 = vst.msk [vmem:[%s36] sm:$0x2] %vm33, %v32
    %s38 = scalar_lea.vmem %s1, 254
    %39 = vst.msk [vmem:[%s38] sm:$0x4] %vm33, %v32
    %v40 = vld.sshfl [vmem:[#allocation0] sm:$0xff pattern:$0xaaa98210]
    %s41 = scalar_lea.vmem [#allocation0], 10
    %v42 = vld [vmem:[%s41] sm:$0xc0]
    %vm43 = vcmask 1047558
    %v44 = vsel %vm43, %v42, %v40
    %45 = vrot.lane.b32.xlu0 %v44, 126
    %v46 = vpop.permute.xlu0 %45
    %vm47 = vcmask 15360
    %s48 = scalar_lea.vmem %s1, 1
    %49 = vst.msk [vmem:[%s48] sm:$0x1] %vm47, %v46
    %s50 = scalar_lea.vmem %s1, 32
    %51 = vst.msk [vmem:[%s50] sm:$0x2] %vm47, %v46
    %s52 = scalar_lea.vmem %s1, 63
    %53 = vst.msk [vmem:[%s52] sm:$0x4] %vm47, %v46
    %s54 = scalar_lea.vmem %s1, 94
    %55 = vst.msk [vmem:[%s54] sm:$0x8] %vm47, %v46
    %s56 = scalar_lea.vmem %s1, 125
    %57 = vst.msk [vmem:[%s56] sm:$0x10] %vm47, %v46
    %s58 = scalar_lea.vmem %s1, 156
    %59 = vst.msk [vmem:[%s58] sm:$0x20] %vm47, %v46
    %s60 = scalar_lea.vmem %s1, 187
    %61 = vst.msk [vmem:[%s60] sm:$0x40] %vm47, %v46
    %s62 = scalar_lea.vmem %s1, 218
    %63 = vst.msk [vmem:[%s62] sm:$0x80] %vm47, %v46
    %s64 = scalar_lea.vmem [#allocation0], 18
    %v65 = vld [vmem:[%s64] sm:$0x1]
    %66 = vrot.lane.b32.xlu0 %v65, 126
    %v67 = vpop.permute.xlu0 %66
    %vm68 = vcmask 15360
    %s69 = scalar_lea.vmem %s1, 257
    %70 = vst.msk [vmem:[%s69] sm:$0x1] %vm68, %v67
    %v71 = vld.sshfl [vmem:[#allocation0] sm:$0xff pattern:$0xaaa98210]
    %s72 = scalar_lea.vmem [#allocation0], 10
    %v73 = vld [vmem:[%s72] sm:$0xc0]
    %vm74 = vcmask 1047558
    %v75 = vsel %vm74, %v73, %v71
    %76 = vrot.lane.b32.xlu0 %v75, 124
    %v77 = vpop.permute.xlu0 %76
    %vm78 = vcmask 15360
    %s79 = scalar_lea.vmem %s1, 2
    %80 = vst.msk [vmem:[%s79] sm:$0x1] %vm78, %v77
    %s81 = scalar_lea.vmem %s1, 33
    %82 = vst.msk [vmem:[%s81] sm:$0x2] %vm78, %v77
    %s83 = scalar_lea.vmem %s1, 64
    %84 = vst.msk [vmem:[%s83] sm:$0x4] %vm78, %v77
    %s85 = scalar_lea.vmem %s1, 95
    %86 = vst.msk [vmem:[%s85] sm:$0x8] %vm78, %v77
    %s87 = scalar_lea.vmem %s1, 126
    %88 = vst.msk [vmem:[%s87] sm:$0x10] %vm78, %v77
    %s89 = scalar_lea.vmem %s1, 157
    %90 = vst.msk [vmem:[%s89] sm:$0x20] %vm78, %v77
    %s91 = scalar_lea.vmem %s1, 188
    %92 = vst.msk [vmem:[%s91] sm:$0x40] %vm78, %v77
    %s93 = scalar_lea.vmem %s1, 219
    %94 = vst.msk [vmem:[%s93] sm:$0x80] %vm78, %v77
    %s95 = scalar_lea.vmem [#allocation0], 18
    %v96 = vld [vmem:[%s95] sm:$0x1]
    %97 = vrot.lane.b32.xlu0 %v96, 124
    %v98 = vpop.permute.xlu0 %97
    %vm99 = vcmask 15360
    %s100 = scalar_lea.vmem %s1, 258
    %101 = vst.msk [vmem:[%s100] sm:$0x1] %vm99, %v98
    %v102 = vld.sshfl [vmem:[#allocation0] sm:$0xff pattern:$0xaaa98210]
    %s103 = scalar_lea.vmem [#allocation0], 10
    %v104 = vld [vmem:[%s103] sm:$0xc0]
    %vm105 = vcmask 1047558
    %v106 = vsel %vm105, %v104, %v102
    %107 = vrot.lane.b32.xlu0 %v106, 122
    %v108 = vpop.permute.xlu0 %107
    %vm109 = vcmask 15360
    %s110 = scalar_lea.vmem %s1, 3
    %111 = vst.msk [vmem:[%s110] sm:$0x1] %vm109, %v108
    %s112 = scalar_lea.vmem %s1, 34
    %113 = vst.msk [vmem:[%s112] sm:$0x2] %vm109, %v108
    %s114 = scalar_lea.vmem %s1, 65
    %115 = vst.msk [vmem:[%s114] sm:$0x4] %vm109, %v108
    %s116 = scalar_lea.vmem %s1, 96
    %117 = vst.msk [vmem:[%s116] sm:$0x8] %vm109, %v108
    %s118 = scalar_lea.vmem %s1, 127
    %119 = vst.msk [vmem:[%s118] sm:$0x10] %vm109, %v108
    %s120 = scalar_lea.vmem %s1, 158
    %121 = vst.msk [vmem:[%s120] sm:$0x20] %vm109, %v108
    %s122 = scalar_lea.vmem %s1, 189
    %123 = vst.msk [vmem:[%s122] sm:$0x40] %vm109, %v108
    %s124 = scalar_lea.vmem %s1, 220
    %125 = vst.msk [vmem:[%s124] sm:$0x80] %vm109, %v108
    %s126 = scalar_lea.vmem [#allocation0], 18
    %v127 = vld [vmem:[%s126] sm:$0x1]
    %128 = vrot.lane.b32.xlu0 %v127, 122
    %v129 = vpop.permute.xlu0 %128
    %vm130 = vcmask 15360
    %s131 = scalar_lea.vmem %s1, 259
    %132 = vst.msk [vmem:[%s131] sm:$0x1] %vm130, %v129
    %v133 = vld.sshfl [vmem:[#allocation0] sm:$0xff pattern:$0xaaa98210]
    %s134 = scalar_lea.vmem [#allocation0], 10
    %v135 = vld [vmem:[%s134] sm:$0xc0]
    %vm136 = vcmask 1047558
    %v137 = vsel %vm136, %v135, %v133
    %138 = vrot.lane.b32.xlu0 %v137, 120
    %v139 = vpop.permute.xlu0 %138
    %vm140 = vcmask 15360
    %s141 = scalar_lea.vmem %s1, 4
    %142 = vst.msk [vmem:[%s141] sm:$0x1] %vm140, %v139
    %s143 = scalar_lea.vmem %s1, 35
    %144 = vst.msk [vmem:[%s143] sm:$0x2] %vm140, %v139
    %s145 = scalar_lea.vmem %s1, 66
    %146 = vst.msk [vmem:[%s145] sm:$0x4] %vm140, %v139
    %s147 = scalar_lea.vmem %s1, 97
    %148 = vst.msk [vmem:[%s147] sm:$0x8] %vm140, %v139
    %s149 = scalar_lea.vmem %s1, 128
    %150 = vst.msk [vmem:[%s149] sm:$0x10] %vm140, %v139
    %s151 = scalar_lea.vmem %s1, 159
    %152 = vst.msk [vmem:[%s151] sm:$0x20] %vm140, %v139
    %s153 = scalar_lea.vmem %s1, 190
    %154 = vst.msk [vmem:[%s153] sm:$0x40] %vm140, %v139
    %s155 = scalar_lea.vmem %s1, 221
    %156 = vst.msk [vmem:[%s155] sm:$0x80] %vm140, %v139
    %s157 = scalar_lea.vmem [#allocation0], 18
    %v158 = vld [vmem:[%s157] sm:$0x1]
    %159 = vrot.lane.b32.xlu0 %v158, 120
    %v160 = vpop.permute.xlu0 %159
    %vm161 = vcmask 15360
    %s162 = scalar_lea.vmem %s1, 260
    %163 = vst.msk [vmem:[%s162] sm:$0x1] %vm161, %v160
    %v164 = vld.sshfl [vmem:[#allocation0] sm:$0xff pattern:$0xaaa98210]
    %s165 = scalar_lea.vmem [#allocation0], 10
    %v166 = vld [vmem:[%s165] sm:$0xc0]
    %vm167 = vcmask 1047558
    %v168 = vsel %vm167, %v166, %v164
    %169 = vrot.lane.b32.xlu0 %v168, 118
    %v170 = vpop.permute.xlu0 %169
    %vm171 = vcmask 15360
    %s172 = scalar_lea.vmem %s1, 5
    %173 = vst.msk [vmem:[%s172] sm:$0x1] %vm171, %v170
    %s174 = scalar_lea.vmem %s1, 36
    %175 = vst.msk [vmem:[%s174] sm:$0x2] %vm171, %v170
    %s176 = scalar_lea.vmem %s1, 67
    %177 = vst.msk [vmem:[%s176] sm:$0x4] %vm171, %v170
    %s178 = scalar_lea.vmem %s1, 98
    %179 = vst.msk [vmem:[%s178] sm:$0x8] %vm171, %v170
    %s180 = scalar_lea.vmem %s1, 129
    %181 = vst.msk [vmem:[%s180] sm:$0x10] %vm171, %v170
    %s182 = scalar_lea.vmem %s1, 160
    %183 = vst.msk [vmem:[%s182] sm:$0x20] %vm171, %v170
    %s184 = scalar_lea.vmem %s1, 191
    %185 = vst.msk [vmem:[%s184] sm:$0x40] %vm171, %v170
    %s186 = scalar_lea.vmem %s1, 222
    %187 = vst.msk [vmem:[%s186] sm:$0x80] %vm171, %v170
    %s188 = scalar_lea.vmem [#allocation0], 18
    %v189 = vld [vmem:[%s188] sm:$0x1]
    %190 = vrot.lane.b32.xlu0 %v189, 118
    %v191 = vpop.permute.xlu0 %190
    %vm192 = vcmask 15360
    %s193 = scalar_lea.vmem %s1, 261
    %194 = vst.msk [vmem:[%s193] sm:$0x1] %vm192, %v191
    %v195 = vld.sshfl [vmem:[#allocation0] sm:$0xff pattern:$0xaaa98210]
    %s196 = scalar_lea.vmem [#allocation0], 10
    %v197 = vld [vmem:[%s196] sm:$0xc0]
    %vm198 = vcmask 1047558
    %v199 = vsel %vm198, %v197, %v195
    %200 = vrot.lane.b32.xlu0 %v199, 116
    %v201 = vpop.permute.xlu0 %200
    %vm202 = vcmask 15360
    %s203 = scalar_lea.vmem %s1, 6
    %204 = vst.msk [vmem:[%s203] sm:$0x1] %vm202, %v201
    %s205 = scalar_lea.vmem %s1, 37
    %206 = vst.msk [vmem:[%s205] sm:$0x2] %vm202, %v201
    %s207 = scalar_lea.vmem %s1, 68
    %208 = vst.msk [vmem:[%s207] sm:$0x4] %vm202, %v201
    %s209 = scalar_lea.vmem %s1, 99
    %210 = vst.msk [vmem:[%s209] sm:$0x8] %vm202, %v201
    %s211 = scalar_lea.vmem %s1, 130
    %212 = vst.msk [vmem:[%s211] sm:$0x10] %vm202, %v201
    %s213 = scalar_lea.vmem %s1, 161
    %214 = vst.msk [vmem:[%s213] sm:$0x20] %vm202, %v201
    %s215 = scalar_lea.vmem %s1, 192
    %216 = vst.msk [vmem:[%s215] sm:$0x40] %vm202, %v201
    %s217 = scalar_lea.vmem %s1, 223
    %218 = vst.msk [vmem:[%s217] sm:$0x80] %vm202, %v201
    %s219 = scalar_lea.vmem [#allocation0], 18
    %v220 = vld [vmem:[%s219] sm:$0x1]
    %221 = vrot.lane.b32.xlu0 %v220, 116
    %v222 = vpop.permute.xlu0 %221
    %vm223 = vcmask 15360
    %s224 = scalar_lea.vmem %s1, 262
    %225 = vst.msk [vmem:[%s224] sm:$0x1] %vm223, %v222
    %v226 = vld.sshfl [vmem:[#allocation0] sm:$0xff pattern:$0xaaa98210]
    %s227 = scalar_lea.vmem [#allocation0], 10
    %v228 = vld [vmem:[%s227] sm:$0xc0]
    %vm229 = vcmask 1047558
    %v230 = vsel %vm229, %v228, %v226
    %231 = vrot.lane.b32.xlu0 %v230, 114
    %v232 = vpop.permute.xlu0 %231
    %vm233 = vcmask 15360
    %s234 = scalar_lea.vmem %s1, 7
    %235 = vst.msk [vmem:[%s234] sm:$0x1] %vm233, %v232
    %s236 = scalar_lea.vmem %s1, 38
    %237 = vst.msk [vmem:[%s236] sm:$0x2] %vm233, %v232
    %s238 = scalar_lea.vmem %s1, 69
    %239 = vst.msk [vmem:[%s238] sm:$0x4] %vm233, %v232
    %s240 = scalar_lea.vmem %s1, 100
    %241 = vst.msk [vmem:[%s240] sm:$0x8] %vm233, %v232
    %s242 = scalar_lea.vmem %s1, 131
    %243 = vst.msk [vmem:[%s242] sm:$0x10] %vm233, %v232
    %s244 = scalar_lea.vmem %s1, 162
    %245 = vst.msk [vmem:[%s244] sm:$0x20] %vm233, %v232
    %s246 = scalar_lea.vmem %s1, 193
    %247 = vst.msk [vmem:[%s246] sm:$0x40] %vm233, %v232
    %s248 = scalar_lea.vmem %s1, 224
    %249 = vst.msk [vmem:[%s248] sm:$0x80] %vm233, %v232
    %s250 = scalar_lea.vmem [#allocation0], 18
    %v251 = vld [vmem:[%s250] sm:$0x1]
    %252 = vrot.lane.b32.xlu0 %v251, 114
    %v253 = vpop.permute.xlu0 %252
    %vm254 = vcmask 15360
    %s255 = scalar_lea.vmem %s1, 263
    %256 = vst.msk [vmem:[%s255] sm:$0x1] %vm254, %v253
    %v257 = vld.sshfl [vmem:[#allocation0] sm:$0xff pattern:$0xaaa98210]
    %s258 = scalar_lea.vmem [#allocation0], 10
    %v259 = vld [vmem:[%s258] sm:$0xc0]
    %vm260 = vcmask 1047558
    %v261 = vsel %vm260, %v259, %v257
    %262 = vrot.lane.b32.xlu0 %v261, 112
    %v263 = vpop.permute.xlu0 %262
    %vm264 = vcmask 15360
    %s265 = scalar_lea.vmem %s1, 8
    %266 = vst.msk [vmem:[%s265] sm:$0x1] %vm264, %v263
    %s267 = scalar_lea.vmem %s1, 39
    %268 = vst.msk [vmem:[%s267] sm:$0x2] %vm264, %v263
    %s269 = scalar_lea.vmem %s1, 70
    %270 = vst.msk [vmem:[%s269] sm:$0x4] %vm264, %v263
    %s271 = scalar_lea.vmem %s1, 101
    %272 = vst.msk [vmem:[%s271] sm:$0x8] %vm264, %v263
    %s273 = scalar_lea.vmem %s1, 132
    %274 = vst.msk [vmem:[%s273] sm:$0x10] %vm264, %v263
    %s275 = scalar_lea.vmem %s1, 163
    %276 = vst.msk [vmem:[%s275] sm:$0x20] %vm264, %v263
    %s277 = scalar_lea.vmem %s1, 194
    %278 = vst.msk [vmem:[%s277] sm:$0x40] %vm264, %v263
    %s279 = scalar_lea.vmem %s1, 225
    %280 = vst.msk [vmem:[%s279] sm:$0x80] %vm264, %v263
    %s281 = scalar_lea.vmem [#allocation0], 18
    %v282 = vld [vmem:[%s281] sm:$0x1]
    %283 = vrot.lane.b32.xlu0 %v282, 112
    %v284 = vpop.permute.xlu0 %283
    %vm285 = vcmask 15360
    %s286 = scalar_lea.vmem %s1, 264
    %287 = vst.msk [vmem:[%s286] sm:$0x1] %vm285, %v284
    %v288 = vld.sshfl [vmem:[#allocation0] sm:$0xff pattern:$0xaaa98210]
    %s289 = scalar_lea.vmem [#allocation0], 10
    %v290 = vld [vmem:[%s289] sm:$0xc0]
    %vm291 = vcmask 1047558
    %v292 = vsel %vm291, %v290, %v288
    %293 = vrot.lane.b32.xlu0 %v292, 110
    %v294 = vpop.permute.xlu0 %293
    %vm295 = vcmask 15360
    %s296 = scalar_lea.vmem %s1, 9
    %297 = vst.msk [vmem:[%s296] sm:$0x1] %vm295, %v294
    %s298 = scalar_lea.vmem %s1, 40
    %299 = vst.msk [vmem:[%s298] sm:$0x2] %vm295, %v294
    %s300 = scalar_lea.vmem %s1, 71
    %301 = vst.msk [vmem:[%s300] sm:$0x4] %vm295, %v294
    %s302 = scalar_lea.vmem %s1, 102
    %303 = vst.msk [vmem:[%s302] sm:$0x8] %vm295, %v294
    %s304 = scalar_lea.vmem %s1, 133
    %305 = vst.msk [vmem:[%s304] sm:$0x10] %vm295, %v294
    %s306 = scalar_lea.vmem %s1, 164
    %307 = vst.msk [vmem:[%s306] sm:$0x20] %vm295, %v294
    %s308 = scalar_lea.vmem %s1, 195
    %309 = vst.msk [vmem:[%s308] sm:$0x40] %vm295, %v294
    %s310 = scalar_lea.vmem %s1, 226
    %311 = vst.msk [vmem:[%s310] sm:$0x80] %vm295, %v294
    %s312 = scalar_lea.vmem [#allocation0], 18
    %v313 = vld [vmem:[%s312] sm:$0x1]
    %314 = vrot.lane.b32.xlu0 %v313, 110
    %v315 = vpop.permute.xlu0 %314
    %vm316 = vcmask 15360
    %s317 = scalar_lea.vmem %s1, 265
    %318 = vst.msk [vmem:[%s317] sm:$0x1] %vm316, %v315
    %v319 = vld.sshfl [vmem:[#allocation0] sm:$0xff pattern:$0xaaa98210]
    %s320 = scalar_lea.vmem [#allocation0], 10
    %v321 = vld [vmem:[%s320] sm:$0xc0]
    %vm322 = vcmask 1047558
    %v323 = vsel %vm322, %v321, %v319
    %324 = vrot.lane.b32.xlu0 %v323, 108
    %v325 = vpop.permute.xlu0 %324
    %vm326 = vcmask 15360
    %s327 = scalar_lea.vmem %s1, 10
    %328 = vst.msk [vmem:[%s327] sm:$0x1] %vm326, %v325
    %s329 = scalar_lea.vmem %s1, 41
    %330 = vst.msk [vmem:[%s329] sm:$0x2] %vm326, %v325
    %s331 = scalar_lea.vmem %s1, 72
    %332 = vst.msk [vmem:[%s331] sm:$0x4] %vm326, %v325
    %s333 = scalar_lea.vmem %s1, 103
    %334 = vst.msk [vmem:[%s333] sm:$0x8] %vm326, %v325
    %s335 = scalar_lea.vmem %s1, 134
    %336 = vst.msk [vmem:[%s335] sm:$0x10] %vm326, %v325
    %s337 = scalar_lea.vmem %s1, 165
    %338 = vst.msk [vmem:[%s337] sm:$0x20] %vm326, %v325
    %s339 = scalar_lea.vmem %s1, 196
    %340 = vst.msk [vmem:[%s339] sm:$0x40] %vm326, %v325
    %s341 = scalar_lea.vmem %s1, 227
    %342 = vst.msk [vmem:[%s341] sm:$0x80] %vm326, %v325
    %s343 = scalar_lea.vmem [#allocation0], 18
    %v344 = vld [vmem:[%s343] sm:$0x1]
    %345 = vrot.lane.b32.xlu0 %v344, 108
    %v346 = vpop.permute.xlu0 %345
    %vm347 = vcmask 15360
    %s348 = scalar_lea.vmem %s1, 266
    %349 = vst.msk [vmem:[%s348] sm:$0x1] %vm347, %v346
    %v350 = vld.sshfl [vmem:[#allocation0] sm:$0xff pattern:$0xaaa98210]
    %s351 = scalar_lea.vmem [#allocation0], 10
    %v352 = vld [vmem:[%s351] sm:$0xc0]
    %vm353 = vcmask 1047558
    %v354 = vsel %vm353, %v352, %v350
    %355 = vrot.lane.b32.xlu0 %v354, 106
    %v356 = vpop.permute.xlu0 %355
    %vm357 = vcmask 15360
    %s358 = scalar_lea.vmem %s1, 11
    %359 = vst.msk [vmem:[%s358] sm:$0x1] %vm357, %v356
    %s360 = scalar_lea.vmem %s1, 42
    %361 = vst.msk [vmem:[%s360] sm:$0x2] %vm357, %v356
    %s362 = scalar_lea.vmem %s1, 73
    %363 = vst.msk [vmem:[%s362] sm:$0x4] %vm357, %v356
    %s364 = scalar_lea.vmem %s1, 104
    %365 = vst.msk [vmem:[%s364] sm:$0x8] %vm357, %v356
    %s366 = scalar_lea.vmem %s1, 135
    %367 = vst.msk [vmem:[%s366] sm:$0x10] %vm357, %v356
    %s368 = scalar_lea.vmem %s1, 166
    %369 = vst.msk [vmem:[%s368] sm:$0x20] %vm357, %v356
    %s370 = scalar_lea.vmem %s1, 197
    %371 = vst.msk [vmem:[%s370] sm:$0x40] %vm357, %v356
    %s372 = scalar_lea.vmem %s1, 228
    %373 = vst.msk [vmem:[%s372] sm:$0x80] %vm357, %v356
    %s374 = scalar_lea.vmem [#allocation0], 18
    %v375 = vld [vmem:[%s374] sm:$0x1]
    %376 = vrot.lane.b32.xlu0 %v375, 106
    %v377 = vpop.permute.xlu0 %376
    %vm378 = vcmask 15360
    %s379 = scalar_lea.vmem %s1, 267
    %380 = vst.msk [vmem:[%s379] sm:$0x1] %vm378, %v377
    %v381 = vld.sshfl [vmem:[#allocation0] sm:$0xff pattern:$0xaaa98210]
    %s382 = scalar_lea.vmem [#allocation0], 10
    %v383 = vld [vmem:[%s382] sm:$0xc0]
    %vm384 = vcmask 1047558
    %v385 = vsel %vm384, %v383, %v381
    %386 = vrot.lane.b32.xlu0 %v385, 104
    %v387 = vpop.permute.xlu0 %386
    %vm388 = vcmask 15360
    %s389 = scalar_lea.vmem %s1, 12
    %390 = vst.msk [vmem:[%s389] sm:$0x1] %vm388, %v387
    %s391 = scalar_lea.vmem %s1, 43
    %392 = vst.msk [vmem:[%s391] sm:$0x2] %vm388, %v387
    %s393 = scalar_lea.vmem %s1, 74
    %394 = vst.msk [vmem:[%s393] sm:$0x4] %vm388, %v387
    %s395 = scalar_lea.vmem %s1, 105
    %396 = vst.msk [vmem:[%s395] sm:$0x8] %vm388, %v387
    %s397 = scalar_lea.vmem %s1, 136
    %398 = vst.msk [vmem:[%s397] sm:$0x10] %vm388, %v387
    %s399 = scalar_lea.vmem %s1, 167
    %400 = vst.msk [vmem:[%s399] sm:$0x20] %vm388, %v387
    %s401 = scalar_lea.vmem %s1, 198
    %402 = vst.msk [vmem:[%s401] sm:$0x40] %vm388, %v387
    %s403 = scalar_lea.vmem %s1, 229
    %404 = vst.msk [vmem:[%s403] sm:$0x80] %vm388, %v387
    %s405 = scalar_lea.vmem [#allocation0], 18
    %v406 = vld [vmem:[%s405] sm:$0x1]
    %407 = vrot.lane.b32.xlu0 %v406, 104
    %v408 = vpop.permute.xlu0 %407
    %vm409 = vcmask 15360
    %s410 = scalar_lea.vmem %s1, 268
    %411 = vst.msk [vmem:[%s410] sm:$0x1] %vm409, %v408
    %v412 = vld.sshfl [vmem:[#allocation0] sm:$0xff pattern:$0xaaa98210]
    %s413 = scalar_lea.vmem [#allocation0], 10
    %v414 = vld [vmem:[%s413] sm:$0xc0]
    %vm415 = vcmask 1047558
    %v416 = vsel %vm415, %v414, %v412
    %417 = vrot.lane.b32.xlu0 %v416, 102
    %v418 = vpop.permute.xlu0 %417
    %vm419 = vcmask 15360
    %s420 = scalar_lea.vmem %s1, 13
    %421 = vst.msk [vmem:[%s420] sm:$0x1] %vm419, %v418
    %s422 = scalar_lea.vmem %s1, 44
    %423 = vst.msk [vmem:[%s422] sm:$0x2] %vm419, %v418
    %s424 = scalar_lea.vmem %s1, 75
    %425 = vst.msk [vmem:[%s424] sm:$0x4] %vm419, %v418
    %s426 = scalar_lea.vmem %s1, 106
    %427 = vst.msk [vmem:[%s426] sm:$0x8] %vm419, %v418
    %s428 = scalar_lea.vmem %s1, 137
    %429 = vst.msk [vmem:[%s428] sm:$0x10] %vm419, %v418
    %s430 = scalar_lea.vmem %s1, 168
    %431 = vst.msk [vmem:[%s430] sm:$0x20] %vm419, %v418
    %s432 = scalar_lea.vmem %s1, 199
    %433 = vst.msk [vmem:[%s432] sm:$0x40] %vm419, %v418
    %s434 = scalar_lea.vmem %s1, 230
    %435 = vst.msk [vmem:[%s434] sm:$0x80] %vm419, %v418
    %s436 = scalar_lea.vmem [#allocation0], 18
    %v437 = vld [vmem:[%s436] sm:$0x1]
    %438 = vrot.lane.b32.xlu0 %v437, 102
    %v439 = vpop.permute.xlu0 %438
    %vm440 = vcmask 15360
    %s441 = scalar_lea.vmem %s1, 269
    %442 = vst.msk [vmem:[%s441] sm:$0x1] %vm440, %v439
    %v443 = vld.sshfl [vmem:[#allocation0] sm:$0xff pattern:$0xaaa98210]
    %s444 = scalar_lea.vmem [#allocation0], 10
    %v445 = vld [vmem:[%s444] sm:$0xc0]
    %vm446 = vcmask 1047558
    %v447 = vsel %vm446, %v445, %v443
    %448 = vrot.lane.b32.xlu0 %v447, 100
    %v449 = vpop.permute.xlu0 %448
    %vm450 = vcmask 15360
    %s451 = scalar_lea.vmem %s1, 14
    %452 = vst.msk [vmem:[%s451] sm:$0x1] %vm450, %v449
    %s453 = scalar_lea.vmem %s1, 45
    %454 = vst.msk [vmem:[%s453] sm:$0x2] %vm450, %v449
    %s455 = scalar_lea.vmem %s1, 76
    %456 = vst.msk [vmem:[%s455] sm:$0x4] %vm450, %v449
    %s457 = scalar_lea.vmem %s1, 107
    %458 = vst.msk [vmem:[%s457] sm:$0x8] %vm450, %v449
    %s459 = scalar_lea.vmem %s1, 138
    %460 = vst.msk [vmem:[%s459] sm:$0x10] %vm450, %v449
    %s461 = scalar_lea.vmem %s1, 169
    %462 = vst.msk [vmem:[%s461] sm:$0x20] %vm450, %v449
    %s463 = scalar_lea.vmem %s1, 200
    %464 = vst.msk [vmem:[%s463] sm:$0x40] %vm450, %v449
    %s465 = scalar_lea.vmem %s1, 231
    %466 = vst.msk [vmem:[%s465] sm:$0x80] %vm450, %v449
    %s467 = scalar_lea.vmem [#allocation0], 18
    %v468 = vld [vmem:[%s467] sm:$0x1]
    %469 = vrot.lane.b32.xlu0 %v468, 100
    %v470 = vpop.permute.xlu0 %469
    %vm471 = vcmask 15360
    %s472 = scalar_lea.vmem %s1, 270
    %473 = vst.msk [vmem:[%s472] sm:$0x1] %vm471, %v470
    %v474 = vld.sshfl [vmem:[#allocation0] sm:$0xff pattern:$0xaaa98210]
    %s475 = scalar_lea.vmem [#allocation0], 10
    %v476 = vld [vmem:[%s475] sm:$0xc0]
    %vm477 = vcmask 1047558
    %v478 = vsel %vm477, %v476, %v474
    %479 = vrot.lane.b32.xlu0 %v478, 98
    %v480 = vpop.permute.xlu0 %479
    %vm481 = vcmask 15360
    %s482 = scalar_lea.vmem %s1, 15
    %483 = vst.msk [vmem:[%s482] sm:$0x1] %vm481, %v480
    %s484 = scalar_lea.vmem %s1, 46
    %485 = vst.msk [vmem:[%s484] sm:$0x2] %vm481, %v480
    %s486 = scalar_lea.vmem %s1, 77
    %487 = vst.msk [vmem:[%s486] sm:$0x4] %vm481, %v480
    %s488 = scalar_lea.vmem %s1, 108
    %489 = vst.msk [vmem:[%s488] sm:$0x8] %vm481, %v480
    %s490 = scalar_lea.vmem %s1, 139
    %491 = vst.msk [vmem:[%s490] sm:$0x10] %vm481, %v480
    %s492 = scalar_lea.vmem %s1, 170
    %493 = vst.msk [vmem:[%s492] sm:$0x20] %vm481, %v480
    %s494 = scalar_lea.vmem %s1, 201
    %495 = vst.msk [vmem:[%s494] sm:$0x40] %vm481, %v480
    %s496 = scalar_lea.vmem %s1, 232
    %497 = vst.msk [vmem:[%s496] sm:$0x80] %vm481, %v480
    %s498 = scalar_lea.vmem [#allocation0], 18
    %v499 = vld [vmem:[%s498] sm:$0x1]
    %500 = vrot.lane.b32.xlu0 %v499, 98
    %v501 = vpop.permute.xlu0 %500
    %vm502 = vcmask 15360
    %s503 = scalar_lea.vmem %s1, 271
    %504 = vst.msk [vmem:[%s503] sm:$0x1] %vm502, %v501
    %v505 = vld.sshfl [vmem:[#allocation0] sm:$0xff pattern:$0xaaa98210]
    %s506 = scalar_lea.vmem [#allocation0], 10
    %v507 = vld [vmem:[%s506] sm:$0xc0]
    %vm508 = vcmask 1047558
    %v509 = vsel %vm508, %v507, %v505
    %510 = vrot.lane.b32.xlu0 %v509, 96
    %v511 = vpop.permute.xlu0 %510
    %vm512 = vcmask 15360
    %s513 = scalar_lea.vmem %s1, 16
    %514 = vst.msk [vmem:[%s513] sm:$0x1] %vm512, %v511
    %s515 = scalar_lea.vmem %s1, 47
    %516 = vst.msk [vmem:[%s515] sm:$0x2] %vm512, %v511
    %s517 = scalar_lea.vmem %s1, 78
    %518 = vst.msk [vmem:[%s517] sm:$0x4] %vm512, %v511
    %s519 = scalar_lea.vmem %s1, 109
    %520 = vst.msk [vmem:[%s519] sm:$0x8] %vm512, %v511
    %s521 = scalar_lea.vmem %s1, 140
    %522 = vst.msk [vmem:[%s521] sm:$0x10] %vm512, %v511
    %s523 = scalar_lea.vmem %s1, 171
    %524 = vst.msk [vmem:[%s523] sm:$0x20] %vm512, %v511
    %s525 = scalar_lea.vmem %s1, 202
    %526 = vst.msk [vmem:[%s525] sm:$0x40] %vm512, %v511
    %s527 = scalar_lea.vmem %s1, 233
    %528 = vst.msk [vmem:[%s527] sm:$0x80] %vm512, %v511
    %s529 = scalar_lea.vmem [#allocation0], 18
    %v530 = vld [vmem:[%s529] sm:$0x1]
    %531 = vrot.lane.b32.xlu0 %v530, 96
    %v532 = vpop.permute.xlu0 %531
    %vm533 = vcmask 15360
    %s534 = scalar_lea.vmem %s1, 272
    %535 = vst.msk [vmem:[%s534] sm:$0x1] %vm533, %v532
    %v536 = vld.sshfl [vmem:[#allocation0] sm:$0xff pattern:$0xaaa98210]
    %s537 = scalar_lea.vmem [#allocation0], 10
    %v538 = vld [vmem:[%s537] sm:$0xc0]
    %vm539 = vcmask 1047558
    %v540 = vsel %vm539, %v538, %v536
    %541 = vrot.lane.b32.xlu0 %v540, 94
    %v542 = vpop.permute.xlu0 %541
    %vm543 = vcmask 15360
    %s544 = scalar_lea.vmem %s1, 17
    %545 = vst.msk [vmem:[%s544] sm:$0x1] %vm543, %v542
    %s546 = scalar_lea.vmem %s1, 48
    %547 = vst.msk [vmem:[%s546] sm:$0x2] %vm543, %v542
    %s548 = scalar_lea.vmem %s1, 79
    %549 = vst.msk [vmem:[%s548] sm:$0x4] %vm543, %v542
    %s550 = scalar_lea.vmem %s1, 110
    %551 = vst.msk [vmem:[%s550] sm:$0x8] %vm543, %v542
    %s552 = scalar_lea.vmem %s1, 141
    %553 = vst.msk [vmem:[%s552] sm:$0x10] %vm543, %v542
    %s554 = scalar_lea.vmem %s1, 172
    %555 = vst.msk [vmem:[%s554] sm:$0x20] %vm543, %v542
    %s556 = scalar_lea.vmem %s1, 203
    %557 = vst.msk [vmem:[%s556] sm:$0x40] %vm543, %v542
    %s558 = scalar_lea.vmem %s1, 234
    %559 = vst.msk [vmem:[%s558] sm:$0x80] %vm543, %v542
    %s560 = scalar_lea.vmem [#allocation0], 18
    %v561 = vld [vmem:[%s560] sm:$0x1]
    %562 = vrot.lane.b32.xlu0 %v561, 94
    %v563 = vpop.permute.xlu0 %562
    %vm564 = vcmask 15360
    %s565 = scalar_lea.vmem %s1, 273
    %566 = vst.msk [vmem:[%s565] sm:$0x1] %vm564, %v563
    %v567 = vld.sshfl [vmem:[#allocation0] sm:$0xff pattern:$0xaaa98210]
    %s568 = scalar_lea.vmem [#allocation0], 10
    %v569 = vld [vmem:[%s568] sm:$0xc0]
    %vm570 = vcmask 1047558
    %v571 = vsel %vm570, %v569, %v567
    %572 = vrot.lane.b32.xlu0 %v571, 92
    %v573 = vpop.permute.xlu0 %572
    %vm574 = vcmask 15360
    %s575 = scalar_lea.vmem %s1, 18
    %576 = vst.msk [vmem:[%s575] sm:$0x1] %vm574, %v573
    %s577 = scalar_lea.vmem %s1, 49
    %578 = vst.msk [vmem:[%s577] sm:$0x2] %vm574, %v573
    %s579 = scalar_lea.vmem %s1, 80
    %580 = vst.msk [vmem:[%s579] sm:$0x4] %vm574, %v573
    %s581 = scalar_lea.vmem %s1, 111
    %582 = vst.msk [vmem:[%s581] sm:$0x8] %vm574, %v573
    %s583 = scalar_lea.vmem %s1, 142
    %584 = vst.msk [vmem:[%s583] sm:$0x10] %vm574, %v573
    %s585 = scalar_lea.vmem %s1, 173
    %586 = vst.msk [vmem:[%s585] sm:$0x20] %vm574, %v573
    %s587 = scalar_lea.vmem %s1, 204
    %588 = vst.msk [vmem:[%s587] sm:$0x40] %vm574, %v573
    %s589 = scalar_lea.vmem %s1, 235
    %590 = vst.msk [vmem:[%s589] sm:$0x80] %vm574, %v573
    %s591 = scalar_lea.vmem [#allocation0], 18
    %v592 = vld [vmem:[%s591] sm:$0x1]
    %593 = vrot.lane.b32.xlu0 %v592, 92
    %v594 = vpop.permute.xlu0 %593
    %vm595 = vcmask 15360
    %s596 = scalar_lea.vmem %s1, 274
    %597 = vst.msk [vmem:[%s596] sm:$0x1] %vm595, %v594
    %v598 = vld.sshfl [vmem:[#allocation0] sm:$0xff pattern:$0xaaa98210]
    %s599 = scalar_lea.vmem [#allocation0], 10
    %v600 = vld [vmem:[%s599] sm:$0xc0]
    %vm601 = vcmask 1047558
    %v602 = vsel %vm601, %v600, %v598
    %603 = vrot.lane.b32.xlu0 %v602, 90
    %v604 = vpop.permute.xlu0 %603
    %vm605 = vcmask 15360
    %s606 = scalar_lea.vmem %s1, 19
    %607 = vst.msk [vmem:[%s606] sm:$0x1] %vm605, %v604
    %s608 = scalar_lea.vmem %s1, 50
    %609 = vst.msk [vmem:[%s608] sm:$0x2] %vm605, %v604
    %s610 = scalar_lea.vmem %s1, 81
    %611 = vst.msk [vmem:[%s610] sm:$0x4] %vm605, %v604
    %s612 = scalar_lea.vmem %s1, 112
    %613 = vst.msk [vmem:[%s612] sm:$0x8] %vm605, %v604
    %s614 = scalar_lea.vmem %s1, 143
    %615 = vst.msk [vmem:[%s614] sm:$0x10] %vm605, %v604
    %s616 = scalar_lea.vmem %s1, 174
    %617 = vst.msk [vmem:[%s616] sm:$0x20] %vm605, %v604
    %s618 = scalar_lea.vmem %s1, 205
    %619 = vst.msk [vmem:[%s618] sm:$0x40] %vm605, %v604
    %s620 = scalar_lea.vmem %s1, 236
    %621 = vst.msk [vmem:[%s620] sm:$0x80] %vm605, %v604
    %s622 = scalar_lea.vmem [#allocation0], 18
    %v623 = vld [vmem:[%s622] sm:$0x1]
    %624 = vrot.lane.b32.xlu0 %v623, 90
    %v625 = vpop.permute.xlu0 %624
    %vm626 = vcmask 15360
    %s627 = scalar_lea.vmem %s1, 275
    %628 = vst.msk [vmem:[%s627] sm:$0x1] %vm626, %v625
    %v629 = vld.sshfl [vmem:[#allocation0] sm:$0xff pattern:$0xaaa98210]
    %s630 = scalar_lea.vmem [#allocation0], 10
    %v631 = vld [vmem:[%s630] sm:$0xc0]
    %vm632 = vcmask 1047558
    %v633 = vsel %vm632, %v631, %v629
    %634 = vrot.lane.b32.xlu0 %v633, 88
    %v635 = vpop.permute.xlu0 %634
    %vm636 = vcmask 15360
    %s637 = scalar_lea.vmem %s1, 20
    %638 = vst.msk [vmem:[%s637] sm:$0x1] %vm636, %v635
    %s639 = scalar_lea.vmem %s1, 51
    %640 = vst.msk [vmem:[%s639] sm:$0x2] %vm636, %v635
    %s641 = scalar_lea.vmem %s1, 82
    %642 = vst.msk [vmem:[%s641] sm:$0x4] %vm636, %v635
    %s643 = scalar_lea.vmem %s1, 113
    %644 = vst.msk [vmem:[%s643] sm:$0x8] %vm636, %v635
    %s645 = scalar_lea.vmem %s1, 144
    %646 = vst.msk [vmem:[%s645] sm:$0x10] %vm636, %v635
    %s647 = scalar_lea.vmem %s1, 175
    %648 = vst.msk [vmem:[%s647] sm:$0x20] %vm636, %v635
    %s649 = scalar_lea.vmem %s1, 206
    %650 = vst.msk [vmem:[%s649] sm:$0x40] %vm636, %v635
    %s651 = scalar_lea.vmem %s1, 237
    %652 = vst.msk [vmem:[%s651] sm:$0x80] %vm636, %v635
    %s653 = scalar_lea.vmem [#allocation0], 18
    %v654 = vld [vmem:[%s653] sm:$0x1]
    %655 = vrot.lane.b32.xlu0 %v654, 88
    %v656 = vpop.permute.xlu0 %655
    %vm657 = vcmask 15360
    %s658 = scalar_lea.vmem %s1, 276
    %659 = vst.msk [vmem:[%s658] sm:$0x1] %vm657, %v656
    %v660 = vld.sshfl [vmem:[#allocation0] sm:$0xff pattern:$0xaaa98210]
    %s661 = scalar_lea.vmem [#allocation0], 10
    %v662 = vld [vmem:[%s661] sm:$0xc0]
    %vm663 = vcmask 1047558
    %v664 = vsel %vm663, %v662, %v660
    %665 = vrot.lane.b32.xlu0 %v664, 86
    %v666 = vpop.permute.xlu0 %665
    %vm667 = vcmask 15360
    %s668 = scalar_lea.vmem %s1, 21
    %669 = vst.msk [vmem:[%s668] sm:$0x1] %vm667, %v666
    %s670 = scalar_lea.vmem %s1, 52
    %671 = vst.msk [vmem:[%s670] sm:$0x2] %vm667, %v666
    %s672 = scalar_lea.vmem %s1, 83
    %673 = vst.msk [vmem:[%s672] sm:$0x4] %vm667, %v666
    %s674 = scalar_lea.vmem %s1, 114
    %675 = vst.msk [vmem:[%s674] sm:$0x8] %vm667, %v666
    %s676 = scalar_lea.vmem %s1, 145
    %677 = vst.msk [vmem:[%s676] sm:$0x10] %vm667, %v666
    %s678 = scalar_lea.vmem %s1, 176
    %679 = vst.msk [vmem:[%s678] sm:$0x20] %vm667, %v666
    %s680 = scalar_lea.vmem %s1, 207
    %681 = vst.msk [vmem:[%s680] sm:$0x40] %vm667, %v666
    %s682 = scalar_lea.vmem %s1, 238
    %683 = vst.msk [vmem:[%s682] sm:$0x80] %vm667, %v666
    %s684 = scalar_lea.vmem [#allocation0], 18
    %v685 = vld [vmem:[%s684] sm:$0x1]
    %686 = vrot.lane.b32.xlu0 %v685, 86
    %v687 = vpop.permute.xlu0 %686
    %vm688 = vcmask 15360
    %s689 = scalar_lea.vmem %s1, 277
    %690 = vst.msk [vmem:[%s689] sm:$0x1] %vm688, %v687
    %v691 = vld.sshfl [vmem:[#allocation0] sm:$0xff pattern:$0xaaa98210]
    %s692 = scalar_lea.vmem [#allocation0], 10
    %v693 = vld [vmem:[%s692] sm:$0xc0]
    %vm694 = vcmask 1047558
    %v695 = vsel %vm694, %v693, %v691
    %696 = vrot.lane.b32.xlu0 %v695, 84
    %v697 = vpop.permute.xlu0 %696
    %vm698 = vcmask 15360
    %s699 = scalar_lea.vmem %s1, 22
    %700 = vst.msk [vmem:[%s699] sm:$0x1] %vm698, %v697
    %s701 = scalar_lea.vmem %s1, 53
    %702 = vst.msk [vmem:[%s701] sm:$0x2] %vm698, %v697
    %s703 = scalar_lea.vmem %s1, 84
    %704 = vst.msk [vmem:[%s703] sm:$0x4] %vm698, %v697
    %s705 = scalar_lea.vmem %s1, 115
    %706 = vst.msk [vmem:[%s705] sm:$0x8] %vm698, %v697
    %s707 = scalar_lea.vmem %s1, 146
    %708 = vst.msk [vmem:[%s707] sm:$0x10] %vm698, %v697
    %s709 = scalar_lea.vmem %s1, 177
    %710 = vst.msk [vmem:[%s709] sm:$0x20] %vm698, %v697
    %s711 = scalar_lea.vmem %s1, 208
    %712 = vst.msk [vmem:[%s711] sm:$0x40] %vm698, %v697
    %s713 = scalar_lea.vmem %s1, 239
    %714 = vst.msk [vmem:[%s713] sm:$0x80] %vm698, %v697
    %s715 = scalar_lea.vmem [#allocation0], 18
    %v716 = vld [vmem:[%s715] sm:$0x1]
    %717 = vrot.lane.b32.xlu0 %v716, 84
    %v718 = vpop.permute.xlu0 %717
    %vm719 = vcmask 15360
    %s720 = scalar_lea.vmem %s1, 278
    %721 = vst.msk [vmem:[%s720] sm:$0x1] %vm719, %v718
    %v722 = vld.sshfl [vmem:[#allocation0] sm:$0xff pattern:$0xaaa98210]
    %s723 = scalar_lea.vmem [#allocation0], 10
    %v724 = vld [vmem:[%s723] sm:$0xc0]
    %vm725 = vcmask 1047558
    %v726 = vsel %vm725, %v724, %v722
    %727 = vrot.lane.b32.xlu0 %v726, 82
    %v728 = vpop.permute.xlu0 %727
    %vm729 = vcmask 15360
    %s730 = scalar_lea.vmem %s1, 23
    %731 = vst.msk [vmem:[%s730] sm:$0x1] %vm729, %v728
    %s732 = scalar_lea.vmem %s1, 54
    %733 = vst.msk [vmem:[%s732] sm:$0x2] %vm729, %v728
    %s734 = scalar_lea.vmem %s1, 85
    %735 = vst.msk [vmem:[%s734] sm:$0x4] %vm729, %v728
    %s736 = scalar_lea.vmem %s1, 116
    %737 = vst.msk [vmem:[%s736] sm:$0x8] %vm729, %v728
    %s738 = scalar_lea.vmem %s1, 147
    %739 = vst.msk [vmem:[%s738] sm:$0x10] %vm729, %v728
    %s740 = scalar_lea.vmem %s1, 178
    %741 = vst.msk [vmem:[%s740] sm:$0x20] %vm729, %v728
    %s742 = scalar_lea.vmem %s1, 209
    %743 = vst.msk [vmem:[%s742] sm:$0x40] %vm729, %v728
    %s744 = scalar_lea.vmem %s1, 240
    %745 = vst.msk [vmem:[%s744] sm:$0x80] %vm729, %v728
    %s746 = scalar_lea.vmem [#allocation0], 18
    %v747 = vld [vmem:[%s746] sm:$0x1]
    %748 = vrot.lane.b32.xlu0 %v747, 82
    %v749 = vpop.permute.xlu0 %748
    %vm750 = vcmask 15360
    %s751 = scalar_lea.vmem %s1, 279
    %752 = vst.msk [vmem:[%s751] sm:$0x1] %vm750, %v749
    %v753 = vld.sshfl [vmem:[#allocation0] sm:$0xff pattern:$0xaaa98210]
    %s754 = scalar_lea.vmem [#allocation0], 10
    %v755 = vld [vmem:[%s754] sm:$0xc0]
    %vm756 = vcmask 1047558
    %v757 = vsel %vm756, %v755, %v753
    %758 = vrot.lane.b32.xlu0 %v757, 80
    %v759 = vpop.permute.xlu0 %758
    %vm760 = vcmask 15360
    %s761 = scalar_lea.vmem %s1, 24
    %762 = vst.msk [vmem:[%s761] sm:$0x1] %vm760, %v759
    %s763 = scalar_lea.vmem %s1, 55
    %764 = vst.msk [vmem:[%s763] sm:$0x2] %vm760, %v759
    %s765 = scalar_lea.vmem %s1, 86
    %766 = vst.msk [vmem:[%s765] sm:$0x4] %vm760, %v759
    %s767 = scalar_lea.vmem %s1, 117
    %768 = vst.msk [vmem:[%s767] sm:$0x8] %vm760, %v759
    %s769 = scalar_lea.vmem %s1, 148
    %770 = vst.msk [vmem:[%s769] sm:$0x10] %vm760, %v759
    %s771 = scalar_lea.vmem %s1, 179
    %772 = vst.msk [vmem:[%s771] sm:$0x20] %vm760, %v759
    %s773 = scalar_lea.vmem %s1, 210
    %774 = vst.msk [vmem:[%s773] sm:$0x40] %vm760, %v759
    %s775 = scalar_lea.vmem %s1, 241
    %776 = vst.msk [vmem:[%s775] sm:$0x80] %vm760, %v759
    %s777 = scalar_lea.vmem [#allocation0], 18
    %v778 = vld [vmem:[%s777] sm:$0x1]
    %779 = vrot.lane.b32.xlu0 %v778, 80
    %v780 = vpop.permute.xlu0 %779
    %vm781 = vcmask 15360
    %s782 = scalar_lea.vmem %s1, 280
    %783 = vst.msk [vmem:[%s782] sm:$0x1] %vm781, %v780
    %v784 = vld.sshfl [vmem:[#allocation0] sm:$0xff pattern:$0xaaa98210]
    %s785 = scalar_lea.vmem [#allocation0], 10
    %v786 = vld [vmem:[%s785] sm:$0xc0]
    %vm787 = vcmask 1047558
    %v788 = vsel %vm787, %v786, %v784
    %789 = vrot.lane.b32.xlu0 %v788, 78
    %v790 = vpop.permute.xlu0 %789
    %vm791 = vcmask 15360
    %s792 = scalar_lea.vmem %s1, 25
    %793 = vst.msk [vmem:[%s792] sm:$0x1] %vm791, %v790
    %s794 = scalar_lea.vmem %s1, 56
    %795 = vst.msk [vmem:[%s794] sm:$0x2] %vm791, %v790
    %s796 = scalar_lea.vmem %s1, 87
    %797 = vst.msk [vmem:[%s796] sm:$0x4] %vm791, %v790
    %s798 = scalar_lea.vmem %s1, 118
    %799 = vst.msk [vmem:[%s798] sm:$0x8] %vm791, %v790
    %s800 = scalar_lea.vmem %s1, 149
    %801 = vst.msk [vmem:[%s800] sm:$0x10] %vm791, %v790
    %s802 = scalar_lea.vmem %s1, 180
    %803 = vst.msk [vmem:[%s802] sm:$0x20] %vm791, %v790
    %s804 = scalar_lea.vmem %s1, 211
    %805 = vst.msk [vmem:[%s804] sm:$0x40] %vm791, %v790
    %s806 = scalar_lea.vmem %s1, 242
    %807 = vst.msk [vmem:[%s806] sm:$0x80] %vm791, %v790
    %s808 = scalar_lea.vmem [#allocation0], 18
    %v809 = vld [vmem:[%s808] sm:$0x1]
    %810 = vrot.lane.b32.xlu0 %v809, 78
    %v811 = vpop.permute.xlu0 %810
    %vm812 = vcmask 15360
    %s813 = scalar_lea.vmem %s1, 281
    %814 = vst.msk [vmem:[%s813] sm:$0x1] %vm812, %v811
    %v815 = vld.sshfl [vmem:[#allocation0] sm:$0xff pattern:$0xaaa98210]
    %s816 = scalar_lea.vmem [#allocation0], 10
    %v817 = vld [vmem:[%s816] sm:$0xc0]
    %vm818 = vcmask 1047558
    %v819 = vsel %vm818, %v817, %v815
    %820 = vrot.lane.b32.xlu0 %v819, 76
    %v821 = vpop.permute.xlu0 %820
    %vm822 = vcmask 15360
    %s823 = scalar_lea.vmem %s1, 26
    %824 = vst.msk [vmem:[%s823] sm:$0x1] %vm822, %v821
    %s825 = scalar_lea.vmem %s1, 57
    %826 = vst.msk [vmem:[%s825] sm:$0x2] %vm822, %v821
    %s827 = scalar_lea.vmem %s1, 88
    %828 = vst.msk [vmem:[%s827] sm:$0x4] %vm822, %v821
    %s829 = scalar_lea.vmem %s1, 119
    %830 = vst.msk [vmem:[%s829] sm:$0x8] %vm822, %v821
    %s831 = scalar_lea.vmem %s1, 150
    %832 = vst.msk [vmem:[%s831] sm:$0x10] %vm822, %v821
    %s833 = scalar_lea.vmem %s1, 181
    %834 = vst.msk [vmem:[%s833] sm:$0x20] %vm822, %v821
    %s835 = scalar_lea.vmem %s1, 212
    %836 = vst.msk [vmem:[%s835] sm:$0x40] %vm822, %v821
    %s837 = scalar_lea.vmem %s1, 243
    %838 = vst.msk [vmem:[%s837] sm:$0x80] %vm822, %v821
    %s839 = scalar_lea.vmem [#allocation0], 18
    %v840 = vld [vmem:[%s839] sm:$0x1]
    %841 = vrot.lane.b32.xlu0 %v840, 76
    %v842 = vpop.permute.xlu0 %841
    %vm843 = vcmask 15360
    %s844 = scalar_lea.vmem %s1, 282
    %845 = vst.msk [vmem:[%s844] sm:$0x1] %vm843, %v842
    %v846 = vld.sshfl [vmem:[#allocation0] sm:$0xff pattern:$0xaaa98210]
    %s847 = scalar_lea.vmem [#allocation0], 10
    %v848 = vld [vmem:[%s847] sm:$0xc0]
    %vm849 = vcmask 1047558
    %v850 = vsel %vm849, %v848, %v846
    %851 = vrot.lane.b32.xlu0 %v850, 74
    %v852 = vpop.permute.xlu0 %851
    %vm853 = vcmask 15360
    %s854 = scalar_lea.vmem %s1, 27
    %855 = vst.msk [vmem:[%s854] sm:$0x1] %vm853, %v852
    %s856 = scalar_lea.vmem %s1, 58
    %857 = vst.msk [vmem:[%s856] sm:$0x2] %vm853, %v852
    %s858 = scalar_lea.vmem %s1, 89
    %859 = vst.msk [vmem:[%s858] sm:$0x4] %vm853, %v852
    %s860 = scalar_lea.vmem %s1, 120
    %861 = vst.msk [vmem:[%s860] sm:$0x8] %vm853, %v852
    %s862 = scalar_lea.vmem %s1, 151
    %863 = vst.msk [vmem:[%s862] sm:$0x10] %vm853, %v852
    %s864 = scalar_lea.vmem %s1, 182
    %865 = vst.msk [vmem:[%s864] sm:$0x20] %vm853, %v852
    %s866 = scalar_lea.vmem %s1, 213
    %867 = vst.msk [vmem:[%s866] sm:$0x40] %vm853, %v852
    %s868 = scalar_lea.vmem %s1, 244
    %869 = vst.msk [vmem:[%s868] sm:$0x80] %vm853, %v852
    %s870 = scalar_lea.vmem [#allocation0], 18
    %v871 = vld [vmem:[%s870] sm:$0x1]
    %872 = vrot.lane.b32.xlu0 %v871, 74
    %v873 = vpop.permute.xlu0 %872
    %vm874 = vcmask 15360
    %s875 = scalar_lea.vmem %s1, 283
    %876 = vst.msk [vmem:[%s875] sm:$0x1] %vm874, %v873
    %v877 = vld.sshfl [vmem:[#allocation0] sm:$0xff pattern:$0xaaa98210]
    %s878 = scalar_lea.vmem [#allocation0], 10
    %v879 = vld [vmem:[%s878] sm:$0xc0]
    %vm880 = vcmask 1047558
    %v881 = vsel %vm880, %v879, %v877
    %882 = vrot.lane.b32.xlu0 %v881, 72
    %v883 = vpop.permute.xlu0 %882
    %vm884 = vcmask 15360
    %s885 = scalar_lea.vmem %s1, 28
    %886 = vst.msk [vmem:[%s885] sm:$0x1] %vm884, %v883
    %s887 = scalar_lea.vmem %s1, 59
    %888 = vst.msk [vmem:[%s887] sm:$0x2] %vm884, %v883
    %s889 = scalar_lea.vmem %s1, 90
    %890 = vst.msk [vmem:[%s889] sm:$0x4] %vm884, %v883
    %s891 = scalar_lea.vmem %s1, 121
    %892 = vst.msk [vmem:[%s891] sm:$0x8] %vm884, %v883
    %s893 = scalar_lea.vmem %s1, 152
    %894 = vst.msk [vmem:[%s893] sm:$0x10] %vm884, %v883
    %s895 = scalar_lea.vmem %s1, 183
    %896 = vst.msk [vmem:[%s895] sm:$0x20] %vm884, %v883
    %s897 = scalar_lea.vmem %s1, 214
    %898 = vst.msk [vmem:[%s897] sm:$0x40] %vm884, %v883
    %s899 = scalar_lea.vmem %s1, 245
    %900 = vst.msk [vmem:[%s899] sm:$0x80] %vm884, %v883
    %s901 = scalar_lea.vmem [#allocation0], 18
    %v902 = vld [vmem:[%s901] sm:$0x1]
    %903 = vrot.lane.b32.xlu0 %v902, 72
    %v904 = vpop.permute.xlu0 %903
    %vm905 = vcmask 15360
    %s906 = scalar_lea.vmem %s1, 284
    %907 = vst.msk [vmem:[%s906] sm:$0x1] %vm905, %v904
    %v908 = vld.sshfl [vmem:[#allocation0] sm:$0xff pattern:$0xaaa98210]
    %s909 = scalar_lea.vmem [#allocation0], 10
    %v910 = vld [vmem:[%s909] sm:$0xc0]
    %vm911 = vcmask 1047558
    %v912 = vsel %vm911, %v910, %v908
    %913 = vrot.lane.b32.xlu0 %v912, 70
    %v914 = vpop.permute.xlu0 %913
    %vm915 = vcmask 15360
    %s916 = scalar_lea.vmem %s1, 29
    %917 = vst.msk [vmem:[%s916] sm:$0x1] %vm915, %v914
    %s918 = scalar_lea.vmem %s1, 60
    %919 = vst.msk [vmem:[%s918] sm:$0x2] %vm915, %v914
    %s920 = scalar_lea.vmem %s1, 91
    %921 = vst.msk [vmem:[%s920] sm:$0x4] %vm915, %v914
    %s922 = scalar_lea.vmem %s1, 122
    %923 = vst.msk [vmem:[%s922] sm:$0x8] %vm915, %v914
    %s924 = scalar_lea.vmem %s1, 153
    %925 = vst.msk [vmem:[%s924] sm:$0x10] %vm915, %v914
    %s926 = scalar_lea.vmem %s1, 184
    %927 = vst.msk [vmem:[%s926] sm:$0x20] %vm915, %v914
    %s928 = scalar_lea.vmem %s1, 215
    %929 = vst.msk [vmem:[%s928] sm:$0x40] %vm915, %v914
    %s930 = scalar_lea.vmem %s1, 246
    %931 = vst.msk [vmem:[%s930] sm:$0x80] %vm915, %v914
    %s932 = scalar_lea.vmem [#allocation0], 18
    %v933 = vld [vmem:[%s932] sm:$0x1]
    %934 = vrot.lane.b32.xlu0 %v933, 70
    %v935 = vpop.permute.xlu0 %934
    %vm936 = vcmask 15360
    %s937 = scalar_lea.vmem %s1, 285
    %938 = vst.msk [vmem:[%s937] sm:$0x1] %vm936, %v935
    %v939 = vld.sshfl [vmem:[#allocation0] sm:$0xff pattern:$0xaaa98210]
    %s940 = scalar_lea.vmem [#allocation0], 10
    %v941 = vld [vmem:[%s940] sm:$0xc0]
    %vm942 = vcmask 1047558
    %v943 = vsel %vm942, %v941, %v939
    %944 = vrot.lane.b32.xlu0 %v943, 68
    %v945 = vpop.permute.xlu0 %944
    %vm946 = vcmask 15360
    %s947 = scalar_lea.vmem %s1, 30
    %948 = vst.msk [vmem:[%s947] sm:$0x1] %vm946, %v945
    %s949 = scalar_lea.vmem %s1, 61
    %950 = vst.msk [vmem:[%s949] sm:$0x2] %vm946, %v945
    %s951 = scalar_lea.vmem %s1, 92
    %952 = vst.msk [vmem:[%s951] sm:$0x4] %vm946, %v945
    %s953 = scalar_lea.vmem %s1, 123
    %954 = vst.msk [vmem:[%s953] sm:$0x8] %vm946, %v945
    %s955 = scalar_lea.vmem %s1, 154
    %956 = vst.msk [vmem:[%s955] sm:$0x10] %vm946, %v945
    %s957 = scalar_lea.vmem %s1, 185
    %958 = vst.msk [vmem:[%s957] sm:$0x20] %vm946, %v945
    %s959 = scalar_lea.vmem %s1, 216
    %960 = vst.msk [vmem:[%s959] sm:$0x40] %vm946, %v945
    %s961 = scalar_lea.vmem %s1, 247
    %962 = vst.msk [vmem:[%s961] sm:$0x80] %vm946, %v945
    %s963 = scalar_lea.vmem [#allocation0], 18
    %v964 = vld [vmem:[%s963] sm:$0x1]
    %965 = vrot.lane.b32.xlu0 %v964, 68
    %v966 = vpop.permute.xlu0 %965
    %vm967 = vcmask 15360
    %s968 = scalar_lea.vmem %s1, 286
    %969 = vst.msk [vmem:[%s968] sm:$0x1] %vm967, %v966
    %v970 = vld.sshfl [vmem:[#allocation0] sm:$0xff pattern:$0xaaa98210]
    %s971 = scalar_lea.vmem [#allocation0], 10
    %v972 = vld [vmem:[%s971] sm:$0xc0]
    %vm973 = vcmask 1047558
    %v974 = vsel %vm973, %v972, %v970
    %975 = vrot.lane.b32.xlu0 %v974, 66
    %v976 = vpop.permute.xlu0 %975
    %vm977 = vcmask 15360
    %s978 = scalar_lea.vmem %s1, 31
    %979 = vst.msk [vmem:[%s978] sm:$0x1] %vm977, %v976
    %s980 = scalar_lea.vmem %s1, 62
    %981 = vst.msk [vmem:[%s980] sm:$0x2] %vm977, %v976
    %s982 = scalar_lea.vmem %s1, 93
    %983 = vst.msk [vmem:[%s982] sm:$0x4] %vm977, %v976
    %s984 = scalar_lea.vmem %s1, 124
    %985 = vst.msk [vmem:[%s984] sm:$0x8] %vm977, %v976
    %s986 = scalar_lea.vmem %s1, 155
    %987 = vst.msk [vmem:[%s986] sm:$0x10] %vm977, %v976
    %s988 = scalar_lea.vmem %s1, 186
    %989 = vst.msk [vmem:[%s988] sm:$0x20] %vm977, %v976
    %s990 = scalar_lea.vmem %s1, 217
    %991 = vst.msk [vmem:[%s990] sm:$0x40] %vm977, %v976
    %s992 = scalar_lea.vmem %s1, 248
    %993 = vst.msk [vmem:[%s992] sm:$0x80] %vm977, %v976
    %s994 = scalar_lea.vmem [#allocation0], 18
    %v995 = vld [vmem:[%s994] sm:$0x1]
    %996 = vrot.lane.b32.xlu0 %v995, 66
    %v997 = vpop.permute.xlu0 %996
    %vm998 = vcmask 15360
    %s999 = scalar_lea.vmem %s1, 287
    %1000 = vst.msk [vmem:[%s999] sm:$0x1] %vm998, %v997

// kernel: depthwise_separable_conv_forward.1
$region0: #{depthwise_separable_conv_forward.1}
  #allocation0 [shape = 'u32[]', space=smem, size = 0x4, offset = 0x4, fixed_abs, tag = 'smem constant byte address 0x4 - core index']
  #allocation1 [shape = 'u32[144,128]{1,0:T(1,128)}', space=vmem, size = 0x12000, scoped, tag = 'internal scratch']
  %s0 = inlined_call_operand.vmem [shape: f32[2,16,18,32], index: 0, kind: input, shape index: {}, may-alias: {0,1,2}]
  %s1 = inlined_call_operand.vmem [shape: f32[2,16,18,32], index: 1, kind: input, shape index: {}, may-alias: {0,1,2}]
  %s2 = inlined_call_operand.vmem [shape: f32[2,16,18,32], index: 2, kind: input, shape index: {}, may-alias: {0,1,2}]
  %s3 = inlined_call_operand.vmem [shape: f32[2,9,32], index: 3, kind: input, shape index: {}]
  %s4 = inlined_call_operand.vmem [shape: f32[4,16,16,32], index: 4, kind: output, shape index: {}]
  %s5 = sld [smem:[#allocation0]]
  $region83: #{depthwise_separable_conv_forward.1} parent=0
    _
  %s7 = ssub.s32 1, %s5
  %s8 = scalar_select 0, %s7, %s5
  $region1: #{depthwise_separable_conv_forward.1} parent=0
    #allocation2 [shape = 'u8[262144]{0}', space=vmem, size = 0x40000, scoped, tag = 'output window, operand 0']
    loop: start=0, step=1, limit=6
    $region2: #{depthwise_separable_conv_forward.1} parent=1 // loop_pre_header
      _
    $region3: #{depthwise_separable_conv_forward.1} parent=1 // loop_header
      %s10 = sphi 0, %s14
      %p11 = scmp.ge.s32.totalorder %s10, 6
      %s17 = sphi 0, %s36
      %s18 = sphi 0, %s32
      %s19 = sphi 0, %s28
      %s20 = sphi 0, %s17
      %s21 = sphi 0, %s18
      %s22 = sphi 0, %s19
      %s23 = sphi 0, %s20
      %s24 = sphi 0, %s21
      %s25 = sphi 0, %s22
      %s43 = sphi 0, %s45
      %s46 = sphi 0, %s43
      %s47 = sphi 0, %s46
      %s63 = sphi 0, %s47
      %s81 = sphi 0, %s83
      %s84 = sphi 0, %s81
      %s85 = sphi 0, %s84
      %s101 = sphi 0, %s85
      %s119 = sphi 0, %s121
      %s122 = sphi 0, %s119
      %s123 = sphi 0, %s122
      %s139 = sphi 0, %s123
      %s145 = sphi 0, %s147
      %s148 = sphi 0, %s145
      %s149 = sphi 0, %s148
      %s165 = sphi 0, %s149
      %s175 = sphi 0, %s177
      %s178 = sphi 0, %s175
      %s179 = sphi 0, %s178
      %s195 = sphi 0, %s179
    $region4: #{depthwise_separable_conv_forward.1} parent=1 // loop_header_branch
      %13 = sbr.rel (%p11) target = $region8
    $region5: #{depthwise_separable_conv_forward.1} parent=1 // loop_body
      %s15 = ssub.s32 %s10, 1
      %s16 = ssub.s32 %s10, 2
      %s26 = sadd.s32 1, %s19
      %p27 = scmp.ge.s32.totalorder %s26, 2
      %s28 = scalar_select %p27, 0, %s26
      %s29 = sadd.s32 1, %s18
      %s30 = scalar_select %p27, %s29, %s18
      %p31 = scmp.ge.s32.totalorder %s30, 1
      %s32 = scalar_select %p31, 0, %s30
      %s33 = sadd.s32 1, %s17
      %s34 = scalar_select %p31, %s33, %s17
      %p35 = scmp.ge.s32.totalorder %s34, 2
      %s36 = scalar_select %p35, 0, %s34
      %s37 = ssub.s32 %s17, %s36
      %s38 = ssub.s32 %s19, %s28
      %s39 = sor.u32 %s37, %s38
      %s40 = ssub.s32 %s18, %s32
      %s41 = sor.u32 %s39, %s40
      %p42 = scmp.eq.s32.totalorder %s41, 0
      %s44 = sadd.s32 %s43, 1
      %s45 = scalar_select %p42, %s43, %s44
      %p48 = pneg %p42
      %p49 = scmp.eq.s32.totalorder %s10, 3
      %p50 = por %p48, %p49
      %p51 = scmp.ne.s32.totalorder %s43, %s46
      %p52 = scmp.eq.s32.totalorder %s10, 0
      %p53 = por %p51, %p52
      %p54 = scmp.ne.s32.totalorder %s43, %s46
      %p55 = scmp.eq.s32.totalorder %s15, 3
      %p56 = por %p54, %p55
      %p57 = scmp.ne.s32.totalorder %s46, %s47
      %p58 = scmp.eq.s32.totalorder %s15, 0
      %p59 = por %p57, %p58
      %p60 = scmp.ne.s32.totalorder %s46, %s47
      %p61 = scmp.eq.s32.totalorder %s16, 3
      %p62 = por %p60, %p61
      %p64 = scmp.ne.s32.totalorder %s47, %s63
      %p65 = scmp.eq.s32.totalorder %s16, 0
      %p66 = por %p64, %p65
      %s67 = smul.u32 %s19, 8
      %s68 = ssub.s32 %s67, 1
      %p69 = scmp.gt.s32.totalorder %s68, 0
      %s70 = scalar_select %p69, %s68, 0
      %s71 = smul.u32 %s28, 8
      %s72 = ssub.s32 %s71, 1
      %p73 = scmp.gt.s32.totalorder %s72, 0
      %s74 = scalar_select %p73, %s72, 0
      %s75 = ssub.s32 %s17, %s36
      %s76 = ssub.s32 %s70, %s74
      %s77 = sor.u32 %s75, %s76
      %s78 = ssub.s32 %s18, %s32
      %s79 = sor.u32 %s77, %s78
      %p80 = scmp.eq.s32.totalorder %s79, 0
      %s82 = sadd.s32 %s81, 1
      %s83 = scalar_select %p80, %s81, %s82
      %p86 = pneg %p80
      %p87 = scmp.eq.s32.totalorder %s10, 3
      %p88 = por %p86, %p87
      %p89 = scmp.ne.s32.totalorder %s81, %s84
      %p90 = scmp.eq.s32.totalorder %s10, 0
      %p91 = por %p89, %p90
      %p92 = scmp.ne.s32.totalorder %s81, %s84
      %p93 = scmp.eq.s32.totalorder %s15, 3
      %p94 = por %p92, %p93
      %p95 = scmp.ne.s32.totalorder %s84, %s85
      %p96 = scmp.eq.s32.totalorder %s15, 0
      %p97 = por %p95, %p96
      %p98 = scmp.ne.s32.totalorder %s84, %s85
      %p99 = scmp.eq.s32.totalorder %s16, 3
      %p100 = por %p98, %p99
      %p102 = scmp.ne.s32.totalorder %s85, %s101
      %p103 = scmp.eq.s32.totalorder %s16, 0
      %p104 = por %p102, %p103
      %s105 = sadd.s32 %s19, 1
      %s106 = smul.u32 %s105, 8
      %p107 = scmp.lt.s32.totalorder %s106, 15
      %s108 = scalar_select %p107, %s106, 15
      %s109 = sadd.s32 %s28, 1
      %s110 = smul.u32 %s109, 8
      %p111 = scmp.lt.s32.totalorder %s110, 15
      %s112 = scalar_select %p111, %s110, 15
      %s113 = ssub.s32 %s17, %s36
      %s114 = ssub.s32 %s108, %s112
      %s115 = sor.u32 %s113, %s114
      %s116 = ssub.s32 %s18, %s32
      %s117 = sor.u32 %s115, %s116
      %p118 = scmp.eq.s32.totalorder %s117, 0
      %s120 = sadd.s32 %s119, 1
      %s121 = scalar_select %p118, %s119, %s120
      %p124 = pneg %p118
      %p125 = scmp.eq.s32.totalorder %s10, 3
      %p126 = por %p124, %p125
      %p127 = scmp.ne.s32.totalorder %s119, %s122
      %p128 = scmp.eq.s32.totalorder %s10, 0
      %p129 = por %p127, %p128
      %p130 = scmp.ne.s32.totalorder %s119, %s122
      %p131 = scmp.eq.s32.totalorder %s15, 3
      %p132 = por %p130, %p131
      %p133 = scmp.ne.s32.totalorder %s122, %s123
      %p134 = scmp.eq.s32.totalorder %s15, 0
      %p135 = por %p133, %p134
      %p136 = scmp.ne.s32.totalorder %s122, %s123
      %p137 = scmp.eq.s32.totalorder %s16, 3
      %p138 = por %p136, %p137
      %p140 = scmp.ne.s32.totalorder %s123, %s139
      %p141 = scmp.eq.s32.totalorder %s16, 0
      %p142 = por %p140, %p141
      %s143 = ssub.s32 %s18, %s32
      %p144 = scmp.eq.s32.totalorder %s143, 0
      %s146 = sadd.s32 %s145, 1
      %s147 = scalar_select %p144, %s145, %s146
      %p150 = pneg %p144
      %p151 = scmp.eq.s32.totalorder %s10, 3
      %p152 = por %p150, %p151
      %p153 = scmp.ne.s32.totalorder %s145, %s148
      %p154 = scmp.eq.s32.totalorder %s10, 0
      %p155 = por %p153, %p154
      %p156 = scmp.ne.s32.totalorder %s145, %s148
      %p157 = scmp.eq.s32.totalorder %s15, 3
      %p158 = por %p156, %p157
      %p159 = scmp.ne.s32.totalorder %s148, %s149
      %p160 = scmp.eq.s32.totalorder %s15, 0
      %p161 = por %p159, %p160
      %p162 = scmp.ne.s32.totalorder %s148, %s149
      %p163 = scmp.eq.s32.totalorder %s16, 3
      %p164 = por %p162, %p163
      %p166 = scmp.ne.s32.totalorder %s149, %s165
      %p167 = scmp.eq.s32.totalorder %s16, 0
      %p168 = por %p166, %p167
      %s169 = ssub.s32 %s17, %s36
      %s170 = ssub.s32 %s19, %s28
      %s171 = sor.u32 %s169, %s170
      %s172 = ssub.s32 %s18, %s32
      %s173 = sor.u32 %s171, %s172
      %p174 = scmp.eq.s32.totalorder %s173, 0
      %s176 = sadd.s32 %s175, 1
      %s177 = scalar_select %p174, %s175, %s176
      %p180 = pneg %p174
      %p181 = scmp.eq.s32.totalorder %s10, 3
      %p182 = por %p180, %p181
      %p183 = scmp.ne.s32.totalorder %s175, %s178
      %p184 = scmp.eq.s32.totalorder %s10, 0
      %p185 = por %p183, %p184
      %p186 = scmp.ne.s32.totalorder %s175, %s178
      %p187 = scmp.eq.s32.totalorder %s15, 3
      %p188 = por %p186, %p187
      %p189 = scmp.ne.s32.totalorder %s178, %s179
      %p190 = scmp.eq.s32.totalorder %s15, 0
      %p191 = por %p189, %p190
      %p192 = scmp.ne.s32.totalorder %s178, %s179
      %p193 = scmp.eq.s32.totalorder %s16, 3
      %p194 = por %p192, %p193
      %p196 = scmp.ne.s32.totalorder %s179, %s195
      %p197 = scmp.eq.s32.totalorder %s16, 0
      %p198 = por %p196, %p197
      %p199 = scmp.le.s32.totalorder 1, %s10
      %p200 = scmp.lt.s32.totalorder %s10, 5
      %p201 = pnand %p199, %p200
      %p202 = pneg %p201
      // Predicated region
      $region9: #{depthwise_separable_conv_forward.1} parent=5 // pred_check
        _
      $region10: #{depthwise_separable_conv_forward.1} parent=5 // pred_check_branch
        %204 = sbr.rel (%p201) target = $region12
      $region11: #{depthwise_separable_conv_forward.1} parent=5 // pred_region
        %s205 = ssub.s32 %s10, 1
        // Predicated region
        $region13: #{depthwise_separable_conv_forward.1} parent=11 // pred_check
          %p206 = pneg %p161
        $region14: #{depthwise_separable_conv_forward.1} parent=11 // pred_check_branch
          %208 = sbr.rel (%p206) target = $region16
        $region15: #{depthwise_separable_conv_forward.1} parent=11 // pred_region
          %p209 = scmp.lt.s32.totalorder %s21, 0
          %s210 = scalar_select %p209, %s21, 0
          %s211 = smul.addr %s210, 8
          %s212 = scalar_lea.vmem %s3, %s211
        $region16: #{depthwise_separable_conv_forward.1} parent=11 // pred_fallthru
          _
      $region12: #{depthwise_separable_conv_forward.1} parent=5 // pred_fallthru
        _
      %p213 = scmp.lt.s32.totalorder %s10, 4
      // Predicated region
      $region17: #{depthwise_separable_conv_forward.1} parent=5 // pred_check
        %p214 = pneg %p213
      $region18: #{depthwise_separable_conv_forward.1} parent=5 // pred_check_branch
        %216 = sbr.rel (%p214) target = $region20
      $region19: #{depthwise_separable_conv_forward.1} parent=5 // pred_region
        // Predicated region
        $region21: #{depthwise_separable_conv_forward.1} parent=19 // pred_check
          %p217 = pneg %p53
        $region22: #{depthwise_separable_conv_forward.1} parent=19 // pred_check_branch
          %219 = sbr.rel (%p217) target = $region24
        $region23: #{depthwise_separable_conv_forward.1} parent=19 // pred_region
          %s220 = smul.u32 8, %s19
          %p221 = scmp.lt.s32.totalorder %s17, 1
          %s222 = scalar_select %p221, %s17, 1
          %p223 = scmp.lt.s32.totalorder %s220, 15
          %s224 = scalar_select %p223, %s220, 15
          %p225 = scmp.lt.s32.totalorder %s18, 0
          %s226 = scalar_select %p225, %s18, 0
          %s227 = smul.addr %s224, 3
          %s228 = sadd.s32 %s226, %s227
          %s229 = smul.addr %s222, 48
          %s230 = sadd.s32 %s228, %s229
          %s231 = smul.addr %s230, 8
          %s232 = scalar_lea.vmem %s0, %s231
          %s233 = smul.u32 8, %s19
        $region24: #{depthwise_separable_conv_forward.1} parent=19 // pred_fallthru
          _
        // Predicated region
        $region25: #{depthwise_separable_conv_forward.1} parent=19 // pred_check
          %p234 = pneg %p91
        $region26: #{depthwise_separable_conv_forward.1} parent=19 // pred_check_branch
          %236 = sbr.rel (%p234) target = $region28
        $region27: #{depthwise_separable_conv_forward.1} parent=19 // pred_region
          %s237 = smul.u32 %s19, 8
          %s238 = ssub.s32 %s237, 1
          %p239 = scmp.gt.s32.totalorder %s238, 0
          %s240 = scalar_select %p239, %s238, 0
          %p241 = scmp.lt.s32.totalorder %s17, 1
          %s242 = scalar_select %p241, %s17, 1
          %p243 = scmp.lt.s32.totalorder %s240, 15
          %s244 = scalar_select %p243, %s240, 15
          %p245 = scmp.lt.s32.totalorder %s18, 0
          %s246 = scalar_select %p245, %s18, 0
          %s247 = smul.addr %s244, 3
          %s248 = sadd.s32 %s246, %s247
          %s249 = smul.addr %s242, 48
          %s250 = sadd.s32 %s248, %s249
          %s251 = smul.addr %s250, 8
          %s252 = scalar_lea.vmem %s1, %s251
          %s253 = smul.u32 %s19, 8
          %s254 = ssub.s32 %s253, 1
          %p255 = scmp.gt.s32.totalorder %s254, 0
          %s256 = scalar_select %p255, %s254, 0
        $region28: #{depthwise_separable_conv_forward.1} parent=19 // pred_fallthru
          _
        // Predicated region
        $region29: #{depthwise_separable_conv_forward.1} parent=19 // pred_check
          %p257 = pneg %p129
        $region30: #{depthwise_separable_conv_forward.1} parent=19 // pred_check_branch
          %259 = sbr.rel (%p257) target = $region32
        $region31: #{depthwise_separable_conv_forward.1} parent=19 // pred_region
          %s260 = sadd.s32 %s19, 1
          %s261 = smul.u32 %s260, 8
          %p262 = scmp.lt.s32.totalorder %s261, 15
          %s263 = scalar_select %p262, %s261, 15
          %p264 = scmp.lt.s32.totalorder %s17, 1
          %s265 = scalar_select %p264, %s17, 1
          %p266 = scmp.lt.s32.totalorder %s263, 15
          %s267 = scalar_select %p266, %s263, 15
          %p268 = scmp.lt.s32.totalorder %s18, 0
          %s269 = scalar_select %p268, %s18, 0
          %s270 = smul.addr %s267, 3
          %s271 = sadd.s32 %s269, %s270
          %s272 = smul.addr %s265, 48
          %s273 = sadd.s32 %s271, %s272
          %s274 = smul.addr %s273, 8
          %s275 = scalar_lea.vmem %s2, %s274
          %s276 = sadd.s32 %s19, 1
          %s277 = smul.u32 %s276, 8
          %p278 = scmp.lt.s32.totalorder %s277, 15
          %s279 = scalar_select %p278, %s277, 15
        $region32: #{depthwise_separable_conv_forward.1} parent=19 // pred_fallthru
          _
      $region20: #{depthwise_separable_conv_forward.1} parent=5 // pred_fallthru
        _
      %p280 = scmp.le.s32.totalorder 1, %s10
      %p281 = scmp.lt.s32.totalorder %s10, 5
      %p282 = pnand %p280, %p281
      %p283 = pneg %p282
      // Predicated region
      $region33: #{depthwise_separable_conv_forward.1} parent=5 // pred_check
        _
      $region34: #{depthwise_separable_conv_forward.1} parent=5 // pred_check_branch
        %285 = sbr.rel (%p282) target = $region36
      $region35: #{depthwise_separable_conv_forward.1} parent=5 // pred_region
        %s286 = ssub.s32 %s10, 1
        %s287 = smul.u32 8, %s22
        %p288 = scmp.lt.s32.totalorder %s20, 1
        %s289 = scalar_select %p288, %s20, 1
        %p290 = scmp.lt.s32.totalorder %s287, 15
        %s291 = scalar_select %p290, %s287, 15
        %p292 = scmp.lt.s32.totalorder %s21, 0
        %s293 = scalar_select %p292, %s21, 0
        %s294 = smul.addr %s291, 3
        %s295 = sadd.s32 %s293, %s294
        %s296 = smul.addr %s289, 48
        %s297 = sadd.s32 %s295, %s296
        %s298 = smul.addr %s297, 8
        %s299 = scalar_lea.vmem %s0, %s298
        %p300 = pneg %p59
        %p301 = pneg %p56
        %s302 = smul.u32 %s22, 8
        %s303 = ssub.s32 %s302, 1
        %p304 = scmp.gt.s32.totalorder %s303, 0
        %s305 = scalar_select %p304, %s303, 0
        %p306 = scmp.lt.s32.totalorder %s20, 1
        %s307 = scalar_select %p306, %s20, 1
        %p308 = scmp.lt.s32.totalorder %s305, 15
        %s309 = scalar_select %p308, %s305, 15
        %p310 = scmp.lt.s32.totalorder %s21, 0
        %s311 = scalar_select %p310, %s21, 0
        %s312 = smul.addr %s309, 3
        %s313 = sadd.s32 %s311, %s312
        %s314 = smul.addr %s307, 48
        %s315 = sadd.s32 %s313, %s314
        %s316 = smul.addr %s315, 8
        %s317 = scalar_lea.vmem %s1, %s316
        %p318 = pneg %p97
        %p319 = pneg %p94
        %s320 = sadd.s32 %s22, 1
        %s321 = smul.u32 %s320, 8
        %p322 = scmp.lt.s32.totalorder %s321, 15
        %s323 = scalar_select %p322, %s321, 15
        %p324 = scmp.lt.s32.totalorder %s20, 1
        %s325 = scalar_select %p324, %s20, 1
        %p326 = scmp.lt.s32.totalorder %s323, 15
        %s327 = scalar_select %p326, %s323, 15
        %p328 = scmp.lt.s32.totalorder %s21, 0
        %s329 = scalar_select %p328, %s21, 0
        %s330 = smul.addr %s327, 3
        %s331 = sadd.s32 %s329, %s330
        %s332 = smul.addr %s325, 48
        %s333 = sadd.s32 %s331, %s332
        %s334 = smul.addr %s333, 8
        %s335 = scalar_lea.vmem %s2, %s334
        %p336 = pneg %p135
        %p337 = pneg %p132
        %p338 = scmp.lt.s32.totalorder %s21, 0
        %s339 = scalar_select %p338, %s21, 0
        %s340 = smul.addr %s339, 8
        %s341 = scalar_lea.vmem %s3, %s340
        %p342 = pneg %p161
        %p343 = pneg %p158
        %p344 = pneg %p191
        %p345 = pneg %p188
        %s346 = sand.u32 %s178, 1
        %s347 = sand.u32 %s178, 1
        %s348 = smul.addr %s347, 256
        %s349 = scalar_lea.vmem [#allocation2], %s348
        %s350 = smul.u32 8, %s22
        %p351 = scmp.lt.s32.totalorder %s20, 1
        %s352 = scalar_select %p351, %s20, 1
        %p353 = scmp.lt.s32.totalorder %s350, 15
        %s354 = scalar_select %p353, %s350, 15
        %p355 = scmp.lt.s32.totalorder %s21, 0
        %s356 = scalar_select %p355, %s21, 0
        %s357 = smul.addr %s354, 3
        %s358 = sadd.s32 %s356, %s357
        %s359 = smul.addr %s352, 48
        %s360 = sadd.s32 %s358, %s359
        %s361 = smul.addr %s360, 8
        %s362 = scalar_lea.vmem %s0, %s361
        %s363 = smul.u32 8, %s22
        %s364 = smul.u32 %s22, 8
        %s365 = ssub.s32 %s364, 1
        %p366 = scmp.gt.s32.totalorder %s365, 0
        %s367 = scalar_select %p366, %s365, 0
        %p368 = scmp.lt.s32.totalorder %s20, 1
        %s369 = scalar_select %p368, %s20, 1
        %p370 = scmp.lt.s32.totalorder %s367, 15
        %s371 = scalar_select %p370, %s367, 15
        %p372 = scmp.lt.s32.totalorder %s21, 0
        %s373 = scalar_select %p372, %s21, 0
        %s374 = smul.addr %s371, 3
        %s375 = sadd.s32 %s373, %s374
        %s376 = smul.addr %s369, 48
        %s377 = sadd.s32 %s375, %s376
        %s378 = smul.addr %s377, 8
        %s379 = scalar_lea.vmem %s1, %s378
        %s380 = smul.u32 %s22, 8
        %s381 = ssub.s32 %s380, 1
        %p382 = scmp.gt.s32.totalorder %s381, 0
        %s383 = scalar_select %p382, %s381, 0
        %s384 = sadd.s32 %s22, 1
        %s385 = smul.u32 %s384, 8
        %p386 = scmp.lt.s32.totalorder %s385, 15
        %s387 = scalar_select %p386, %s385, 15
        %p388 = scmp.lt.s32.totalorder %s20, 1
        %s389 = scalar_select %p388, %s20, 1
        %p390 = scmp.lt.s32.totalorder %s387, 15
        %s391 = scalar_select %p390, %s387, 15
        %p392 = scmp.lt.s32.totalorder %s21, 0
        %s393 = scalar_select %p392, %s21, 0
        %s394 = smul.addr %s391, 3
        %s395 = sadd.s32 %s393, %s394
        %s396 = smul.addr %s389, 48
        %s397 = sadd.s32 %s395, %s396
        %s398 = smul.addr %s397, 8
        %s399 = scalar_lea.vmem %s2, %s398
        %s400 = sadd.s32 %s22, 1
        %s401 = smul.u32 %s400, 8
        %p402 = scmp.lt.s32.totalorder %s401, 15
        %s403 = scalar_select %p402, %s401, 15
        %p404 = scmp.lt.s32.totalorder %s21, 0
        %s405 = scalar_select %p404, %s21, 0
        %s406 = smul.addr %s405, 8
        %s407 = scalar_lea.vmem %s3, %s406
        %s408 = smul.u32 2, %s20
        %s409 = smul.u32 8, %s22
        %v410 = vld [vmem:[%s407] sm:$0xff]
        %v411 = vld [vmem:[%s407 + $0x8] sm:$0x1]
        %v412 = vld [vmem:[%s407 + $0x10] sm:$0xff]
        %v413 = vld [vmem:[%s407 + $0x18] sm:$0x1]
        %p414 = scmp.gt.s32.totalorder %s22, 0
        %s415 = scalar_select %p414, 1, 0
        %s416 = scvt.s32.f32 %s415
        %p417 = scmp.lt.s32.totalorder %s22, 1
        %s418 = scalar_select %p417, 1, 0
        %s419 = scvt.s32.f32 %s418
        %v420 = vld [vmem:[%s379] sm:$0xff]
        %v421 = vld [vmem:[%s379 + $0x8] sm:$0xff]
        %v422 = vld [vmem:[%s379 + $0x10] sm:$0x3]
        %v423 = vstv %s416
        %v424 = vmul.f32 %v420, %v423
        %v425 = vmul.f32 %v421, %v423
        %v426 = vmul.f32 %v422, %v423
        %v427 = vld [vmem:[%s399] sm:$0xff]
        %v428 = vld [vmem:[%s399 + $0x8] sm:$0xff]
        %v429 = vld [vmem:[%s399 + $0x10] sm:$0x3]
        %v430 = vstv %s419
        %v431 = vmul.f32 %v427, %v430
        %v432 = vmul.f32 %v428, %v430
        %v433 = vmul.f32 %v429, %v430
        %v434 = vld [vmem:[%s362] sm:$0xff]
        %v435 = vld [vmem:[%s362 + $0x8] sm:$0xff]
        %v436 = vld [vmem:[%s362 + $0x10] sm:$0x3]
        %v437 = vld [vmem:[%s362 + $0x18] sm:$0xff]
        %v438 = vld [vmem:[%s362 + $0x20] sm:$0xff]
        %v439 = vld [vmem:[%s362 + $0x28] sm:$0x3]
        %v440 = vld [vmem:[%s362 + $0x30] sm:$0xff]
        %v441 = vld [vmem:[%s362 + $0x38] sm:$0xff]
        %v442 = vld [vmem:[%s362 + $0x40] sm:$0x3]
        %v443 = vld [vmem:[%s362 + $0x48] sm:$0xff]
        %v444 = vld [vmem:[%s362 + $0x50] sm:$0xff]
        %v445 = vld [vmem:[%s362 + $0x58] sm:$0x3]
        %v446 = vld [vmem:[%s362 + $0x60] sm:$0xff]
        %v447 = vld [vmem:[%s362 + $0x68] sm:$0xff]
        %v448 = vld [vmem:[%s362 + $0x70] sm:$0x3]
        %v449 = vld [vmem:[%s362 + $0x78] sm:$0xff]
        %v450 = vld [vmem:[%s362 + $0x80] sm:$0xff]
        %v451 = vld [vmem:[%s362 + $0x88] sm:$0x3]
        %v452 = vld [vmem:[%s362 + $0x90] sm:$0xff]
        %v453 = vld [vmem:[%s362 + $0x98] sm:$0xff]
        %v454 = vld [vmem:[%s362 + $0xa0] sm:$0x3]
        %v455 = vld [vmem:[%s362 + $0xa8] sm:$0xff]
        %v456 = vld [vmem:[%s362 + $0xb0] sm:$0xff]
        %v457 = vld [vmem:[%s362 + $0xb8] sm:$0x3]
        %v458 = vlaneseq
        %v459 = vshrl.u32 %v458, 7
        %v460 = vsub.s32 0, %v459
        %v461 = vrot.slane %v410, %v460
        %v462 = vmul.f32 %v424, %v461
        %v463 = vmul.f32 %v425, %v461
        %v464 = vlaneseq
        %v465 = vshrl.u32 %v464, 7
        %v466 = vsub.s32 1, %v465
        %v467 = vrot.slane %v410, %v466
        %v468 = vmul.f32 %v424, %v467
        %v469 = vmul.f32 %v425, %v467
        %v470 = vmul.f32 %v426, %v467
        %vm474 = vcmask 1046528
        %v475 = vrot.slane %v468, 1
        %v476 = vrot.slane %v469, 1
        %v477 = vsel %vm474, %v475, %v476
        %v478 = vrot.slane %v470, 1
        %v479 = vsel %vm474, %v476, %v478
        %v482 = vadd.f32 %v462, %v477
        %v483 = vadd.f32 %v463, %v479
        %v484 = vlaneseq
        %v485 = vshrl.u32 %v484, 7
        %v486 = vsub.s32 2, %v485
        %v487 = vrot.slane %v410, %v486
        %v488 = vmul.f32 %v424, %v487
        %v489 = vmul.f32 %v425, %v487
        %v490 = vmul.f32 %v426, %v487
        %vm494 = vcmask 1045504
        %v495 = vrot.slane %v488, 2
        %v496 = vrot.slane %v489, 2
        %v497 = vsel %vm494, %v495, %v496
        %v498 = vrot.slane %v490, 2
        %v499 = vsel %vm494, %v496, %v498
        %v502 = vadd.f32 %v482, %v497
        %v503 = vadd.f32 %v483, %v499
        %v504 = vlaneseq
        %v505 = vshrl.u32 %v504, 7
        %v506 = vsub.s32 3, %v505
        %v507 = vrot.slane %v410, %v506
        %v508 = vmul.f32 %v434, %v507
        %v509 = vmul.f32 %v435, %v507
        %v510 = vadd.f32 %v502, %v508
        %v511 = vadd.f32 %v503, %v509
        %v512 = vlaneseq
        %v513 = vshrl.u32 %v512, 7
        %v514 = vsub.s32 4, %v513
        %v515 = vrot.slane %v410, %v514
        %v516 = vmul.f32 %v434, %v515
        %v517 = vmul.f32 %v435, %v515
        %v518 = vmul.f32 %v436, %v515
        %v522 = vrot.slane %v516, 1
        %v523 = vrot.slane %v517, 1
        %v524 = vsel %vm474, %v522, %v523
        %v525 = vrot.slane %v518, 1
        %v526 = vsel %vm474, %v523, %v525
        %v529 = vadd.f32 %v510, %v524
        %v530 = vadd.f32 %v511, %v526
        %v531 = vlaneseq
        %v532 = vshrl.u32 %v531, 7
        %v533 = vsub.s32 5, %v532
        %v534 = vrot.slane %v410, %v533
        %v535 = vmul.f32 %v434, %v534
        %v536 = vmul.f32 %v435, %v534
        %v537 = vmul.f32 %v436, %v534
        %v541 = vrot.slane %v535, 2
        %v542 = vrot.slane %v536, 2
        %v543 = vsel %vm494, %v541, %v542
        %v544 = vrot.slane %v537, 2
        %v545 = vsel %vm494, %v542, %v544
        %v548 = vadd.f32 %v529, %v543
        %v549 = vadd.f32 %v530, %v545
        %v550 = vlaneseq
        %v551 = vshrl.u32 %v550, 7
        %v552 = vsub.s32 6, %v551
        %v553 = vrot.slane %v410, %v552
        %v554 = vmul.f32 %v437, %v553
        %v555 = vmul.f32 %v438, %v553
        %v556 = vadd.f32 %v548, %v554
        %v557 = vadd.f32 %v549, %v555
        %v558 = vlaneseq
        %v559 = vshrl.u32 %v558, 7
        %v560 = vsub.s32 7, %v559
        %v561 = vrot.slane %v410, %v560
        %v562 = vmul.f32 %v437, %v561
        %v563 = vmul.f32 %v438, %v561
        %v564 = vmul.f32 %v439, %v561
        %v568 = vrot.slane %v562, 1
        %v569 = vrot.slane %v563, 1
        %v570 = vsel %vm474, %v568, %v569
        %v571 = vrot.slane %v564, 1
        %v572 = vsel %vm474, %v569, %v571
        %v575 = vadd.f32 %v556, %v570
        %v576 = vadd.f32 %v557, %v572
        %v577 = vlaneseq
        %v578 = vshrl.u32 %v577, 7
        %v579 = vsub.s32 0, %v578
        %v580 = vrot.slane %v411, %v579
        %v581 = vmul.f32 %v437, %v580
        %v582 = vmul.f32 %v438, %v580
        %v583 = vmul.f32 %v439, %v580
        %v587 = vrot.slane %v581, 2
        %v588 = vrot.slane %v582, 2
        %v589 = vsel %vm494, %v587, %v588
        %v590 = vrot.slane %v583, 2
        %v591 = vsel %vm494, %v588, %v590
        %v594 = vadd.f32 %v575, %v589
        %v595 = vadd.f32 %v576, %v591
        %vm596 = vcmask 261120
        %597 = vst.msk [vmem:[%s349] sm:$0xff] %vm596, %v594
        %598 = vst.msk [vmem:[%s349 + $0x8] sm:$0xff] %vm596, %v595
        %v599 = vlaneseq
        %v600 = vshrl.u32 %v599, 7
        %v601 = vsub.s32 0, %v600
        %v602 = vrot.slane %v412, %v601
        %v603 = vmul.f32 %v424, %v602
        %v604 = vmul.f32 %v425, %v602
        %v605 = vlaneseq
        %v606 = vshrl.u32 %v605, 7
        %v607 = vsub.s32 1, %v606
        %v608 = vrot.slane %v412, %v607
        %v609 = vmul.f32 %v424, %v608
        %v610 = vmul.f32 %v425, %v608
        %v611 = vmul.f32 %v426, %v608
        %v615 = vrot.slane %v609, 1
        %v616 = vrot.slane %v610, 1
        %v617 = vsel %vm474, %v615, %v616
        %v618 = vrot.slane %v611, 1
        %v619 = vsel %vm474, %v616, %v618
        %v622 = vadd.f32 %v603, %v617
        %v623 = vadd.f32 %v604, %v619
        %v624 = vlaneseq
        %v625 = vshrl.u32 %v624, 7
        %v626 = vsub.s32 2, %v625
        %v627 = vrot.slane %v412, %v626
        %v628 = vmul.f32 %v424, %v627
        %v629 = vmul.f32 %v425, %v627
        %v630 = vmul.f32 %v426, %v627
        %v634 = vrot.slane %v628, 2
        %v635 = vrot.slane %v629, 2
        %v636 = vsel %vm494, %v634, %v635
        %v637 = vrot.slane %v630, 2
        %v638 = vsel %vm494, %v635, %v637
        %v641 = vadd.f32 %v622, %v636
        %v642 = vadd.f32 %v623, %v638
        %v643 = vlaneseq
        %v644 = vshrl.u32 %v643, 7
        %v645 = vsub.s32 3, %v644
        %v646 = vrot.slane %v412, %v645
        %v647 = vmul.f32 %v434, %v646
        %v648 = vmul.f32 %v435, %v646
        %v649 = vadd.f32 %v641, %v647
        %v650 = vadd.f32 %v642, %v648
        %v651 = vlaneseq
        %v652 = vshrl.u32 %v651, 7
        %v653 = vsub.s32 4, %v652
        %v654 = vrot.slane %v412, %v653
        %v655 = vmul.f32 %v434, %v654
        %v656 = vmul.f32 %v435, %v654
        %v657 = vmul.f32 %v436, %v654
        %v661 = vrot.slane %v655, 1
        %v662 = vrot.slane %v656, 1
        %v663 = vsel %vm474, %v661, %v662
        %v664 = vrot.slane %v657, 1
        %v665 = vsel %vm474, %v662, %v664
        %v668 = vadd.f32 %v649, %v663
        %v669 = vadd.f32 %v650, %v665
        %v670 = vlaneseq
        %v671 = vshrl.u32 %v670, 7
        %v672 = vsub.s32 5, %v671
        %v673 = vrot.slane %v412, %v672
        %v674 = vmul.f32 %v434, %v673
        %v675 = vmul.f32 %v435, %v673
        %v676 = vmul.f32 %v436, %v673
        %v680 = vrot.slane %v674, 2
        %v681 = vrot.slane %v675, 2
        %v682 = vsel %vm494, %v680, %v681
        %v683 = vrot.slane %v676, 2
        %v684 = vsel %vm494, %v681, %v683
        %v687 = vadd.f32 %v668, %v682
        %v688 = vadd.f32 %v669, %v684
        %v689 = vlaneseq
        %v690 = vshrl.u32 %v689, 7
        %v691 = vsub.s32 6, %v690
        %v692 = vrot.slane %v412, %v691
        %v693 = vmul.f32 %v437, %v692
        %v694 = vmul.f32 %v438, %v692
        %v695 = vadd.f32 %v687, %v693
        %v696 = vadd.f32 %v688, %v694
        %v697 = vlaneseq
        %v698 = vshrl.u32 %v697, 7
        %v699 = vsub.s32 7, %v698
        %v700 = vrot.slane %v412, %v699
        %v701 = vmul.f32 %v437, %v700
        %v702 = vmul.f32 %v438, %v700
        %v703 = vmul.f32 %v439, %v700
        %v707 = vrot.slane %v701, 1
        %v708 = vrot.slane %v702, 1
        %v709 = vsel %vm474, %v707, %v708
        %v710 = vrot.slane %v703, 1
        %v711 = vsel %vm474, %v708, %v710
        %v714 = vadd.f32 %v695, %v709
        %v715 = vadd.f32 %v696, %v711
        %v716 = vlaneseq
        %v717 = vshrl.u32 %v716, 7
        %v718 = vsub.s32 0, %v717
        %v719 = vrot.slane %v413, %v718
        %v720 = vmul.f32 %v437, %v719
        %v721 = vmul.f32 %v438, %v719
        %v722 = vmul.f32 %v439, %v719
        %v726 = vrot.slane %v720, 2
        %v727 = vrot.slane %v721, 2
        %v728 = vsel %vm494, %v726, %v727
        %v729 = vrot.slane %v722, 2
        %v730 = vsel %vm494, %v727, %v729
        %v733 = vadd.f32 %v714, %v728
        %v734 = vadd.f32 %v715, %v730
        %s735 = scalar_lea.vmem %s349, 128 [#allocation2]
        %736 = vst.msk [vmem:[%s735] sm:$0xff] %vm596, %v733
        %737 = vst.msk [vmem:[%s735 + $0x8] sm:$0xff] %vm596, %v734
        %v738 = vmul.f32 %v434, %v461
        %v739 = vmul.f32 %v435, %v461
        %v740 = vmul.f32 %v434, %v467
        %v741 = vmul.f32 %v435, %v467
        %v742 = vmul.f32 %v436, %v467
        %v746 = vrot.slane %v740, 1
        %v747 = vrot.slane %v741, 1
        %v748 = vsel %vm474, %v746, %v747
        %v749 = vrot.slane %v742, 1
        %v750 = vsel %vm474, %v747, %v749
        %v753 = vadd.f32 %v738, %v748
        %v754 = vadd.f32 %v739, %v750
        %v755 = vmul.f32 %v434, %v487
        %v756 = vmul.f32 %v435, %v487
        %v757 = vmul.f32 %v436, %v487
        %v761 = vrot.slane %v755, 2
        %v762 = vrot.slane %v756, 2
        %v763 = vsel %vm494, %v761, %v762
        %v764 = vrot.slane %v757, 2
        %v765 = vsel %vm494, %v762, %v764
        %v768 = vadd.f32 %v753, %v763
        %v769 = vadd.f32 %v754, %v765
        %v770 = vmul.f32 %v437, %v507
        %v771 = vmul.f32 %v438, %v507
        %v772 = vadd.f32 %v768, %v770
        %v773 = vadd.f32 %v769, %v771
        %v774 = vmul.f32 %v437, %v515
        %v775 = vmul.f32 %v438, %v515
        %v776 = vmul.f32 %v439, %v515
        %v780 = vrot.slane %v774, 1
        %v781 = vrot.slane %v775, 1
        %v782 = vsel %vm474, %v780, %v781
        %v783 = vrot.slane %v776, 1
        %v784 = vsel %vm474, %v781, %v783
        %v787 = vadd.f32 %v772, %v782
        %v788 = vadd.f32 %v773, %v784
        %v789 = vmul.f32 %v437, %v534
        %v790 = vmul.f32 %v438, %v534
        %v791 = vmul.f32 %v439, %v534
        %v795 = vrot.slane %v789, 2
        %v796 = vrot.slane %v790, 2
        %v797 = vsel %vm494, %v795, %v796
        %v798 = vrot.slane %v791, 2
        %v799 = vsel %vm494, %v796, %v798
        %v802 = vadd.f32 %v787, %v797
        %v803 = vadd.f32 %v788, %v799
        %v804 = vmul.f32 %v440, %v553
        %v805 = vmul.f32 %v441, %v553
        %v806 = vadd.f32 %v802, %v804
        %v807 = vadd.f32 %v803, %v805
        %v808 = vmul.f32 %v440, %v561
        %v809 = vmul.f32 %v441, %v561
        %v810 = vmul.f32 %v442, %v561
        %v814 = vrot.slane %v808, 1
        %v815 = vrot.slane %v809, 1
        %v816 = vsel %vm474, %v814, %v815
        %v817 = vrot.slane %v810, 1
        %v818 = vsel %vm474, %v815, %v817
        %v821 = vadd.f32 %v806, %v816
        %v822 = vadd.f32 %v807, %v818
        %v823 = vmul.f32 %v440, %v580
        %v824 = vmul.f32 %v441, %v580
        %v825 = vmul.f32 %v442, %v580
        %v829 = vrot.slane %v823, 2
        %v830 = vrot.slane %v824, 2
        %v831 = vsel %vm494, %v829, %v830
        %v832 = vrot.slane %v825, 2
        %v833 = vsel %vm494, %v830, %v832
        %v836 = vadd.f32 %v821, %v831
        %v837 = vadd.f32 %v822, %v833
        %s838 = scalar_lea.vmem %s349, 16 [#allocation2]
        %839 = vst.msk [vmem:[%s838] sm:$0xff] %vm596, %v836
        %840 = vst.msk [vmem:[%s838 + $0x8] sm:$0xff] %vm596, %v837
        %v841 = vmul.f32 %v434, %v602
        %v842 = vmul.f32 %v435, %v602
        %v843 = vmul.f32 %v434, %v608
        %v844 = vmul.f32 %v435, %v608
        %v845 = vmul.f32 %v436, %v608
        %v849 = vrot.slane %v843, 1
        %v850 = vrot.slane %v844, 1
        %v851 = vsel %vm474, %v849, %v850
        %v852 = vrot.slane %v845, 1
        %v853 = vsel %vm474, %v850, %v852
        %v856 = vadd.f32 %v841, %v851
        %v857 = vadd.f32 %v842, %v853
        %v858 = vmul.f32 %v434, %v627
        %v859 = vmul.f32 %v435, %v627
        %v860 = vmul.f32 %v436, %v627
        %v864 = vrot.slane %v858, 2
        %v865 = vrot.slane %v859, 2
        %v866 = vsel %vm494, %v864, %v865
        %v867 = vrot.slane %v860, 2
        %v868 = vsel %vm494, %v865, %v867
        %v871 = vadd.f32 %v856, %v866
        %v872 = vadd.f32 %v857, %v868
        %v873 = vmul.f32 %v437, %v646
        %v874 = vmul.f32 %v438, %v646
        %v875 = vadd.f32 %v871, %v873
        %v876 = vadd.f32 %v872, %v874
        %v877 = vmul.f32 %v437, %v654
        %v878 = vmul.f32 %v438, %v654
        %v879 = vmul.f32 %v439, %v654
        %v883 = vrot.slane %v877, 1
        %v884 = vrot.slane %v878, 1
        %v885 = vsel %vm474, %v883, %v884
        %v886 = vrot.slane %v879, 1
        %v887 = vsel %vm474, %v884, %v886
        %v890 = vadd.f32 %v875, %v885
        %v891 = vadd.f32 %v876, %v887
        %v892 = vmul.f32 %v437, %v673
        %v893 = vmul.f32 %v438, %v673
        %v894 = vmul.f32 %v439, %v673
        %v898 = vrot.slane %v892, 2
        %v899 = vrot.slane %v893, 2
        %v900 = vsel %vm494, %v898, %v899
        %v901 = vrot.slane %v894, 2
        %v902 = vsel %vm494, %v899, %v901
        %v905 = vadd.f32 %v890, %v900
        %v906 = vadd.f32 %v891, %v902
        %v907 = vmul.f32 %v440, %v692
        %v908 = vmul.f32 %v441, %v692
        %v909 = vadd.f32 %v905, %v907
        %v910 = vadd.f32 %v906, %v908
        %v911 = vmul.f32 %v440, %v700
        %v912 = vmul.f32 %v441, %v700
        %v913 = vmul.f32 %v442, %v700
        %v917 = vrot.slane %v911, 1
        %v918 = vrot.slane %v912, 1
        %v919 = vsel %vm474, %v917, %v918
        %v920 = vrot.slane %v913, 1
        %v921 = vsel %vm474, %v918, %v920
        %v924 = vadd.f32 %v909, %v919
        %v925 = vadd.f32 %v910, %v921
        %v926 = vmul.f32 %v440, %v719
        %v927 = vmul.f32 %v441, %v719
        %v928 = vmul.f32 %v442, %v719
        %v932 = vrot.slane %v926, 2
        %v933 = vrot.slane %v927, 2
        %v934 = vsel %vm494, %v932, %v933
        %v935 = vrot.slane %v928, 2
        %v936 = vsel %vm494, %v933, %v935
        %v939 = vadd.f32 %v924, %v934
        %v940 = vadd.f32 %v925, %v936
        %s941 = scalar_lea.vmem %s349, 144 [#allocation2]
        %942 = vst.msk [vmem:[%s941] sm:$0xff] %vm596, %v939
        %943 = vst.msk [vmem:[%s941 + $0x8] sm:$0xff] %vm596, %v940
        %v944 = vmul.f32 %v437, %v461
        %v945 = vmul.f32 %v438, %v461
        %v946 = vmul.f32 %v437, %v467
        %v947 = vmul.f32 %v438, %v467
        %v948 = vmul.f32 %v439, %v467
        %v952 = vrot.slane %v946, 1
        %v953 = vrot.slane %v947, 1
        %v954 = vsel %vm474, %v952, %v953
        %v955 = vrot.slane %v948, 1
        %v956 = vsel %vm474, %v953, %v955
        %v959 = vadd.f32 %v944, %v954
        %v960 = vadd.f32 %v945, %v956
        %v961 = vmul.f32 %v437, %v487
        %v962 = vmul.f32 %v438, %v487
        %v963 = vmul.f32 %v439, %v487
        %v967 = vrot.slane %v961, 2
        %v968 = vrot.slane %v962, 2
        %v969 = vsel %vm494, %v967, %v968
        %v970 = vrot.slane %v963, 2
        %v971 = vsel %vm494, %v968, %v970
        %v974 = vadd.f32 %v959, %v969
        %v975 = vadd.f32 %v960, %v971
        %v976 = vmul.f32 %v440, %v507
        %v977 = vmul.f32 %v441, %v507
        %v978 = vadd.f32 %v974, %v976
        %v979 = vadd.f32 %v975, %v977
        %v980 = vmul.f32 %v440, %v515
        %v981 = vmul.f32 %v441, %v515
        %v982 = vmul.f32 %v442, %v515
        %v986 = vrot.slane %v980, 1
        %v987 = vrot.slane %v981, 1
        %v988 = vsel %vm474, %v986, %v987
        %v989 = vrot.slane %v982, 1
        %v990 = vsel %vm474, %v987, %v989
        %v993 = vadd.f32 %v978, %v988
        %v994 = vadd.f32 %v979, %v990
        %v995 = vmul.f32 %v440, %v534
        %v996 = vmul.f32 %v441, %v534
        %v997 = vmul.f32 %v442, %v534
        %v1001 = vrot.slane %v995, 2
        %v1002 = vrot.slane %v996, 2
        %v1003 = vsel %vm494, %v1001, %v1002
        %v1004 = vrot.slane %v997, 2
        %v1005 = vsel %vm494, %v1002, %v1004
        %v1008 = vadd.f32 %v993, %v1003
        %v1009 = vadd.f32 %v994, %v1005
        %v1010 = vmul.f32 %v443, %v553
        %v1011 = vmul.f32 %v444, %v553
        %v1012 = vadd.f32 %v1008, %v1010
        %v1013 = vadd.f32 %v1009, %v1011
        %v1014 = vmul.f32 %v443, %v561
        %v1015 = vmul.f32 %v444, %v561
        %v1016 = vmul.f32 %v445, %v561
        %v1020 = vrot.slane %v1014, 1
        %v1021 = vrot.slane %v1015, 1
        %v1022 = vsel %vm474, %v1020, %v1021
        %v1023 = vrot.slane %v1016, 1
        %v1024 = vsel %vm474, %v1021, %v1023
        %v1027 = vadd.f32 %v1012, %v1022
        %v1028 = vadd.f32 %v1013, %v1024
        %v1029 = vmul.f32 %v443, %v580
        %v1030 = vmul.f32 %v444, %v580
        %v1031 = vmul.f32 %v445, %v580
        %v1035 = vrot.slane %v1029, 2
        %v1036 = vrot.slane %v1030, 2
        %v1037 = vsel %vm494, %v1035, %v1036
        %v1038 = vrot.slane %v1031, 2
        %v1039 = vsel %vm494, %v1036, %v1038
        %v1042 = vadd.f32 %v1027, %v1037
        %v1043 = vadd.f32 %v1028, %v1039
        %s1044 = scalar_lea.vmem %s349, 32 [#allocation2]
        %1045 = vst.msk [vmem:[%s1044] sm:$0xff] %vm596, %v1042
        %1046 = vst.msk [vmem:[%s1044 + $0x8] sm:$0xff] %vm596, %v1043
        %v1047 = vmul.f32 %v437, %v602
        %v1048 = vmul.f32 %v438, %v602
        %v1049 = vmul.f32 %v437, %v608
        %v1050 = vmul.f32 %v438, %v608
        %v1051 = vmul.f32 %v439, %v608
        %v1055 = vrot.slane %v1049, 1
        %v1056 = vrot.slane %v1050, 1
        %v1057 = vsel %vm474, %v1055, %v1056
        %v1058 = vrot.slane %v1051, 1
        %v1059 = vsel %vm474, %v1056, %v1058
        %v1062 = vadd.f32 %v1047, %v1057
        %v1063 = vadd.f32 %v1048, %v1059
        %v1064 = vmul.f32 %v437, %v627
        %v1065 = vmul.f32 %v438, %v627
        %v1066 = vmul.f32 %v439, %v627
        %v1070 = vrot.slane %v1064, 2
        %v1071 = vrot.slane %v1065, 2
        %v1072 = vsel %vm494, %v1070, %v1071
        %v1073 = vrot.slane %v1066, 2
        %v1074 = vsel %vm494, %v1071, %v1073
        %v1077 = vadd.f32 %v1062, %v1072
        %v1078 = vadd.f32 %v1063, %v1074
        %v1079 = vmul.f32 %v440, %v646
        %v1080 = vmul.f32 %v441, %v646
        %v1081 = vadd.f32 %v1077, %v1079
        %v1082 = vadd.f32 %v1078, %v1080
        %v1083 = vmul.f32 %v440, %v654
        %v1084 = vmul.f32 %v441, %v654
        %v1085 = vmul.f32 %v442, %v654
        %v1089 = vrot.slane %v1083, 1
        %v1090 = vrot.slane %v1084, 1
        %v1091 = vsel %vm474, %v1089, %v1090
        %v1092 = vrot.slane %v1085, 1
        %v1093 = vsel %vm474, %v1090, %v1092
        %v1096 = vadd.f32 %v1081, %v1091
        %v1097 = vadd.f32 %v1082, %v1093
        %v1098 = vmul.f32 %v440, %v673
        %v1099 = vmul.f32 %v441, %v673
        %v1100 = vmul.f32 %v442, %v673
        %v1104 = vrot.slane %v1098, 2
        %v1105 = vrot.slane %v1099, 2
        %v1106 = vsel %vm494, %v1104, %v1105
        %v1107 = vrot.slane %v1100, 2
        %v1108 = vsel %vm494, %v1105, %v1107
        %v1111 = vadd.f32 %v1096, %v1106
        %v1112 = vadd.f32 %v1097, %v1108
        %v1113 = vmul.f32 %v443, %v692
        %v1114 = vmul.f32 %v444, %v692
        %v1115 = vadd.f32 %v1111, %v1113
        %v1116 = vadd.f32 %v1112, %v1114
        %v1117 = vmul.f32 %v443, %v700
        %v1118 = vmul.f32 %v444, %v700
        %v1119 = vmul.f32 %v445, %v700
        %v1123 = vrot.slane %v1117, 1
        %v1124 = vrot.slane %v1118, 1
        %v1125 = vsel %vm474, %v1123, %v1124
        %v1126 = vrot.slane %v1119, 1
        %v1127 = vsel %vm474, %v1124, %v1126
        %v1130 = vadd.f32 %v1115, %v1125
        %v1131 = vadd.f32 %v1116, %v1127
        %v1132 = vmul.f32 %v443, %v719
        %v1133 = vmul.f32 %v444, %v719
        %v1134 = vmul.f32 %v445, %v719
        %v1138 = vrot.slane %v1132, 2
        %v1139 = vrot.slane %v1133, 2
        %v1140 = vsel %vm494, %v1138, %v1139
        %v1141 = vrot.slane %v1134, 2
        %v1142 = vsel %vm494, %v1139, %v1141
        %v1145 = vadd.f32 %v1130, %v1140
        %v1146 = vadd.f32 %v1131, %v1142
        %s1147 = scalar_lea.vmem %s349, 160 [#allocation2]
        %1148 = vst.msk [vmem:[%s1147] sm:$0xff] %vm596, %v1145
        %1149 = vst.msk [vmem:[%s1147 + $0x8] sm:$0xff] %vm596, %v1146
        %v1150 = vmul.f32 %v440, %v461
        %v1151 = vmul.f32 %v441, %v461
        %v1152 = vmul.f32 %v440, %v467
        %v1153 = vmul.f32 %v441, %v467
        %v1154 = vmul.f32 %v442, %v467
        %v1158 = vrot.slane %v1152, 1
        %v1159 = vrot.slane %v1153, 1
        %v1160 = vsel %vm474, %v1158, %v1159
        %v1161 = vrot.slane %v1154, 1
        %v1162 = vsel %vm474, %v1159, %v1161
        %v1165 = vadd.f32 %v1150, %v1160
        %v1166 = vadd.f32 %v1151, %v1162
        %v1167 = vmul.f32 %v440, %v487
        %v1168 = vmul.f32 %v441, %v487
        %v1169 = vmul.f32 %v442, %v487
        %v1173 = vrot.slane %v1167, 2
        %v1174 = vrot.slane %v1168, 2
        %v1175 = vsel %vm494, %v1173, %v1174
        %v1176 = vrot.slane %v1169, 2
        %v1177 = vsel %vm494, %v1174, %v1176
        %v1180 = vadd.f32 %v1165, %v1175
        %v1181 = vadd.f32 %v1166, %v1177
        %v1182 = vmul.f32 %v443, %v507
        %v1183 = vmul.f32 %v444, %v507
        %v1184 = vadd.f32 %v1180, %v1182
        %v1185 = vadd.f32 %v1181, %v1183
        %v1186 = vmul.f32 %v443, %v515
        %v1187 = vmul.f32 %v444, %v515
        %v1188 = vmul.f32 %v445, %v515
        %v1192 = vrot.slane %v1186, 1
        %v1193 = vrot.slane %v1187, 1
        %v1194 = vsel %vm474, %v1192, %v1193
        %v1195 = vrot.slane %v1188, 1
        %v1196 = vsel %vm474, %v1193, %v1195
        %v1199 = vadd.f32 %v1184, %v1194
        %v1200 = vadd.f32 %v1185, %v1196
        %v1201 = vmul.f32 %v443, %v534
        %v1202 = vmul.f32 %v444, %v534
        %v1203 = vmul.f32 %v445, %v534
        %v1207 = vrot.slane %v1201, 2
        %v1208 = vrot.slane %v1202, 2
        %v1209 = vsel %vm494, %v1207, %v1208
        %v1210 = vrot.slane %v1203, 2
        %v1211 = vsel %vm494, %v1208, %v1210
        %v1214 = vadd.f32 %v1199, %v1209
        %v1215 = vadd.f32 %v1200, %v1211
        %v1216 = vmul.f32 %v446, %v553
        %v1217 = vmul.f32 %v447, %v553
        %v1218 = vadd.f32 %v1214, %v1216
        %v1219 = vadd.f32 %v1215, %v1217
        %v1220 = vmul.f32 %v446, %v561
        %v1221 = vmul.f32 %v447, %v561
        %v1222 = vmul.f32 %v448, %v561
        %v1226 = vrot.slane %v1220, 1
        %v1227 = vrot.slane %v1221, 1
        %v1228 = vsel %vm474, %v1226, %v1227
        %v1229 = vrot.slane %v1222, 1
        %v1230 = vsel %vm474, %v1227, %v1229
        %v1233 = vadd.f32 %v1218, %v1228
        %v1234 = vadd.f32 %v1219, %v1230
        %v1235 = vmul.f32 %v446, %v580
        %v1236 = vmul.f32 %v447, %v580
        %v1237 = vmul.f32 %v448, %v580
        %v1241 = vrot.slane %v1235, 2
        %v1242 = vrot.slane %v1236, 2
        %v1243 = vsel %vm494, %v1241, %v1242
        %v1244 = vrot.slane %v1237, 2
        %v1245 = vsel %vm494, %v1242, %v1244
        %v1248 = vadd.f32 %v1233, %v1243
        %v1249 = vadd.f32 %v1234, %v1245
        %s1250 = scalar_lea.vmem %s349, 48 [#allocation2]
        %1251 = vst.msk [vmem:[%s1250] sm:$0xff] %vm596, %v1248
        %1252 = vst.msk [vmem:[%s1250 + $0x8] sm:$0xff] %vm596, %v1249
        %v1253 = vmul.f32 %v440, %v602
        %v1254 = vmul.f32 %v441, %v602
        %v1255 = vmul.f32 %v440, %v608
        %v1256 = vmul.f32 %v441, %v608
        %v1257 = vmul.f32 %v442, %v608
        %v1261 = vrot.slane %v1255, 1
        %v1262 = vrot.slane %v1256, 1
        %v1263 = vsel %vm474, %v1261, %v1262
        %v1264 = vrot.slane %v1257, 1
        %v1265 = vsel %vm474, %v1262, %v1264
        %v1268 = vadd.f32 %v1253, %v1263
        %v1269 = vadd.f32 %v1254, %v1265
        %v1270 = vmul.f32 %v440, %v627
        %v1271 = vmul.f32 %v441, %v627
        %v1272 = vmul.f32 %v442, %v627
        %v1276 = vrot.slane %v1270, 2
        %v1277 = vrot.slane %v1271, 2
        %v1278 = vsel %vm494, %v1276, %v1277
        %v1279 = vrot.slane %v1272, 2
        %v1280 = vsel %vm494, %v1277, %v1279
        %v1283 = vadd.f32 %v1268, %v1278
        %v1284 = vadd.f32 %v1269, %v1280
        %v1285 = vmul.f32 %v443, %v646
        %v1286 = vmul.f32 %v444, %v646
        %v1287 = vadd.f32 %v1283, %v1285
        %v1288 = vadd.f32 %v1284, %v1286
        %v1289 = vmul.f32 %v443, %v654
        %v1290 = vmul.f32 %v444, %v654
        %v1291 = vmul.f32 %v445, %v654
        %v1295 = vrot.slane %v1289, 1
        %v1296 = vrot.slane %v1290, 1
        %v1297 = vsel %vm474, %v1295, %v1296
        %v1298 = vrot.slane %v1291, 1
        %v1299 = vsel %vm474, %v1296, %v1298
        %v1302 = vadd.f32 %v1287, %v1297
        %v1303 = vadd.f32 %v1288, %v1299
        %v1304 = vmul.f32 %v443, %v673
        %v1305 = vmul.f32 %v444, %v673
        %v1306 = vmul.f32 %v445, %v673
        %v1310 = vrot.slane %v1304, 2
        %v1311 = vrot.slane %v1305, 2
        %v1312 = vsel %vm494, %v1310, %v1311
        %v1313 = vrot.slane %v1306, 2
        %v1314 = vsel %vm494, %v1311, %v1313
        %v1317 = vadd.f32 %v1302, %v1312
        %v1318 = vadd.f32 %v1303, %v1314
        %v1319 = vmul.f32 %v446, %v692
        %v1320 = vmul.f32 %v447, %v692
        %v1321 = vadd.f32 %v1317, %v1319
        %v1322 = vadd.f32 %v1318, %v1320
        %v1323 = vmul.f32 %v446, %v700
        %v1324 = vmul.f32 %v447, %v700
        %v1325 = vmul.f32 %v448, %v700
        %v1329 = vrot.slane %v1323, 1
        %v1330 = vrot.slane %v1324, 1
        %v1331 = vsel %vm474, %v1329, %v1330
        %v1332 = vrot.slane %v1325, 1
        %v1333 = vsel %vm474, %v1330, %v1332
        %v1336 = vadd.f32 %v1321, %v1331
        %v1337 = vadd.f32 %v1322, %v1333
        %v1338 = vmul.f32 %v446, %v719
        %v1339 = vmul.f32 %v447, %v719
        %v1340 = vmul.f32 %v448, %v719
        %v1344 = vrot.slane %v1338, 2
        %v1345 = vrot.slane %v1339, 2
        %v1346 = vsel %vm494, %v1344, %v1345
        %v1347 = vrot.slane %v1340, 2
        %v1348 = vsel %vm494, %v1345, %v1347
        %v1351 = vadd.f32 %v1336, %v1346
        %v1352 = vadd.f32 %v1337, %v1348
        %s1353 = scalar_lea.vmem %s349, 176 [#allocation2]
        %1354 = vst.msk [vmem:[%s1353] sm:$0xff] %vm596, %v1351
        %1355 = vst.msk [vmem:[%s1353 + $0x8] sm:$0xff] %vm596, %v1352
        %v1356 = vmul.f32 %v443, %v461
        %v1357 = vmul.f32 %v444, %v461
        %v1358 = vmul.f32 %v443, %v467
        %v1359 = vmul.f32 %v444, %v467
        %v1360 = vmul.f32 %v445, %v467
        %v1364 = vrot.slane %v1358, 1
        %v1365 = vrot.slane %v1359, 1
        %v1366 = vsel %vm474, %v1364, %v1365
        %v1367 = vrot.slane %v1360, 1
        %v1368 = vsel %vm474, %v1365, %v1367
        %v1371 = vadd.f32 %v1356, %v1366
        %v1372 = vadd.f32 %v1357, %v1368
        %v1373 = vmul.f32 %v443, %v487
        %v1374 = vmul.f32 %v444, %v487
        %v1375 = vmul.f32 %v445, %v487
        %v1379 = vrot.slane %v1373, 2
        %v1380 = vrot.slane %v1374, 2
        %v1381 = vsel %vm494, %v1379, %v1380
        %v1382 = vrot.slane %v1375, 2
        %v1383 = vsel %vm494, %v1380, %v1382
        %v1386 = vadd.f32 %v1371, %v1381
        %v1387 = vadd.f32 %v1372, %v1383
        %v1388 = vmul.f32 %v446, %v507
        %v1389 = vmul.f32 %v447, %v507
        %v1390 = vadd.f32 %v1386, %v1388
        %v1391 = vadd.f32 %v1387, %v1389
        %v1392 = vmul.f32 %v446, %v515
        %v1393 = vmul.f32 %v447, %v515
        %v1394 = vmul.f32 %v448, %v515
        %v1398 = vrot.slane %v1392, 1
        %v1399 = vrot.slane %v1393, 1
        %v1400 = vsel %vm474, %v1398, %v1399
        %v1401 = vrot.slane %v1394, 1
        %v1402 = vsel %vm474, %v1399, %v1401
        %v1405 = vadd.f32 %v1390, %v1400
        %v1406 = vadd.f32 %v1391, %v1402
        %v1407 = vmul.f32 %v446, %v534
        %v1408 = vmul.f32 %v447, %v534
        %v1409 = vmul.f32 %v448, %v534
        %v1413 = vrot.slane %v1407, 2
        %v1414 = vrot.slane %v1408, 2
        %v1415 = vsel %vm494, %v1413, %v1414
        %v1416 = vrot.slane %v1409, 2
        %v1417 = vsel %vm494, %v1414, %v1416
        %v1420 = vadd.f32 %v1405, %v1415
        %v1421 = vadd.f32 %v1406, %v1417
        %v1422 = vmul.f32 %v449, %v553
        %v1423 = vmul.f32 %v450, %v553
        %v1424 = vadd.f32 %v1420, %v1422
        %v1425 = vadd.f32 %v1421, %v1423
        %v1426 = vmul.f32 %v449, %v561
        %v1427 = vmul.f32 %v450, %v561
        %v1428 = vmul.f32 %v451, %v561
        %v1432 = vrot.slane %v1426, 1
        %v1433 = vrot.slane %v1427, 1
        %v1434 = vsel %vm474, %v1432, %v1433
        %v1435 = vrot.slane %v1428, 1
        %v1436 = vsel %vm474, %v1433, %v1435
        %v1439 = vadd.f32 %v1424, %v1434
        %v1440 = vadd.f32 %v1425, %v1436
        %v1441 = vmul.f32 %v449, %v580
        %v1442 = vmul.f32 %v450, %v580
        %v1443 = vmul.f32 %v451, %v580
        %v1447 = vrot.slane %v1441, 2
        %v1448 = vrot.slane %v1442, 2
        %v1449 = vsel %vm494, %v1447, %v1448
        %v1450 = vrot.slane %v1443, 2
        %v1451 = vsel %vm494, %v1448, %v1450
        %v1454 = vadd.f32 %v1439, %v1449
        %v1455 = vadd.f32 %v1440, %v1451
        %s1456 = scalar_lea.vmem %s349, 64 [#allocation2]
        %1457 = vst.msk [vmem:[%s1456] sm:$0xff] %vm596, %v1454
        %1458 = vst.msk [vmem:[%s1456 + $0x8] sm:$0xff] %vm596, %v1455
        %v1459 = vmul.f32 %v443, %v602
        %v1460 = vmul.f32 %v444, %v602
        %v1461 = vmul.f32 %v443, %v608
        %v1462 = vmul.f32 %v444, %v608
        %v1463 = vmul.f32 %v445, %v608
        %v1467 = vrot.slane %v1461, 1
        %v1468 = vrot.slane %v1462, 1
        %v1469 = vsel %vm474, %v1467, %v1468
        %v1470 = vrot.slane %v1463, 1
        %v1471 = vsel %vm474, %v1468, %v1470
        %v1474 = vadd.f32 %v1459, %v1469
        %v1475 = vadd.f32 %v1460, %v1471
        %v1476 = vmul.f32 %v443, %v627
        %v1477 = vmul.f32 %v444, %v627
        %v1478 = vmul.f32 %v445, %v627
        %v1482 = vrot.slane %v1476, 2
        %v1483 = vrot.slane %v1477, 2
        %v1484 = vsel %vm494, %v1482, %v1483
        %v1485 = vrot.slane %v1478, 2
        %v1486 = vsel %vm494, %v1483, %v1485
        %v1489 = vadd.f32 %v1474, %v1484
        %v1490 = vadd.f32 %v1475, %v1486
        %v1491 = vmul.f32 %v446, %v646
        %v1492 = vmul.f32 %v447, %v646
        %v1493 = vadd.f32 %v1489, %v1491
        %v1494 = vadd.f32 %v1490, %v1492
        %v1495 = vmul.f32 %v446, %v654
        %v1496 = vmul.f32 %v447, %v654
        %v1497 = vmul.f32 %v448, %v654
        %v1501 = vrot.slane %v1495, 1
        %v1502 = vrot.slane %v1496, 1
        %v1503 = vsel %vm474, %v1501, %v1502
        %v1504 = vrot.slane %v1497, 1
        %v1505 = vsel %vm474, %v1502, %v1504
        %v1508 = vadd.f32 %v1493, %v1503
        %v1509 = vadd.f32 %v1494, %v1505
        %v1510 = vmul.f32 %v446, %v673
        %v1511 = vmul.f32 %v447, %v673
        %v1512 = vmul.f32 %v448, %v673
        %v1516 = vrot.slane %v1510, 2
        %v1517 = vrot.slane %v1511, 2
        %v1518 = vsel %vm494, %v1516, %v1517
        %v1519 = vrot.slane %v1512, 2
        %v1520 = vsel %vm494, %v1517, %v1519
        %v1523 = vadd.f32 %v1508, %v1518
        %v1524 = vadd.f32 %v1509, %v1520
        %v1525 = vmul.f32 %v449, %v692
        %v1526 = vmul.f32 %v450, %v692
        %v1527 = vadd.f32 %v1523, %v1525
        %v1528 = vadd.f32 %v1524, %v1526
        %v1529 = vmul.f32 %v449, %v700
        %v1530 = vmul.f32 %v450, %v700
        %v1531 = vmul.f32 %v451, %v700
        %v1535 = vrot.slane %v1529, 1
        %v1536 = vrot.slane %v1530, 1
        %v1537 = vsel %vm474, %v1535, %v1536
        %v1538 = vrot.slane %v1531, 1
        %v1539 = vsel %vm474, %v1536, %v1538
        %v1542 = vadd.f32 %v1527, %v1537
        %v1543 = vadd.f32 %v1528, %v1539
        %v1544 = vmul.f32 %v449, %v719
        %v1545 = vmul.f32 %v450, %v719
        %v1546 = vmul.f32 %v451, %v719
        %v1550 = vrot.slane %v1544, 2
        %v1551 = vrot.slane %v1545, 2
        %v1552 = vsel %vm494, %v1550, %v1551
        %v1553 = vrot.slane %v1546, 2
        %v1554 = vsel %vm494, %v1551, %v1553
        %v1557 = vadd.f32 %v1542, %v1552
        %v1558 = vadd.f32 %v1543, %v1554
        %s1559 = scalar_lea.vmem %s349, 192 [#allocation2]
        %1560 = vst.msk [vmem:[%s1559] sm:$0xff] %vm596, %v1557
        %1561 = vst.msk [vmem:[%s1559 + $0x8] sm:$0xff] %vm596, %v1558
        %v1562 = vmul.f32 %v446, %v461
        %v1563 = vmul.f32 %v447, %v461
        %v1564 = vmul.f32 %v446, %v467
        %v1565 = vmul.f32 %v447, %v467
        %v1566 = vmul.f32 %v448, %v467
        %v1570 = vrot.slane %v1564, 1
        %v1571 = vrot.slane %v1565, 1
        %v1572 = vsel %vm474, %v1570, %v1571
        %v1573 = vrot.slane %v1566, 1
        %v1574 = vsel %vm474, %v1571, %v1573
        %v1577 = vadd.f32 %v1562, %v1572
        %v1578 = vadd.f32 %v1563, %v1574
        %v1579 = vmul.f32 %v446, %v487
        %v1580 = vmul.f32 %v447, %v487
        %v1581 = vmul.f32 %v448, %v487
        %v1585 = vrot.slane %v1579, 2
        %v1586 = vrot.slane %v1580, 2
        %v1587 = vsel %vm494, %v1585, %v1586
        %v1588 = vrot.slane %v1581, 2
        %v1589 = vsel %vm494, %v1586, %v1588
        %v1592 = vadd.f32 %v1577, %v1587
        %v1593 = vadd.f32 %v1578, %v1589
        %v1594 = vmul.f32 %v449, %v507
        %v1595 = vmul.f32 %v450, %v507
        %v1596 = vadd.f32 %v1592, %v1594
        %v1597 = vadd.f32 %v1593, %v1595
        %v1598 = vmul.f32 %v449, %v515
        %v1599 = vmul.f32 %v450, %v515
        %v1600 = vmul.f32 %v451, %v515
        %v1604 = vrot.slane %v1598, 1
        %v1605 = vrot.slane %v1599, 1
        %v1606 = vsel %vm474, %v1604, %v1605
        %v1607 = vrot.slane %v1600, 1
        %v1608 = vsel %vm474, %v1605, %v1607
        %v1611 = vadd.f32 %v1596, %v1606
        %v1612 = vadd.f32 %v1597, %v1608
        %v1613 = vmul.f32 %v449, %v534
        %v1614 = vmul.f32 %v450, %v534
        %v1615 = vmul.f32 %v451, %v534
        %v1619 = vrot.slane %v1613, 2
        %v1620 = vrot.slane %v1614, 2
        %v1621 = vsel %vm494, %v1619, %v1620
        %v1622 = vrot.slane %v1615, 2
        %v1623 = vsel %vm494, %v1620, %v1622
        %v1626 = vadd.f32 %v1611, %v1621
        %v1627 = vadd.f32 %v1612, %v1623
        %v1628 = vmul.f32 %v452, %v553
        %v1629 = vmul.f32 %v453, %v553
        %v1630 = vadd.f32 %v1626, %v1628
        %v1631 = vadd.f32 %v1627, %v1629
        %v1632 = vmul.f32 %v452, %v561
        %v1633 = vmul.f32 %v453, %v561
        %v1634 = vmul.f32 %v454, %v561
        %v1638 = vrot.slane %v1632, 1
        %v1639 = vrot.slane %v1633, 1
        %v1640 = vsel %vm474, %v1638, %v1639
        %v1641 = vrot.slane %v1634, 1
        %v1642 = vsel %vm474, %v1639, %v1641
        %v1645 = vadd.f32 %v1630, %v1640
        %v1646 = vadd.f32 %v1631, %v1642
        %v1647 = vmul.f32 %v452, %v580
        %v1648 = vmul.f32 %v453, %v580
        %v1649 = vmul.f32 %v454, %v580
        %v1653 = vrot.slane %v1647, 2
        %v1654 = vrot.slane %v1648, 2
        %v1655 = vsel %vm494, %v1653, %v1654
        %v1656 = vrot.slane %v1649, 2
        %v1657 = vsel %vm494, %v1654, %v1656
        %v1660 = vadd.f32 %v1645, %v1655
        %v1661 = vadd.f32 %v1646, %v1657
        %s1662 = scalar_lea.vmem %s349, 80 [#allocation2]
        %1663 = vst.msk [vmem:[%s1662] sm:$0xff] %vm596, %v1660
        %1664 = vst.msk [vmem:[%s1662 + $0x8] sm:$0xff] %vm596, %v1661
        %v1665 = vmul.f32 %v446, %v602
        %v1666 = vmul.f32 %v447, %v602
        %v1667 = vmul.f32 %v446, %v608
        %v1668 = vmul.f32 %v447, %v608
        %v1669 = vmul.f32 %v448, %v608
        %v1673 = vrot.slane %v1667, 1
        %v1674 = vrot.slane %v1668, 1
        %v1675 = vsel %vm474, %v1673, %v1674
        %v1676 = vrot.slane %v1669, 1
        %v1677 = vsel %vm474, %v1674, %v1676
        %v1680 = vadd.f32 %v1665, %v1675
        %v1681 = vadd.f32 %v1666, %v1677
        %v1682 = vmul.f32 %v446, %v627
        %v1683 = vmul.f32 %v447, %v627
        %v1684 = vmul.f32 %v448, %v627
        %v1688 = vrot.slane %v1682, 2
        %v1689 = vrot.slane %v1683, 2
        %v1690 = vsel %vm494, %v1688, %v1689
        %v1691 = vrot.slane %v1684, 2
        %v1692 = vsel %vm494, %v1689, %v1691
        %v1695 = vadd.f32 %v1680, %v1690
        %v1696 = vadd.f32 %v1681, %v1692
        %v1697 = vmul.f32 %v449, %v646
        %v1698 = vmul.f32 %v450, %v646
        %v1699 = vadd.f32 %v1695, %v1697
        %v1700 = vadd.f32 %v1696, %v1698
        %v1701 = vmul.f32 %v449, %v654
        %v1702 = vmul.f32 %v450, %v654
        %v1703 = vmul.f32 %v451, %v654
        %v1707 = vrot.slane %v1701, 1
        %v1708 = vrot.slane %v1702, 1
        %v1709 = vsel %vm474, %v1707, %v1708
        %v1710 = vrot.slane %v1703, 1
        %v1711 = vsel %vm474, %v1708, %v1710
        %v1714 = vadd.f32 %v1699, %v1709
        %v1715 = vadd.f32 %v1700, %v1711
        %v1716 = vmul.f32 %v449, %v673
        %v1717 = vmul.f32 %v450, %v673
        %v1718 = vmul.f32 %v451, %v673
        %v1722 = vrot.slane %v1716, 2
        %v1723 = vrot.slane %v1717, 2
        %v1724 = vsel %vm494, %v1722, %v1723
        %v1725 = vrot.slane %v1718, 2
        %v1726 = vsel %vm494, %v1723, %v1725
        %v1729 = vadd.f32 %v1714, %v1724
        %v1730 = vadd.f32 %v1715, %v1726
        %v1731 = vmul.f32 %v452, %v692
        %v1732 = vmul.f32 %v453, %v692
        %v1733 = vadd.f32 %v1729, %v1731
        %v1734 = vadd.f32 %v1730, %v1732
        %v1735 = vmul.f32 %v452, %v700
        %v1736 = vmul.f32 %v453, %v700
        %v1737 = vmul.f32 %v454, %v700
        %v1741 = vrot.slane %v1735, 1
        %v1742 = vrot.slane %v1736, 1
        %v1743 = vsel %vm474, %v1741, %v1742
        %v1744 = vrot.slane %v1737, 1
        %v1745 = vsel %vm474, %v1742, %v1744
        %v1748 = vadd.f32 %v1733, %v1743
        %v1749 = vadd.f32 %v1734, %v1745
        %v1750 = vmul.f32 %v452, %v719
        %v1751 = vmul.f32 %v453, %v719
        %v1752 = vmul.f32 %v454, %v719
        %v1756 = vrot.slane %v1750, 2
        %v1757 = vrot.slane %v1751, 2
        %v1758 = vsel %vm494, %v1756, %v1757
        %v1759 = vrot.slane %v1752, 2
        %v1760 = vsel %vm494, %v1757, %v1759
        %v1763 = vadd.f32 %v1748, %v1758
        %v1764 = vadd.f32 %v1749, %v1760
        %s1765 = scalar_lea.vmem %s349, 208 [#allocation2]
        %1766 = vst.msk [vmem:[%s1765] sm:$0xff] %vm596, %v1763
        %1767 = vst.msk [vmem:[%s1765 + $0x8] sm:$0xff] %vm596, %v1764
        %v1768 = vmul.f32 %v449, %v461
        %v1769 = vmul.f32 %v450, %v461
        %v1770 = vmul.f32 %v449, %v467
        %v1771 = vmul.f32 %v450, %v467
        %v1772 = vmul.f32 %v451, %v467
        %v1776 = vrot.slane %v1770, 1
        %v1777 = vrot.slane %v1771, 1
        %v1778 = vsel %vm474, %v1776, %v1777
        %v1779 = vrot.slane %v1772, 1
        %v1780 = vsel %vm474, %v1777, %v1779
        %v1783 = vadd.f32 %v1768, %v1778
        %v1784 = vadd.f32 %v1769, %v1780
        %v1785 = vmul.f32 %v449, %v487
        %v1786 = vmul.f32 %v450, %v487
        %v1787 = vmul.f32 %v451, %v487
        %v1791 = vrot.slane %v1785, 2
        %v1792 = vrot.slane %v1786, 2
        %v1793 = vsel %vm494, %v1791, %v1792
        %v1794 = vrot.slane %v1787, 2
        %v1795 = vsel %vm494, %v1792, %v1794
        %v1798 = vadd.f32 %v1783, %v1793
        %v1799 = vadd.f32 %v1784, %v1795
        %v1800 = vmul.f32 %v452, %v507
        %v1801 = vmul.f32 %v453, %v507
        %v1802 = vadd.f32 %v1798, %v1800
        %v1803 = vadd.f32 %v1799, %v1801
        %v1804 = vmul.f32 %v452, %v515
        %v1805 = vmul.f32 %v453, %v515
        %v1806 = vmul.f32 %v454, %v515
        %v1810 = vrot.slane %v1804, 1
        %v1811 = vrot.slane %v1805, 1
        %v1812 = vsel %vm474, %v1810, %v1811
        %v1813 = vrot.slane %v1806, 1
        %v1814 = vsel %vm474, %v1811, %v1813
        %v1817 = vadd.f32 %v1802, %v1812
        %v1818 = vadd.f32 %v1803, %v1814
        %v1819 = vmul.f32 %v452, %v534
        %v1820 = vmul.f32 %v453, %v534
        %v1821 = vmul.f32 %v454, %v534
        %v1825 = vrot.slane %v1819, 2
        %v1826 = vrot.slane %v1820, 2
        %v1827 = vsel %vm494, %v1825, %v1826
        %v1828 = vrot.slane %v1821, 2
        %v1829 = vsel %vm494, %v1826, %v1828
        %v1832 = vadd.f32 %v1817, %v1827
        %v1833 = vadd.f32 %v1818, %v1829
        %v1834 = vmul.f32 %v455, %v553
        %v1835 = vmul.f32 %v456, %v553
        %v1836 = vadd.f32 %v1832, %v1834
        %v1837 = vadd.f32 %v1833, %v1835
        %v1838 = vmul.f32 %v455, %v561
        %v1839 = vmul.f32 %v456, %v561
        %v1840 = vmul.f32 %v457, %v561
        %v1844 = vrot.slane %v1838, 1
        %v1845 = vrot.slane %v1839, 1
        %v1846 = vsel %vm474, %v1844, %v1845
        %v1847 = vrot.slane %v1840, 1
        %v1848 = vsel %vm474, %v1845, %v1847
        %v1851 = vadd.f32 %v1836, %v1846
        %v1852 = vadd.f32 %v1837, %v1848
        %v1853 = vmul.f32 %v455, %v580
        %v1854 = vmul.f32 %v456, %v580
        %v1855 = vmul.f32 %v457, %v580
        %v1859 = vrot.slane %v1853, 2
        %v1860 = vrot.slane %v1854, 2
        %v1861 = vsel %vm494, %v1859, %v1860
        %v1862 = vrot.slane %v1855, 2
        %v1863 = vsel %vm494, %v1860, %v1862
        %v1866 = vadd.f32 %v1851, %v1861
        %v1867 = vadd.f32 %v1852, %v1863
        %s1868 = scalar_lea.vmem %s349, 96 [#allocation2]
        %1869 = vst.msk [vmem:[%s1868] sm:$0xff] %vm596, %v1866
        %1870 = vst.msk [vmem:[%s1868 + $0x8] sm:$0xff] %vm596, %v1867
        %v1871 = vmul.f32 %v449, %v602
        %v1872 = vmul.f32 %v450, %v602
        %v1873 = vmul.f32 %v449, %v608
        %v1874 = vmul.f32 %v450, %v608
        %v1875 = vmul.f32 %v451, %v608
        %v1879 = vrot.slane %v1873, 1
        %v1880 = vrot.slane %v1874, 1
        %v1881 = vsel %vm474, %v1879, %v1880
        %v1882 = vrot.slane %v1875, 1
        %v1883 = vsel %vm474, %v1880, %v1882
        %v1886 = vadd.f32 %v1871, %v1881
        %v1887 = vadd.f32 %v1872, %v1883
        %v1888 = vmul.f32 %v449, %v627
        %v1889 = vmul.f32 %v450, %v627
        %v1890 = vmul.f32 %v451, %v627
        %v1894 = vrot.slane %v1888, 2
        %v1895 = vrot.slane %v1889, 2
        %v1896 = vsel %vm494, %v1894, %v1895
        %v1897 = vrot.slane %v1890, 2
        %v1898 = vsel %vm494, %v1895, %v1897
        %v1901 = vadd.f32 %v1886, %v1896
        %v1902 = vadd.f32 %v1887, %v1898
        %v1903 = vmul.f32 %v452, %v646
        %v1904 = vmul.f32 %v453, %v646
        %v1905 = vadd.f32 %v1901, %v1903
        %v1906 = vadd.f32 %v1902, %v1904
        %v1907 = vmul.f32 %v452, %v654
        %v1908 = vmul.f32 %v453, %v654
        %v1909 = vmul.f32 %v454, %v654
        %v1913 = vrot.slane %v1907, 1
        %v1914 = vrot.slane %v1908, 1
        %v1915 = vsel %vm474, %v1913, %v1914
        %v1916 = vrot.slane %v1909, 1
        %v1917 = vsel %vm474, %v1914, %v1916
        %v1920 = vadd.f32 %v1905, %v1915
        %v1921 = vadd.f32 %v1906, %v1917
        %v1922 = vmul.f32 %v452, %v673
        %v1923 = vmul.f32 %v453, %v673
        %v1924 = vmul.f32 %v454, %v673
        %v1928 = vrot.slane %v1922, 2
        %v1929 = vrot.slane %v1923, 2
        %v1930 = vsel %vm494, %v1928, %v1929
        %v1931 = vrot.slane %v1924, 2
        %v1932 = vsel %vm494, %v1929, %v1931
        %v1935 = vadd.f32 %v1920, %v1930
        %v1936 = vadd.f32 %v1921, %v1932
        %v1937 = vmul.f32 %v455, %v692
        %v1938 = vmul.f32 %v456, %v692
        %v1939 = vadd.f32 %v1935, %v1937
        %v1940 = vadd.f32 %v1936, %v1938
        %v1941 = vmul.f32 %v455, %v700
        %v1942 = vmul.f32 %v456, %v700
        %v1943 = vmul.f32 %v457, %v700
        %v1947 = vrot.slane %v1941, 1
        %v1948 = vrot.slane %v1942, 1
        %v1949 = vsel %vm474, %v1947, %v1948
        %v1950 = vrot.slane %v1943, 1
        %v1951 = vsel %vm474, %v1948, %v1950
        %v1954 = vadd.f32 %v1939, %v1949
        %v1955 = vadd.f32 %v1940, %v1951
        %v1956 = vmul.f32 %v455, %v719
        %v1957 = vmul.f32 %v456, %v719
        %v1958 = vmul.f32 %v457, %v719
        %v1962 = vrot.slane %v1956, 2
        %v1963 = vrot.slane %v1957, 2
        %v1964 = vsel %vm494, %v1962, %v1963
        %v1965 = vrot.slane %v1958, 2
        %v1966 = vsel %vm494, %v1963, %v1965
        %v1969 = vadd.f32 %v1954, %v1964
        %v1970 = vadd.f32 %v1955, %v1966
        %s1971 = scalar_lea.vmem %s349, 224 [#allocation2]
        %1972 = vst.msk [vmem:[%s1971] sm:$0xff] %vm596, %v1969
        %1973 = vst.msk [vmem:[%s1971 + $0x8] sm:$0xff] %vm596, %v1970
        %v1974 = vmul.f32 %v452, %v461
        %v1975 = vmul.f32 %v453, %v461
        %v1976 = vmul.f32 %v452, %v467
        %v1977 = vmul.f32 %v453, %v467
        %v1978 = vmul.f32 %v454, %v467
        %v1982 = vrot.slane %v1976, 1
        %v1983 = vrot.slane %v1977, 1
        %v1984 = vsel %vm474, %v1982, %v1983
        %v1985 = vrot.slane %v1978, 1
        %v1986 = vsel %vm474, %v1983, %v1985
        %v1989 = vadd.f32 %v1974, %v1984
        %v1990 = vadd.f32 %v1975, %v1986
        %v1991 = vmul.f32 %v452, %v487
        %v1992 = vmul.f32 %v453, %v487
        %v1993 = vmul.f32 %v454, %v487
        %v1997 = vrot.slane %v1991, 2
        %v1998 = vrot.slane %v1992, 2
        %v1999 = vsel %vm494, %v1997, %v1998
        %v2000 = vrot.slane %v1993, 2
        %v2001 = vsel %vm494, %v1998, %v2000
        %v2004 = vadd.f32 %v1989, %v1999
        %v2005 = vadd.f32 %v1990, %v2001
        %v2006 = vmul.f32 %v455, %v507
        %v2007 = vmul.f32 %v456, %v507
        %v2008 = vadd.f32 %v2004, %v2006
        %v2009 = vadd.f32 %v2005, %v2007
        %v2010 = vmul.f32 %v455, %v515
        %v2011 = vmul.f32 %v456, %v515
        %v2012 = vmul.f32 %v457, %v515
        %v2016 = vrot.slane %v2010, 1
        %v2017 = vrot.slane %v2011, 1
        %v2018 = vsel %vm474, %v2016, %v2017
        %v2019 = vrot.slane %v2012, 1
        %v2020 = vsel %vm474, %v2017, %v2019
        %v2023 = vadd.f32 %v2008, %v2018
        %v2024 = vadd.f32 %v2009, %v2020
        %v2025 = vmul.f32 %v455, %v534
        %v2026 = vmul.f32 %v456, %v534
        %v2027 = vmul.f32 %v457, %v534
        %v2031 = vrot.slane %v2025, 2
        %v2032 = vrot.slane %v2026, 2
        %v2033 = vsel %vm494, %v2031, %v2032
        %v2034 = vrot.slane %v2027, 2
        %v2035 = vsel %vm494, %v2032, %v2034
        %v2038 = vadd.f32 %v2023, %v2033
        %v2039 = vadd.f32 %v2024, %v2035
        %v2040 = vmul.f32 %v431, %v553
        %v2041 = vmul.f32 %v432, %v553
        %v2042 = vadd.f32 %v2038, %v2040
        %v2043 = vadd.f32 %v2039, %v2041
        %v2044 = vmul.f32 %v431, %v561
        %v2045 = vmul.f32 %v432, %v561
        %v2046 = vmul.f32 %v433, %v561
        %v2050 = vrot.slane %v2044, 1
        %v2051 = vrot.slane %v2045, 1
        %v2052 = vsel %vm474, %v2050, %v2051
        %v2053 = vrot.slane %v2046, 1
        %v2054 = vsel %vm474, %v2051, %v2053
        %v2057 = vadd.f32 %v2042, %v2052
        %v2058 = vadd.f32 %v2043, %v2054
        %v2059 = vmul.f32 %v431, %v580
        %v2060 = vmul.f32 %v432, %v580
        %v2061 = vmul.f32 %v433, %v580
        %v2065 = vrot.slane %v2059, 2
        %v2066 = vrot.slane %v2060, 2
        %v2067 = vsel %vm494, %v2065, %v2066
        %v2068 = vrot.slane %v2061, 2
        %v2069 = vsel %vm494, %v2066, %v2068
        %v2072 = vadd.f32 %v2057, %v2067
        %v2073 = vadd.f32 %v2058, %v2069
        %s2074 = scalar_lea.vmem %s349, 112 [#allocation2]
        %2075 = vst.msk [vmem:[%s2074] sm:$0xff] %vm596, %v2072
        %2076 = vst.msk [vmem:[%s2074 + $0x8] sm:$0xff] %vm596, %v2073
        %v2077 = vmul.f32 %v452, %v602
        %v2078 = vmul.f32 %v453, %v602
        %v2079 = vmul.f32 %v452, %v608
        %v2080 = vmul.f32 %v453, %v608
        %v2081 = vmul.f32 %v454, %v608
        %v2085 = vrot.slane %v2079, 1
        %v2086 = vrot.slane %v2080, 1
        %v2087 = vsel %vm474, %v2085, %v2086
        %v2088 = vrot.slane %v2081, 1
        %v2089 = vsel %vm474, %v2086, %v2088
        %v2092 = vadd.f32 %v2077, %v2087
        %v2093 = vadd.f32 %v2078, %v2089
        %v2094 = vmul.f32 %v452, %v627
        %v2095 = vmul.f32 %v453, %v627
        %v2096 = vmul.f32 %v454, %v627
        %v2100 = vrot.slane %v2094, 2
        %v2101 = vrot.slane %v2095, 2
        %v2102 = vsel %vm494, %v2100, %v2101
        %v2103 = vrot.slane %v2096, 2
        %v2104 = vsel %vm494, %v2101, %v2103
        %v2107 = vadd.f32 %v2092, %v2102
        %v2108 = vadd.f32 %v2093, %v2104
        %v2109 = vmul.f32 %v455, %v646
        %v2110 = vmul.f32 %v456, %v646
        %v2111 = vadd.f32 %v2107, %v2109
        %v2112 = vadd.f32 %v2108, %v2110
        %v2113 = vmul.f32 %v455, %v654
        %v2114 = vmul.f32 %v456, %v654
        %v2115 = vmul.f32 %v457, %v654
        %v2119 = vrot.slane %v2113, 1
        %v2120 = vrot.slane %v2114, 1
        %v2121 = vsel %vm474, %v2119, %v2120
        %v2122 = vrot.slane %v2115, 1
        %v2123 = vsel %vm474, %v2120, %v2122
        %v2126 = vadd.f32 %v2111, %v2121
        %v2127 = vadd.f32 %v2112, %v2123
        %v2128 = vmul.f32 %v455, %v673
        %v2129 = vmul.f32 %v456, %v673
        %v2130 = vmul.f32 %v457, %v673
        %v2134 = vrot.slane %v2128, 2
        %v2135 = vrot.slane %v2129, 2
        %v2136 = vsel %vm494, %v2134, %v2135
        %v2137 = vrot.slane %v2130, 2
        %v2138 = vsel %vm494, %v2135, %v2137
        %v2141 = vadd.f32 %v2126, %v2136
        %v2142 = vadd.f32 %v2127, %v2138
        %v2143 = vmul.f32 %v431, %v692
        %v2144 = vmul.f32 %v432, %v692
        %v2145 = vadd.f32 %v2141, %v2143
        %v2146 = vadd.f32 %v2142, %v2144
        %v2147 = vmul.f32 %v431, %v700
        %v2148 = vmul.f32 %v432, %v700
        %v2149 = vmul.f32 %v433, %v700
        %v2153 = vrot.slane %v2147, 1
        %v2154 = vrot.slane %v2148, 1
        %v2155 = vsel %vm474, %v2153, %v2154
        %v2156 = vrot.slane %v2149, 1
        %v2157 = vsel %vm474, %v2154, %v2156
        %v2160 = vadd.f32 %v2145, %v2155
        %v2161 = vadd.f32 %v2146, %v2157
        %v2162 = vmul.f32 %v431, %v719
        %v2163 = vmul.f32 %v432, %v719
        %v2164 = vmul.f32 %v433, %v719
        %v2168 = vrot.slane %v2162, 2
        %v2169 = vrot.slane %v2163, 2
        %v2170 = vsel %vm494, %v2168, %v2169
        %v2171 = vrot.slane %v2164, 2
        %v2172 = vsel %vm494, %v2169, %v2171
        %v2175 = vadd.f32 %v2160, %v2170
        %v2176 = vadd.f32 %v2161, %v2172
        %s2177 = scalar_lea.vmem %s349, 240 [#allocation2]
        %2178 = vst.msk [vmem:[%s2177] sm:$0xff] %vm596, %v2175
        %2179 = vst.msk [vmem:[%s2177 + $0x8] sm:$0xff] %vm596, %v2176
        %s2180 = sand.u32 %s178, 1
        %s2181 = sand.u32 %s178, 1
        %s2182 = smul.addr %s2181, 256
        %s2183 = scalar_lea.vmem [#allocation2], %s2182
        // Predicated region
        $region37: #{depthwise_separable_conv_forward.1} parent=35 // pred_check
          %p2184 = pneg %p188
        $region38: #{depthwise_separable_conv_forward.1} parent=35 // pred_check_branch
          %2186 = sbr.rel (%p2184) target = $region40
        $region39: #{depthwise_separable_conv_forward.1} parent=35 // pred_region
          %s2187 = smul.u32 2, %s20
          %s2188 = smul.u32 8, %s22
          %s2189 = smul.addr %s2188, 2
          %s2190 = sadd.s32 %s21, %s2189
          %s2191 = smul.addr %s2187, 32
          %s2192 = sadd.s32 %s2190, %s2191
          %s2193 = smul.addr %s2192, 8
          %s2194 = scalar_lea.vmem %s4, %s2193
          // Predicated region
          $region41: #{depthwise_separable_conv_forward.1} parent=39 // pred_check
            _
          $region42: #{depthwise_separable_conv_forward.1} parent=39 // pred_check_branch
            %2196 = sbr.rel (0) target = $region44
          $region43: #{depthwise_separable_conv_forward.1} parent=39 // pred_region
            // Predicated region
            $region45: #{depthwise_separable_conv_forward.1} parent=43 // pred_check
              _
            $region46: #{depthwise_separable_conv_forward.1} parent=43 // pred_check_branch
              %2198 = sbr.rel (0) target = $region48
            $region47: #{depthwise_separable_conv_forward.1} parent=43 // pred_region
              // Predicated region
              $region60: #{depthwise_separable_conv_forward.1} parent=47 // pred_check
                _
              $region61: #{depthwise_separable_conv_forward.1} parent=47 // pred_check_branch
                %2275 = sbr.rel (0) target = $region63
              $region62: #{depthwise_separable_conv_forward.1} parent=47 // pred_region
                loop: start=0, step=1, limit=1
                $region64: #{depthwise_separable_conv_forward.1} parent=62 // loop_pre_header
                  _
                $region65: #{depthwise_separable_conv_forward.1} parent=62 // loop_header
                  %s2277 = sphi 0, %s2281
                  %p2278 = scmp.ge.s32.totalorder %s2277, 1
                  %s2282 = sphi %s2183, %s2183
                  %s2283 = sphi %s2194, %s2194
                $region66: #{depthwise_separable_conv_forward.1} parent=62 // loop_header_branch
                  %2280 = sbr.rel (%p2278) target = $region70
                $region67: #{depthwise_separable_conv_forward.1} parent=62 // loop_body
                  %v2284 = vld [vmem:[%s2282] sm:$0xff]
                  %2285 = vst [vmem:[%s2283] sm:$0xff] %v2284
                  %v2286 = vld [vmem:[%s2282 + $0x8] sm:$0xff]
                  %2287 = vst [vmem:[%s2283 + $0x8] sm:$0xff] %v2286
                  %v2288 = vld [vmem:[%s2282 + $0x10] sm:$0xff]
                  %2289 = vst [vmem:[%s2283 + $0x10] sm:$0xff] %v2288
                  %v2290 = vld [vmem:[%s2282 + $0x18] sm:$0xff]
                  %2291 = vst [vmem:[%s2283 + $0x18] sm:$0xff] %v2290
                  %v2292 = vld [vmem:[%s2282 + $0x20] sm:$0xff]
                  %2293 = vst [vmem:[%s2283 + $0x20] sm:$0xff] %v2292
                  %v2294 = vld [vmem:[%s2282 + $0x28] sm:$0xff]
                  %2295 = vst [vmem:[%s2283 + $0x28] sm:$0xff] %v2294
                  %v2296 = vld [vmem:[%s2282 + $0x30] sm:$0xff]
                  %2297 = vst [vmem:[%s2283 + $0x30] sm:$0xff] %v2296
                  %v2298 = vld [vmem:[%s2282 + $0x38] sm:$0xff]
                  %2299 = vst [vmem:[%s2283 + $0x38] sm:$0xff] %v2298
                  %v2300 = vld [vmem:[%s2282 + $0x40] sm:$0xff]
                  %2301 = vst [vmem:[%s2283 + $0x40] sm:$0xff] %v2300
                  %v2302 = vld [vmem:[%s2282 + $0x48] sm:$0xff]
                  %2303 = vst [vmem:[%s2283 + $0x48] sm:$0xff] %v2302
                  %v2304 = vld [vmem:[%s2282 + $0x50] sm:$0xff]
                  %2305 = vst [vmem:[%s2283 + $0x50] sm:$0xff] %v2304
                  %v2306 = vld [vmem:[%s2282 + $0x58] sm:$0xff]
                  %2307 = vst [vmem:[%s2283 + $0x58] sm:$0xff] %v2306
                  %v2308 = vld [vmem:[%s2282 + $0x60] sm:$0xff]
                  %2309 = vst [vmem:[%s2283 + $0x60] sm:$0xff] %v2308
                  %v2310 = vld [vmem:[%s2282 + $0x68] sm:$0xff]
                  %2311 = vst [vmem:[%s2283 + $0x68] sm:$0xff] %v2310
                  %v2312 = vld [vmem:[%s2282 + $0x70] sm:$0xff]
                  %2313 = vst [vmem:[%s2283 + $0x70] sm:$0xff] %v2312
                  %v2314 = vld [vmem:[%s2282 + $0x78] sm:$0xff]
                  %2315 = vst [vmem:[%s2283 + $0x78] sm:$0xff] %v2314
                  %v2316 = vld [vmem:[%s2282 + $0x80] sm:$0xff]
                  %2317 = vst [vmem:[%s2283 + $0x100] sm:$0xff] %v2316
                  %v2318 = vld [vmem:[%s2282 + $0x88] sm:$0xff]
                  %2319 = vst [vmem:[%s2283 + $0x108] sm:$0xff] %v2318
                  %v2320 = vld [vmem:[%s2282 + $0x90] sm:$0xff]
                  %2321 = vst [vmem:[%s2283 + $0x110] sm:$0xff] %v2320
                  %v2322 = vld [vmem:[%s2282 + $0x98] sm:$0xff]
                  %2323 = vst [vmem:[%s2283 + $0x118] sm:$0xff] %v2322
                  %v2324 = vld [vmem:[%s2282 + $0xa0] sm:$0xff]
                  %2325 = vst [vmem:[%s2283 + $0x120] sm:$0xff] %v2324
                  %v2326 = vld [vmem:[%s2282 + $0xa8] sm:$0xff]
                  %2327 = vst [vmem:[%s2283 + $0x128] sm:$0xff] %v2326
                  %v2328 = vld [vmem:[%s2282 + $0xb0] sm:$0xff]
                  %2329 = vst [vmem:[%s2283 + $0x130] sm:$0xff] %v2328
                  %v2330 = vld [vmem:[%s2282 + $0xb8] sm:$0xff]
                  %2331 = vst [vmem:[%s2283 + $0x138] sm:$0xff] %v2330
                  %v2332 = vld [vmem:[%s2282 + $0xc0] sm:$0xff]
                  %2333 = vst [vmem:[%s2283 + $0x140] sm:$0xff] %v2332
                  %v2334 = vld [vmem:[%s2282 + $0xc8] sm:$0xff]
                  %2335 = vst [vmem:[%s2283 + $0x148] sm:$0xff] %v2334
                  %v2336 = vld [vmem:[%s2282 + $0xd0] sm:$0xff]
                  %2337 = vst [vmem:[%s2283 + $0x150] sm:$0xff] %v2336
                  %v2338 = vld [vmem:[%s2282 + $0xd8] sm:$0xff]
                  %2339 = vst [vmem:[%s2283 + $0x158] sm:$0xff] %v2338
                  %v2340 = vld [vmem:[%s2282 + $0xe0] sm:$0xff]
                  %2341 = vst [vmem:[%s2283 + $0x160] sm:$0xff] %v2340
                  %v2342 = vld [vmem:[%s2282 + $0xe8] sm:$0xff]
                  %2343 = vst [vmem:[%s2283 + $0x168] sm:$0xff] %v2342
                  %v2344 = vld [vmem:[%s2282 + $0xf0] sm:$0xff]
                  %2345 = vst [vmem:[%s2283 + $0x170] sm:$0xff] %v2344
                  %v2346 = vld [vmem:[%s2282 + $0xf8] sm:$0xff]
                  %2347 = vst [vmem:[%s2283 + $0x178] sm:$0xff] %v2346
                $region68: #{depthwise_separable_conv_forward.1} parent=62 // loop_footer
                  %s2281 = sadd.s32 1, %s2277
                $region69: #{depthwise_separable_conv_forward.1} parent=62 // loop_footer_branch
                  %2276 = sbr.rel target = $region65
                $region70: #{depthwise_separable_conv_forward.1} parent=62 // loop_exit
                  _
              $region63: #{depthwise_separable_conv_forward.1} parent=47 // pred_fallthru
                _
              // Predicated region
              $region71: #{depthwise_separable_conv_forward.1} parent=47 // pred_check
                _
              $region72: #{depthwise_separable_conv_forward.1} parent=47 // pred_check_branch
                %2349 = sbr.rel target = $region74
              $region73: #{depthwise_separable_conv_forward.1} parent=47 // pred_region
                _
              $region74: #{depthwise_separable_conv_forward.1} parent=47 // pred_fallthru
                _
            $region48: #{depthwise_separable_conv_forward.1} parent=43 // pred_fallthru
              _
            // Predicated region
            $region49: #{depthwise_separable_conv_forward.1} parent=43 // pred_check
              _
            $region50: #{depthwise_separable_conv_forward.1} parent=43 // pred_check_branch
              %2200 = sbr.rel target = $region52
            $region51: #{depthwise_separable_conv_forward.1} parent=43 // pred_region
              loop: start=0, step=1, limit=1
              $region53: #{depthwise_separable_conv_forward.1} parent=51 // loop_pre_header
                _
              $region54: #{depthwise_separable_conv_forward.1} parent=51 // loop_header
                %s2203 = sphi 0, %s2207
                %p2204 = scmp.ge.s32.totalorder %s2203, 1
                %s2208 = sphi %s2183, %s2183
                %s2209 = sphi %s2194, %s2194
              $region55: #{depthwise_separable_conv_forward.1} parent=51 // loop_header_branch
                %2206 = sbr.rel (%p2204) target = $region59
              $region56: #{depthwise_separable_conv_forward.1} parent=51 // loop_body
                %v2210 = vld [vmem:[%s2208] sm:$0xff]
                %2211 = vst [vmem:[%s2209] sm:$0xff] %v2210
                %v2212 = vld [vmem:[%s2208 + $0x8] sm:$0xff]
                %2213 = vst [vmem:[%s2209 + $0x8] sm:$0xff] %v2212
                %v2214 = vld [vmem:[%s2208 + $0x10] sm:$0xff]
                %2215 = vst [vmem:[%s2209 + $0x10] sm:$0xff] %v2214
                %v2216 = vld [vmem:[%s2208 + $0x18] sm:$0xff]
                %2217 = vst [vmem:[%s2209 + $0x18] sm:$0xff] %v2216
                %v2218 = vld [vmem:[%s2208 + $0x20] sm:$0xff]
                %2219 = vst [vmem:[%s2209 + $0x20] sm:$0xff] %v2218
                %v2220 = vld [vmem:[%s2208 + $0x28] sm:$0xff]
                %2221 = vst [vmem:[%s2209 + $0x28] sm:$0xff] %v2220
                %v2222 = vld [vmem:[%s2208 + $0x30] sm:$0xff]
                %2223 = vst [vmem:[%s2209 + $0x30] sm:$0xff] %v2222
                %v2224 = vld [vmem:[%s2208 + $0x38] sm:$0xff]
                %2225 = vst [vmem:[%s2209 + $0x38] sm:$0xff] %v2224
                %v2226 = vld [vmem:[%s2208 + $0x40] sm:$0xff]
                %2227 = vst [vmem:[%s2209 + $0x40] sm:$0xff] %v2226
                %v2228 = vld [vmem:[%s2208 + $0x48] sm:$0xff]
                %2229 = vst [vmem:[%s2209 + $0x48] sm:$0xff] %v2228
                %v2230 = vld [vmem:[%s2208 + $0x50] sm:$0xff]
                %2231 = vst [vmem:[%s2209 + $0x50] sm:$0xff] %v2230
                %v2232 = vld [vmem:[%s2208 + $0x58] sm:$0xff]
                %2233 = vst [vmem:[%s2209 + $0x58] sm:$0xff] %v2232
                %v2234 = vld [vmem:[%s2208 + $0x60] sm:$0xff]
                %2235 = vst [vmem:[%s2209 + $0x60] sm:$0xff] %v2234
                %v2236 = vld [vmem:[%s2208 + $0x68] sm:$0xff]
                %2237 = vst [vmem:[%s2209 + $0x68] sm:$0xff] %v2236
                %v2238 = vld [vmem:[%s2208 + $0x70] sm:$0xff]
                %2239 = vst [vmem:[%s2209 + $0x70] sm:$0xff] %v2238
                %v2240 = vld [vmem:[%s2208 + $0x78] sm:$0xff]
                %2241 = vst [vmem:[%s2209 + $0x78] sm:$0xff] %v2240
                %v2242 = vld [vmem:[%s2208 + $0x80] sm:$0xff]
                %2243 = vst [vmem:[%s2209 + $0x100] sm:$0xff] %v2242
                %v2244 = vld [vmem:[%s2208 + $0x88] sm:$0xff]
                %2245 = vst [vmem:[%s2209 + $0x108] sm:$0xff] %v2244
                %v2246 = vld [vmem:[%s2208 + $0x90] sm:$0xff]
                %2247 = vst [vmem:[%s2209 + $0x110] sm:$0xff] %v2246
                %v2248 = vld [vmem:[%s2208 + $0x98] sm:$0xff]
                %2249 = vst [vmem:[%s2209 + $0x118] sm:$0xff] %v2248
                %v2250 = vld [vmem:[%s2208 + $0xa0] sm:$0xff]
                %2251 = vst [vmem:[%s2209 + $0x120] sm:$0xff] %v2250
                %v2252 = vld [vmem:[%s2208 + $0xa8] sm:$0xff]
                %2253 = vst [vmem:[%s2209 + $0x128] sm:$0xff] %v2252
                %v2254 = vld [vmem:[%s2208 + $0xb0] sm:$0xff]
                %2255 = vst [vmem:[%s2209 + $0x130] sm:$0xff] %v2254
                %v2256 = vld [vmem:[%s2208 + $0xb8] sm:$0xff]
                %2257 = vst [vmem:[%s2209 + $0x138] sm:$0xff] %v2256
                %v2258 = vld [vmem:[%s2208 + $0xc0] sm:$0xff]
                %2259 = vst [vmem:[%s2209 + $0x140] sm:$0xff] %v2258
                %v2260 = vld [vmem:[%s2208 + $0xc8] sm:$0xff]
                %2261 = vst [vmem:[%s2209 + $0x148] sm:$0xff] %v2260
                %v2262 = vld [vmem:[%s2208 + $0xd0] sm:$0xff]
                %2263 = vst [vmem:[%s2209 + $0x150] sm:$0xff] %v2262
                %v2264 = vld [vmem:[%s2208 + $0xd8] sm:$0xff]
                %2265 = vst [vmem:[%s2209 + $0x158] sm:$0xff] %v2264
                %v2266 = vld [vmem:[%s2208 + $0xe0] sm:$0xff]
                %2267 = vst [vmem:[%s2209 + $0x160] sm:$0xff] %v2266
                %v2268 = vld [vmem:[%s2208 + $0xe8] sm:$0xff]
                %2269 = vst [vmem:[%s2209 + $0x168] sm:$0xff] %v2268
                %v2270 = vld [vmem:[%s2208 + $0xf0] sm:$0xff]
                %2271 = vst [vmem:[%s2209 + $0x170] sm:$0xff] %v2270
                %v2272 = vld [vmem:[%s2208 + $0xf8] sm:$0xff]
                %2273 = vst [vmem:[%s2209 + $0x178] sm:$0xff] %v2272
              $region57: #{depthwise_separable_conv_forward.1} parent=51 // loop_footer
                %s2207 = sadd.s32 1, %s2203
              $region58: #{depthwise_separable_conv_forward.1} parent=51 // loop_footer_branch
                %2202 = sbr.rel target = $region54
              $region59: #{depthwise_separable_conv_forward.1} parent=51 // loop_exit
                _
            $region52: #{depthwise_separable_conv_forward.1} parent=43 // pred_fallthru
              _
          $region44: #{depthwise_separable_conv_forward.1} parent=39 // pred_fallthru
            _
          %2350 = vnop
        $region40: #{depthwise_separable_conv_forward.1} parent=35 // pred_fallthru
          _
      $region36: #{depthwise_separable_conv_forward.1} parent=5 // pred_fallthru
        _
      %p2351 = scmp.le.s32.totalorder 2, %s10
      // Predicated region
      $region75: #{depthwise_separable_conv_forward.1} parent=5 // pred_check
        %p2352 = pneg %p2351
      $region76: #{depthwise_separable_conv_forward.1} parent=5 // pred_check_branch
        %2354 = sbr.rel (%p2352) target = $region78
      $region77: #{depthwise_separable_conv_forward.1} parent=5 // pred_region
        %s2355 = ssub.s32 %s10, 2
        // Predicated region
        $region79: #{depthwise_separable_conv_forward.1} parent=77 // pred_check
          %p2356 = pneg %p194
        $region80: #{depthwise_separable_conv_forward.1} parent=77 // pred_check_branch
          %2358 = sbr.rel (%p2356) target = $region82
        $region81: #{depthwise_separable_conv_forward.1} parent=77 // pred_region
          %s2359 = sand.u32 %s179, 1
          %s2360 = sand.u32 %s179, 1
          %s2361 = smul.addr %s2360, 256
          %s2362 = scalar_lea.vmem [#allocation2], %s2361
        $region82: #{depthwise_separable_conv_forward.1} parent=77 // pred_fallthru
          _
      $region78: #{depthwise_separable_conv_forward.1} parent=5 // pred_fallthru
        _
    $region6: #{depthwise_separable_conv_forward.1} parent=1 // loop_footer
      %s14 = sadd.s32 1, %s10
    $region7: #{depthwise_separable_conv_forward.1} parent=1 // loop_footer_branch
      %9 = sbr.rel target = $region3
    $region8: #{depthwise_separable_conv_forward.1} parent=1 // loop_exit
      _

</llo_original>
